<compile_context>
chip_gen: v6e
topology: v6e:2x2x1
jax: 0.10.0
libtpu: 0.0.40
codegen_flags: <defaults>
</compile_context>

<pallas_src>
import math
import jax
import jax.numpy as jnp
from jax import lax
from jax.experimental import pallas as pl
from jax.experimental.pallas import tpu as pltpu

F32 = jnp.float32
BF16 = jnp.bfloat16
BN_SCALE = 1.0 / math.sqrt(1.0 + 1e-5)   # eval-mode BatchNorm1d, default running stats
LEAKY_SLOPE = 0.2                        # nn.LeakyReLU(negative_slope=0.2) in output_proj
LANE = 128                               # lane-dense padded width for hidden dims


def _relu(x):
    return jnp.maximum(x, 0.0)


def _mm(a_bf16, w_bf16):
    """bf16 x bf16 matmul with f32 accumulation (MXU-native on v5e/v6e/v7x)."""
    return jnp.dot(a_bf16, w_bf16, preferred_element_type=F32)


def _onehot_bf16(iota, idx):
    """Exact 0/1 selection matrix in bf16 (selection values are exact in bf16)."""
    return jnp.where(iota == idx, 1.0, 0.0).astype(BF16)


# ------------------------------ fused forward kernel ------------------------------

def make_forward_kernel(B, S, E, num_heads, num_layers, head_dim):
    N = B * S
    L = num_layers
    scale = 1.0 / math.sqrt(head_dim)

    # Static blob indices -- must match pack_params() ordering (weights & biases aligned).
    NE_W1, NE_W2, EE_W1, EE_W2, GI_WL, GI_W1, GI_W2 = range(7)
    LAYER0 = 7                   # per layer: Wq, Wk, Wv, Wo, mlp W1, mlp W2
    OUT0 = 7 + 6 * L             # out W1, W2, W3

    def kernel(x_ref, ea_ref, src_ref, dst_ref, bidx_ref, w_ref, b_ref, o_ref):
        W = lambda i: w_ref[i]    # [128,128] bf16
        Bv = lambda i: b_ref[i]   # [1,128]   f32

        # ---------------- node / edge encoders ----------------
        h = _relu(_mm(x_ref[...].astype(BF16), W(NE_W1)) + Bv(NE_W1))
        h = _relu(_mm(h.astype(BF16), W(NE_W2)) + Bv(NE_W2))
        e = _relu(_mm(ea_ref[...].astype(BF16), W(EE_W1)) + Bv(EE_W1))
        e = _relu(_mm(e.astype(BF16), W(EE_W2)) + Bv(EE_W2))

        # one-hot gather / scatter / pool matrices built in-kernel from tiny int32 index
        # arrays (no O(E*N) HBM traffic), in bf16 for the MXU-native matmul path.
        src = src_ref[...]                                                    # [E, 1]
        dst = dst_ref[...]                                                    # [1, E]
        bid = bidx_ref[...]                                                   # [1, N]
        G = _onehot_bf16(lax.broadcasted_iota(jnp.int32, (E, N), 1), src)     # gather  [E,N]
        SC = _onehot_bf16(lax.broadcasted_iota(jnp.int32, (N, E), 0), dst)    # scatter [N,E]
        P = _onehot_bf16(lax.broadcasted_iota(jnp.int32, (B, N), 0), bid)     # pool    [B,N]

        # GINEConv edge lin is shared across all GPS layers -> compute once.
        e_lin = _mm(e.astype(BF16), W(GI_WL)) + Bv(GI_WL)                     # [E, 128]

        for l in range(L):
            off = LAYER0 + 6 * l
            h_bf = h.astype(BF16)                           # hoisted once per layer

            # -------- local branch: GINEConv (eps = 0, module shared across layers) --------
            # TODO(synk): tile the edge dimension (E-chunks) once dense G/SC no longer fit
            # v7x's 64 MiB VMEM; at this size the dense bf16 one-hots are cheapest.
            xj = _mm(G, h_bf)                               # gather h[src]       [E, 128]
            msg = _relu(xj + e_lin).astype(BF16)
            agg = _mm(SC, msg)                              # scatter-add to dst  [N, 128]
            hl = agg + h
            hl = _relu(_mm(hl.astype(BF16), W(GI_W1)) + Bv(GI_W1))
            hl = _relu(_mm(hl.astype(BF16), W(GI_W2)) + Bv(GI_W2))

            # -------- global branch: multihead self-attention (dense equal-size batch) --------
            # TODO(synk): ragged graphs / key-padding-mask path omitted; equal-size graphs and
            # per-graph node ordering are validated in pack_graph(), so the mask bias is zero.
            q_all = _mm(h_bf, W(off + 0)) + Bv(off + 0)     # heads folded: one matmul each
            k_all = _mm(h_bf, W(off + 1)) + Bv(off + 1)
            v_all = _mm(h_bf, W(off + 2)) + Bv(off + 2)
            Wo = W(off + 3)
            ha = jnp.zeros((N, LANE), F32)
            for hh in range(num_heads):                     # static & small
                lo = hh * head_dim
                q = q_all[:, lo:lo + head_dim].astype(BF16).reshape(B, S, head_dim)
                k = k_all[:, lo:lo + head_dim].astype(BF16).reshape(B, S, head_dim)
                v = v_all[:, lo:lo + head_dim].astype(BF16).reshape(B, S, head_dim)
                sc = jnp.einsum('bqd,bkd->bqk', q, k,
                                preferred_element_type=F32) * scale
                sc = sc - jnp.max(sc, axis=-1, keepdims=True)
                p = jnp.exp(sc)
                p = p * pl.reciprocal(jnp.sum(p, axis=-1, keepdims=True), approx=True)
                ov = jnp.einsum('bqk,bkd->bqd', p.astype(BF16), v,
                                preferred_element_type=F32)
                # per-head out-proj: contract over head_dim rows of the folded Wo
                ha = ha + _mm(ov.reshape(N, head_dim).astype(BF16),
                              Wo[lo:lo + head_dim, :])
            ha = ha + Bv(off + 3)

            # -------- GPSConv combine: residuals + eval-mode BatchNorm + FFN --------
            hl = (hl + h) * BN_SCALE
            ha = (ha + h) * BN_SCALE
            s = hl + ha
            m = _relu(_mm(s.astype(BF16), W(off + 4)) + Bv(off + 4))
            m = _mm(m.astype(BF16), W(off + 5)) + Bv(off + 5)
            h = (s + m) * BN_SCALE

        # ---------------- global mean pool + MLP head ----------------
        g = _mm(P, h.astype(BF16)) * (1.0 / S)              # equal-size graphs: mean = sum / S
        z = _mm(g.astype(BF16), W(OUT0 + 0)) + Bv(OUT0 + 0)
        z = jnp.where(z >= 0, z, LEAKY_SLOPE * z)
        z = _mm(z.astype(BF16), W(OUT0 + 1)) + Bv(OUT0 + 1)
        z = jnp.where(z >= 0, z, LEAKY_SLOPE * z)
        o_ref[...] = _mm(z.astype(BF16), W(OUT0 + 2)) + Bv(OUT0 + 2)

    return kernel


# ------------------------------ parameters ------------------------------

def init_params(key, num_features, num_edge_features, hidden, num_layers, num_classes):
    """Logical (unpadded) parameters mirroring the PyTorch module."""
    keys = iter(jax.random.split(key, 128))

    def lin(fi, fo):
        w = jax.random.normal(next(keys), (fi, fo), F32) / math.sqrt(fi)
        b = jax.random.normal(next(keys), (1, fo), F32) * 0.01
        return w, b

    node_enc = (*lin(num_features, hidden), *lin(hidden, hidden))
    edge_enc = (*lin(num_edge_features, hidden), *lin(hidden, hidden))
    # GINEConv (edge lin + nn MLP) is a single shared module across all GPS layers
    gine = (*lin(hidden, hidden), *lin(hidden, hidden), *lin(hidden, hidden))
    layers = []
    for _ in range(num_layers):
        attn = (*lin(hidden, hidden), *lin(hidden, hidden),
                *lin(hidden, hidden), *lin(hidden, hidden))   # Wq,bq,Wk,bk,Wv,bv,Wo,bo
        mlp = (*lin(hidden, 2 * hidden), *lin(2 * hidden, hidden))
        layers.append({'attn': attn, 'mlp': mlp})
    out_proj = (*lin(hidden, hidden), *lin(hidden, hidden // 2),
                *lin(hidden // 2, num_classes))
    return {'node_enc': node_enc, 'edge_enc': edge_enc, 'gine': gine,
            'layers': layers, 'out_proj': out_proj}


def _pad2(a, rows, cols, dtype):
    out = jnp.zeros((rows, cols), dtype)
    return out.at[:a.shape[0], :a.shape[1]].set(a.astype(dtype))


def pack_params(params):
    """Pack every (weight, bias) pair into two contiguous, lane-dense blobs:
         w_blob [NW, 128, 128] bf16   and   b_blob [NW, 1, 128] f32.
       Static blob indices inside the kernel must match this ordering.
       Runs ONCE, outside the per-forward path."""
    Ws, Bs = [], []

    def add(w, b):
        assert w.shape[0] <= LANE and w.shape[1] <= LANE
        Ws.append(_pad2(w, LANE, LANE, BF16))
        Bs.append(_pad2(b, 1, LANE, F32))

    w1, b1, w2, b2 = params['node_enc']; add(w1, b1); add(w2, b2)
    w1, b1, w2, b2 = params['edge_enc']; add(w1, b1); add(w2, b2)
    wl, bl, w1, b1, w2, b2 = params['gine']; add(wl, bl); add(w1, b1); add(w2, b2)
    for layer in params['layers']:
        Wq, bq, Wk, bk, Wv, bv, Wo, bo = layer['attn']
        add(Wq, bq); add(Wk, bk); add(Wv, bv); add(Wo, bo)    # heads stay folded
        w1m, b1m, w2m, b2m = layer['mlp']; add(w1m, b1m); add(w2m, b2m)
    w1, b1, w2, b2, w3, b3 = params['out_proj']; add(w1, b1); add(w2, b2); add(w3, b3)

    w_blob = jnp.stack(Ws)    # [NW, 128, 128] bf16
    b_blob = jnp.stack(Bs)    # [NW, 1, 128]   f32
    return w_blob, b_blob


def pack_graph(edge_index, batch, num_graphs):
    """Topology index arrays packed once per graph batch. Validates the equal-size-graph
    dense-batching assumption (batch vector contents, not just N % B)."""
    batch = jnp.asarray(batch, jnp.int32)
    N = int(batch.shape[0])
    B = int(num_graphs)
    assert N % B == 0, "equal-size graphs required (dense batching via reshape)"
    S = N // B
    assert S % 8 == 0, "nodes-per-graph must be a multiple of 8 (sublane tile)"
    expected = jnp.repeat(jnp.arange(B, dtype=jnp.int32), S)
    assert bool(jnp.all(batch == expected)), \
        "nodes must be ordered by graph with equal-size graphs"
    src = edge_index[0].astype(jnp.int32)
    dst = edge_index[1].astype(jnp.int32)
    assert bool(jnp.all(src // S == dst // S)), "edges must not cross graph boundaries"
    return src.reshape(-1, 1), dst.reshape(1, -1), batch.reshape(1, -1)


# ------------------------------ forward ------------------------------

def _vmem_limit_bytes():
    # Per-generation VMEM limit (v7x has 64 MiB physical; v5e/v6e have 128 MiB).
    try:
        cap = int(pltpu.get_tpu_info().vmem_capacity_bytes)
    except Exception:
        cap = 64 * 1024 * 1024
    return min(cap // 2, 64 * 1024 * 1024)


def graph_transformer_forward(w_blob, b_blob, graph, x, edge_attr, *,
                              num_graphs, num_heads, num_layers, hidden, num_classes):
    src, dst, bidx = graph
    N, E, B = x.shape[0], edge_attr.shape[0], num_graphs
    assert N % B == 0
    S = N // B
    assert S % 8 == 0, "S must be a sublane-tile multiple (layout-preserving reshapes)"
    assert hidden % num_heads == 0
    head_dim = hidden // num_heads

    # lane-dense inputs (zero feature padding x zero weight-row padding -> exact)
    def pad_cols(a):
        return jnp.pad(a, ((0, 0), (0, LANE - a.shape[1]))) if a.shape[1] < LANE else a

    x_p = pad_cols(x.astype(F32))
    ea_p = pad_cols(edge_attr.astype(F32))

    # TODO(synk): add a per-graph grid axis with dimension_semantics=("parallel",) plus
    # E-chunk tiling of the gather/scatter so work shards across v7x's two TensorCores and
    # matmul M grows toward the MXU row count; at this problem size one fused program wins.
    kernel = make_forward_kernel(B, S, E, num_heads, num_layers, head_dim)
    out = pl.pallas_call(
        kernel,
        out_shape=jax.ShapeDtypeStruct((B, LANE), F32),
        in_specs=[pl.BlockSpec(memory_space=pltpu.MemorySpace.VMEM)] * 7,
        out_specs=pl.BlockSpec(memory_space=pltpu.MemorySpace.VMEM),
        compiler_params=pltpu.CompilerParams(vmem_limit_bytes=_vmem_limit_bytes()),
    )(x_p, ea_p, src, dst, bidx, w_blob, b_blob)
    return out[:, :num_classes]


# ------------------------------ main ------------------------------

if __name__ == "__main__":
    num_features = 8
    num_edge_features = 8
    hidden_dim = 32
    num_heads = 2
    n_layers = 2
    num_classes = 1
    B, S = 2, 8                 # 2 graphs, 8 nodes each
    N = B * S

    # directed ring (both directions) within each graph
    edges = []
    for g in range(B):
        off = g * S
        for i in range(S):
            edges.append((off + i, off + (i + 1) % S))
            edges.append((off + (i + 1) % S, off + i))
    edge_index = jnp.array(edges, dtype=jnp.int32).T           # [2, E] (row0=src, row1=dst)
    E = edge_index.shape[1]

    key = jax.random.PRNGKey(0)
    kx, ke, kp = jax.random.split(key, 3)
    x = jax.random.normal(kx, (N, num_features), F32)
    edge_attr = jax.random.normal(ke, (E, num_edge_features), F32)
    batch = jnp.repeat(jnp.arange(B, dtype=jnp.int32), S)

    params = init_params(kp, num_features, num_edge_features, hidden_dim,
                         n_layers, num_classes)
    w_blob, b_blob = pack_params(params)                        # two blobs, packed once
    graph = pack_graph(edge_index, batch, B)                    # tiny index arrays, once

    out = graph_transformer_forward(w_blob, b_blob, graph, x, edge_attr,
                                    num_graphs=B, num_heads=num_heads,
                                    num_layers=n_layers, hidden=hidden_dim,
                                    num_classes=num_classes)
    out = jax.block_until_ready(out)
    assert out.shape == (B, num_classes)
    assert bool(jnp.all(jnp.isfinite(out)))
    print("KERNEL_OK")
</pallas_src>

<mosaic_0001>
module attributes {stable_mosaic.version = 11 : i64} {
  func.func @kernel(%arg0: memref<16x128xf32, #tpu.memory_space<vmem>>, %arg1: memref<32x128xf32, #tpu.memory_space<vmem>>, %arg2: memref<32x1xi32, #tpu.memory_space<vmem>>, %arg3: memref<1x32xi32, #tpu.memory_space<vmem>>, %arg4: memref<1x16xi32, #tpu.memory_space<vmem>>, %arg5: memref<22x128x128xbf16, #tpu.memory_space<vmem>>, %arg6: memref<22x1x128xf32, #tpu.memory_space<vmem>>, %arg7: memref<2x128xf32, #tpu.memory_space<vmem>>) attributes {dimension_semantics = [], scalar_prefetch = 0 : i64, scratch_operands = 0 : i64, tpu.core_type = #tpu.core_type<tc>} {
    %c0 = arith.constant 0 : index
    %c0_0 = arith.constant 0 : index
    %0 = vector.load %arg0[%c0, %c0_0] : memref<16x128xf32, #tpu.memory_space<vmem>>, vector<16x128xf32>
    %1 = arith.truncf %0 : vector<16x128xf32> to vector<16x128xbf16>
    %c0_1 = arith.constant 0 : index
    %c0_2 = arith.constant 0 : index
    %c0_3 = arith.constant 0 : index
    %2 = vector.load %arg5[%c0_1, %c0_2, %c0_3] : memref<22x128x128xbf16, #tpu.memory_space<vmem>>, vector<1x128x128xbf16>
    %3 = vector.shape_cast %2 : vector<1x128x128xbf16> to vector<128x128xbf16>
    %cst = arith.constant dense<0.000000e+00> : vector<16x128xf32>
    %4 = tpu.matmul %1, %3, %cst {dimension_numbers = #tpu.dot_dimension_numbers<[1], [0], [0], [1], [0, 0, 1, 1], [], []>} : vector<16x128xbf16>, vector<128x128xbf16>, vector<16x128xf32> -> vector<16x128xf32>
    %c0_4 = arith.constant 0 : index
    %c0_5 = arith.constant 0 : index
    %c0_6 = arith.constant 0 : index
    %5 = vector.load %arg6[%c0_4, %c0_5, %c0_6] : memref<22x1x128xf32, #tpu.memory_space<vmem>>, vector<1x1x128xf32>
    %6 = vector.shape_cast %5 : vector<1x1x128xf32> to vector<1x128xf32>
    %7 = vector.broadcast %6 : vector<1x128xf32> to vector<16x128xf32>
    %8 = arith.addf %4, %7 : vector<16x128xf32>
    %cst_7 = arith.constant 0.000000e+00 : f32
    %9 = vector.broadcast %cst_7 : f32 to vector<16x128xf32>
    %10 = arith.maximumf %8, %9 : vector<16x128xf32>
    %11 = arith.truncf %10 : vector<16x128xf32> to vector<16x128xbf16>
    %c1 = arith.constant 1 : index
    %c0_8 = arith.constant 0 : index
    %c0_9 = arith.constant 0 : index
    %12 = vector.load %arg5[%c1, %c0_8, %c0_9] : memref<22x128x128xbf16, #tpu.memory_space<vmem>>, vector<1x128x128xbf16>
    %13 = vector.shape_cast %12 : vector<1x128x128xbf16> to vector<128x128xbf16>
    %cst_10 = arith.constant dense<0.000000e+00> : vector<16x128xf32>
    %14 = tpu.matmul %11, %13, %cst_10 {dimension_numbers = #tpu.dot_dimension_numbers<[1], [0], [0], [1], [0, 0, 1, 1], [], []>} : vector<16x128xbf16>, vector<128x128xbf16>, vector<16x128xf32> -> vector<16x128xf32>
    %c1_11 = arith.constant 1 : index
    %c0_12 = arith.constant 0 : index
    %c0_13 = arith.constant 0 : index
    %15 = vector.load %arg6[%c1_11, %c0_12, %c0_13] : memref<22x1x128xf32, #tpu.memory_space<vmem>>, vector<1x1x128xf32>
    %16 = vector.shape_cast %15 : vector<1x1x128xf32> to vector<1x128xf32>
    %17 = vector.broadcast %16 : vector<1x128xf32> to vector<16x128xf32>
    %18 = arith.addf %14, %17 : vector<16x128xf32>
    %cst_14 = arith.constant 0.000000e+00 : f32
    %19 = vector.broadcast %cst_14 : f32 to vector<16x128xf32>
    %20 = arith.maximumf %18, %19 : vector<16x128xf32>
    %c0_15 = arith.constant 0 : index
    %c0_16 = arith.constant 0 : index
    %21 = vector.load %arg1[%c0_15, %c0_16] : memref<32x128xf32, #tpu.memory_space<vmem>>, vector<32x128xf32>
    %22 = arith.truncf %21 : vector<32x128xf32> to vector<32x128xbf16>
    %c2 = arith.constant 2 : index
    %c0_17 = arith.constant 0 : index
    %c0_18 = arith.constant 0 : index
    %23 = vector.load %arg5[%c2, %c0_17, %c0_18] : memref<22x128x128xbf16, #tpu.memory_space<vmem>>, vector<1x128x128xbf16>
    %24 = vector.shape_cast %23 : vector<1x128x128xbf16> to vector<128x128xbf16>
    %cst_19 = arith.constant dense<0.000000e+00> : vector<32x128xf32>
    %25 = tpu.matmul %22, %24, %cst_19 {dimension_numbers = #tpu.dot_dimension_numbers<[1], [0], [0], [1], [0, 0, 1, 1], [], []>} : vector<32x128xbf16>, vector<128x128xbf16>, vector<32x128xf32> -> vector<32x128xf32>
    %c2_20 = arith.constant 2 : index
    %c0_21 = arith.constant 0 : index
    %c0_22 = arith.constant 0 : index
    %26 = vector.load %arg6[%c2_20, %c0_21, %c0_22] : memref<22x1x128xf32, #tpu.memory_space<vmem>>, vector<1x1x128xf32>
    %27 = vector.shape_cast %26 : vector<1x1x128xf32> to vector<1x128xf32>
    %28 = vector.broadcast %27 : vector<1x128xf32> to vector<32x128xf32>
    %29 = arith.addf %25, %28 : vector<32x128xf32>
    %cst_23 = arith.constant 0.000000e+00 : f32
    %30 = vector.broadcast %cst_23 : f32 to vector<32x128xf32>
    %31 = arith.maximumf %29, %30 : vector<32x128xf32>
    %32 = arith.truncf %31 : vector<32x128xf32> to vector<32x128xbf16>
    %c3 = arith.constant 3 : index
    %c0_24 = arith.constant 0 : index
    %c0_25 = arith.constant 0 : index
    %33 = vector.load %arg5[%c3, %c0_24, %c0_25] : memref<22x128x128xbf16, #tpu.memory_space<vmem>>, vector<1x128x128xbf16>
    %34 = vector.shape_cast %33 : vector<1x128x128xbf16> to vector<128x128xbf16>
    %cst_26 = arith.constant dense<0.000000e+00> : vector<32x128xf32>
    %35 = tpu.matmul %32, %34, %cst_26 {dimension_numbers = #tpu.dot_dimension_numbers<[1], [0], [0], [1], [0, 0, 1, 1], [], []>} : vector<32x128xbf16>, vector<128x128xbf16>, vector<32x128xf32> -> vector<32x128xf32>
    %c3_27 = arith.constant 3 : index
    %c0_28 = arith.constant 0 : index
    %c0_29 = arith.constant 0 : index
    %36 = vector.load %arg6[%c3_27, %c0_28, %c0_29] : memref<22x1x128xf32, #tpu.memory_space<vmem>>, vector<1x1x128xf32>
    %37 = vector.shape_cast %36 : vector<1x1x128xf32> to vector<1x128xf32>
    %38 = vector.broadcast %37 : vector<1x128xf32> to vector<32x128xf32>
    %39 = arith.addf %35, %38 : vector<32x128xf32>
    %cst_30 = arith.constant 0.000000e+00 : f32
    %40 = vector.broadcast %cst_30 : f32 to vector<32x128xf32>
    %41 = arith.maximumf %39, %40 : vector<32x128xf32>
    %c0_31 = arith.constant 0 : index
    %c0_32 = arith.constant 0 : index
    %42 = vector.load %arg2[%c0_31, %c0_32] : memref<32x1xi32, #tpu.memory_space<vmem>>, vector<32x1xi32>
    %c0_33 = arith.constant 0 : index
    %c0_34 = arith.constant 0 : index
    %43 = vector.load %arg3[%c0_33, %c0_34] : memref<1x32xi32, #tpu.memory_space<vmem>>, vector<1x32xi32>
    %c0_35 = arith.constant 0 : index
    %c0_36 = arith.constant 0 : index
    %44 = vector.load %arg4[%c0_35, %c0_36] : memref<1x16xi32, #tpu.memory_space<vmem>>, vector<1x16xi32>
    %45 = tpu.iota {dimensions = array<i32: 1>} : vector<32x16xi32>
    %46 = vector.broadcast %42 : vector<32x1xi32> to vector<32x16xi32>
    %47 = arith.cmpi eq, %45, %46 : vector<32x16xi32>
    %cst_37 = arith.constant 1.000000e+00 : f32
    %cst_38 = arith.constant 0.000000e+00 : f32
    %48 = vector.broadcast %cst_37 : f32 to vector<32x16xf32>
    %49 = vector.broadcast %cst_38 : f32 to vector<32x16xf32>
    %50 = arith.select %47, %48, %49 : vector<32x16xi1>, vector<32x16xf32>
    %51 = arith.truncf %50 : vector<32x16xf32> to vector<32x16xbf16>
    %52 = tpu.iota {dimensions = array<i32: 0>} : vector<16x32xi32>
    %53 = vector.broadcast %43 : vector<1x32xi32> to vector<16x32xi32>
    %54 = arith.cmpi eq, %52, %53 : vector<16x32xi32>
    %cst_39 = arith.constant 1.000000e+00 : f32
    %cst_40 = arith.constant 0.000000e+00 : f32
    %55 = vector.broadcast %cst_39 : f32 to vector<16x32xf32>
    %56 = vector.broadcast %cst_40 : f32 to vector<16x32xf32>
    %57 = arith.select %54, %55, %56 : vector<16x32xi1>, vector<16x32xf32>
    %58 = arith.truncf %57 : vector<16x32xf32> to vector<16x32xbf16>
    %59 = tpu.iota {dimensions = array<i32: 0>} : vector<2x16xi32>
    %60 = vector.broadcast %44 : vector<1x16xi32> to vector<2x16xi32>
    %61 = arith.cmpi eq, %59, %60 : vector<2x16xi32>
    %cst_41 = arith.constant 1.000000e+00 : f32
    %cst_42 = arith.constant 0.000000e+00 : f32
    %62 = vector.broadcast %cst_41 : f32 to vector<2x16xf32>
    %63 = vector.broadcast %cst_42 : f32 to vector<2x16xf32>
    %64 = arith.select %61, %62, %63 : vector<2x16xi1>, vector<2x16xf32>
    %65 = arith.truncf %64 : vector<2x16xf32> to vector<2x16xbf16>
    %66 = arith.truncf %41 : vector<32x128xf32> to vector<32x128xbf16>
    %c4 = arith.constant 4 : index
    %c0_43 = arith.constant 0 : index
    %c0_44 = arith.constant 0 : index
    %67 = vector.load %arg5[%c4, %c0_43, %c0_44] : memref<22x128x128xbf16, #tpu.memory_space<vmem>>, vector<1x128x128xbf16>
    %68 = vector.shape_cast %67 : vector<1x128x128xbf16> to vector<128x128xbf16>
    %cst_45 = arith.constant dense<0.000000e+00> : vector<32x128xf32>
    %69 = tpu.matmul %66, %68, %cst_45 {dimension_numbers = #tpu.dot_dimension_numbers<[1], [0], [0], [1], [0, 0, 1, 1], [], []>} : vector<32x128xbf16>, vector<128x128xbf16>, vector<32x128xf32> -> vector<32x128xf32>
    %c4_46 = arith.constant 4 : index
    %c0_47 = arith.constant 0 : index
    %c0_48 = arith.constant 0 : index
    %70 = vector.load %arg6[%c4_46, %c0_47, %c0_48] : memref<22x1x128xf32, #tpu.memory_space<vmem>>, vector<1x1x128xf32>
    %71 = vector.shape_cast %70 : vector<1x1x128xf32> to vector<1x128xf32>
    %72 = vector.broadcast %71 : vector<1x128xf32> to vector<32x128xf32>
    %73 = arith.addf %69, %72 : vector<32x128xf32>
    %74 = arith.truncf %20 : vector<16x128xf32> to vector<16x128xbf16>
    %cst_49 = arith.constant dense<0.000000e+00> : vector<32x128xf32>
    %75 = tpu.matmul %51, %74, %cst_49 {dimension_numbers = #tpu.dot_dimension_numbers<[1], [0], [0], [1], [0, 0, 1, 1], [], []>} : vector<32x16xbf16>, vector<16x128xbf16>, vector<32x128xf32> -> vector<32x128xf32>
    %76 = arith.addf %75, %73 : vector<32x128xf32>
    %cst_50 = arith.constant 0.000000e+00 : f32
    %77 = vector.broadcast %cst_50 : f32 to vector<32x128xf32>
    %78 = arith.maximumf %76, %77 : vector<32x128xf32>
    %79 = arith.truncf %78 : vector<32x128xf32> to vector<32x128xbf16>
    %cst_51 = arith.constant dense<0.000000e+00> : vector<16x128xf32>
    %80 = tpu.matmul %58, %79, %cst_51 {dimension_numbers = #tpu.dot_dimension_numbers<[1], [0], [0], [1], [0, 0, 1, 1], [], []>} : vector<16x32xbf16>, vector<32x128xbf16>, vector<16x128xf32> -> vector<16x128xf32>
    %81 = arith.addf %80, %20 : vector<16x128xf32>
    %82 = arith.truncf %81 : vector<16x128xf32> to vector<16x128xbf16>
    %c5 = arith.constant 5 : index
    %c0_52 = arith.constant 0 : index
    %c0_53 = arith.constant 0 : index
    %83 = vector.load %arg5[%c5, %c0_52, %c0_53] : memref<22x128x128xbf16, #tpu.memory_space<vmem>>, vector<1x128x128xbf16>
    %84 = vector.shape_cast %83 : vector<1x128x128xbf16> to vector<128x128xbf16>
    %cst_54 = arith.constant dense<0.000000e+00> : vector<16x128xf32>
    %85 = tpu.matmul %82, %84, %cst_54 {dimension_numbers = #tpu.dot_dimension_numbers<[1], [0], [0], [1], [0, 0, 1, 1], [], []>} : vector<16x128xbf16>, vector<128x128xbf16>, vector<16x128xf32> -> vector<16x128xf32>
    %c5_55 = arith.constant 5 : index
    %c0_56 = arith.constant 0 : index
    %c0_57 = arith.constant 0 : index
    %86 = vector.load %arg6[%c5_55, %c0_56, %c0_57] : memref<22x1x128xf32, #tpu.memory_space<vmem>>, vector<1x1x128xf32>
    %87 = vector.shape_cast %86 : vector<1x1x128xf32> to vector<1x128xf32>
    %88 = vector.broadcast %87 : vector<1x128xf32> to vector<16x128xf32>
    %89 = arith.addf %85, %88 : vector<16x128xf32>
    %cst_58 = arith.constant 0.000000e+00 : f32
    %90 = vector.broadcast %cst_58 : f32 to vector<16x128xf32>
    %91 = arith.maximumf %89, %90 : vector<16x128xf32>
    %92 = arith.truncf %91 : vector<16x128xf32> to vector<16x128xbf16>
    %c6 = arith.constant 6 : index
    %c0_59 = arith.constant 0 : index
    %c0_60 = arith.constant 0 : index
    %93 = vector.load %arg5[%c6, %c0_59, %c0_60] : memref<22x128x128xbf16, #tpu.memory_space<vmem>>, vector<1x128x128xbf16>
    %94 = vector.shape_cast %93 : vector<1x128x128xbf16> to vector<128x128xbf16>
    %cst_61 = arith.constant dense<0.000000e+00> : vector<16x128xf32>
    %95 = tpu.matmul %92, %94, %cst_61 {dimension_numbers = #tpu.dot_dimension_numbers<[1], [0], [0], [1], [0, 0, 1, 1], [], []>} : vector<16x128xbf16>, vector<128x128xbf16>, vector<16x128xf32> -> vector<16x128xf32>
    %c6_62 = arith.constant 6 : index
    %c0_63 = arith.constant 0 : index
    %c0_64 = arith.constant 0 : index
    %96 = vector.load %arg6[%c6_62, %c0_63, %c0_64] : memref<22x1x128xf32, #tpu.memory_space<vmem>>, vector<1x1x128xf32>
    %97 = vector.shape_cast %96 : vector<1x1x128xf32> to vector<1x128xf32>
    %98 = vector.broadcast %97 : vector<1x128xf32> to vector<16x128xf32>
    %99 = arith.addf %95, %98 : vector<16x128xf32>
    %cst_65 = arith.constant 0.000000e+00 : f32
    %100 = vector.broadcast %cst_65 : f32 to vector<16x128xf32>
    %101 = arith.maximumf %99, %100 : vector<16x128xf32>
    %c7 = arith.constant 7 : index
    %c0_66 = arith.constant 0 : index
    %c0_67 = arith.constant 0 : index
    %102 = vector.load %arg5[%c7, %c0_66, %c0_67] : memref<22x128x128xbf16, #tpu.memory_space<vmem>>, vector<1x128x128xbf16>
    %103 = vector.shape_cast %102 : vector<1x128x128xbf16> to vector<128x128xbf16>
    %cst_68 = arith.constant dense<0.000000e+00> : vector<16x128xf32>
    %104 = tpu.matmul %74, %103, %cst_68 {dimension_numbers = #tpu.dot_dimension_numbers<[1], [0], [0], [1], [0, 0, 1, 1], [], []>} : vector<16x128xbf16>, vector<128x128xbf16>, vector<16x128xf32> -> vector<16x128xf32>
    %c7_69 = arith.constant 7 : index
    %c0_70 = arith.constant 0 : index
    %c0_71 = arith.constant 0 : index
    %105 = vector.load %arg6[%c7_69, %c0_70, %c0_71] : memref<22x1x128xf32, #tpu.memory_space<vmem>>, vector<1x1x128xf32>
    %106 = vector.shape_cast %105 : vector<1x1x128xf32> to vector<1x128xf32>
    %107 = vector.broadcast %106 : vector<1x128xf32> to vector<16x128xf32>
    %108 = arith.addf %104, %107 : vector<16x128xf32>
    %c8 = arith.constant 8 : index
    %c0_72 = arith.constant 0 : index
    %c0_73 = arith.constant 0 : index
    %109 = vector.load %arg5[%c8, %c0_72, %c0_73] : memref<22x128x128xbf16, #tpu.memory_space<vmem>>, vector<1x128x128xbf16>
    %110 = vector.shape_cast %109 : vector<1x128x128xbf16> to vector<128x128xbf16>
    %cst_74 = arith.constant dense<0.000000e+00> : vector<16x128xf32>
    %111 = tpu.matmul %74, %110, %cst_74 {dimension_numbers = #tpu.dot_dimension_numbers<[1], [0], [0], [1], [0, 0, 1, 1], [], []>} : vector<16x128xbf16>, vector<128x128xbf16>, vector<16x128xf32> -> vector<16x128xf32>
    %c8_75 = arith.constant 8 : index
    %c0_76 = arith.constant 0 : index
    %c0_77 = arith.constant 0 : index
    %112 = vector.load %arg6[%c8_75, %c0_76, %c0_77] : memref<22x1x128xf32, #tpu.memory_space<vmem>>, vector<1x1x128xf32>
    %113 = vector.shape_cast %112 : vector<1x1x128xf32> to vector<1x128xf32>
    %114 = vector.broadcast %113 : vector<1x128xf32> to vector<16x128xf32>
    %115 = arith.addf %111, %114 : vector<16x128xf32>
    %c9 = arith.constant 9 : index
    %c0_78 = arith.constant 0 : index
    %c0_79 = arith.constant 0 : index
    %116 = vector.load %arg5[%c9, %c0_78, %c0_79] : memref<22x128x128xbf16, #tpu.memory_space<vmem>>, vector<1x128x128xbf16>
    %117 = vector.shape_cast %116 : vector<1x128x128xbf16> to vector<128x128xbf16>
    %cst_80 = arith.constant dense<0.000000e+00> : vector<16x128xf32>
    %118 = tpu.matmul %74, %117, %cst_80 {dimension_numbers = #tpu.dot_dimension_numbers<[1], [0], [0], [1], [0, 0, 1, 1], [], []>} : vector<16x128xbf16>, vector<128x128xbf16>, vector<16x128xf32> -> vector<16x128xf32>
    %c9_81 = arith.constant 9 : index
    %c0_82 = arith.constant 0 : index
    %c0_83 = arith.constant 0 : index
    %119 = vector.load %arg6[%c9_81, %c0_82, %c0_83] : memref<22x1x128xf32, #tpu.memory_space<vmem>>, vector<1x1x128xf32>
    %120 = vector.shape_cast %119 : vector<1x1x128xf32> to vector<1x128xf32>
    %121 = vector.broadcast %120 : vector<1x128xf32> to vector<16x128xf32>
    %122 = arith.addf %118, %121 : vector<16x128xf32>
    %c10 = arith.constant 10 : index
    %c0_84 = arith.constant 0 : index
    %c0_85 = arith.constant 0 : index
    %123 = vector.load %arg5[%c10, %c0_84, %c0_85] : memref<22x128x128xbf16, #tpu.memory_space<vmem>>, vector<1x128x128xbf16>
    %124 = vector.shape_cast %123 : vector<1x128x128xbf16> to vector<128x128xbf16>
    %cst_86 = arith.constant 0.000000e+00 : f32
    %125 = vector.broadcast %cst_86 : f32 to vector<16x128xf32>
    %126 = vector.extract_strided_slice %108 {offsets = [0, 0], sizes = [16, 16], strides = [1, 1]} : vector<16x128xf32> to vector<16x16xf32>
    %127 = arith.truncf %126 : vector<16x16xf32> to vector<16x16xbf16>
    %128 = vector.shape_cast %127 : vector<16x16xbf16> to vector<2x8x16xbf16>
    %129 = vector.extract_strided_slice %115 {offsets = [0, 0], sizes = [16, 16], strides = [1, 1]} : vector<16x128xf32> to vector<16x16xf32>
    %130 = arith.truncf %129 : vector<16x16xf32> to vector<16x16xbf16>
    %131 = vector.shape_cast %130 : vector<16x16xbf16> to vector<2x8x16xbf16>
    %132 = vector.extract_strided_slice %122 {offsets = [0, 0], sizes = [16, 16], strides = [1, 1]} : vector<16x128xf32> to vector<16x16xf32>
    %133 = arith.truncf %132 : vector<16x16xf32> to vector<16x16xbf16>
    %134 = vector.shape_cast %133 : vector<16x16xbf16> to vector<2x8x16xbf16>
    "tpu.trace_start"() <{level = 10 : i32, message = "bqd,bkd->bqk"}> : () -> ()
    %cst_87 = arith.constant dense<0.000000e+00> : vector<2x8x8xf32>
    %135 = tpu.matmul %128, %131, %cst_87 {dimension_numbers = #tpu.dot_dimension_numbers<[2], [2], [1], [1], [0, 0, 0, 1, 1, 1], [0], [0]>} : vector<2x8x16xbf16>, vector<2x8x16xbf16>, vector<2x8x8xf32> -> vector<2x8x8xf32>
    "tpu.trace_stop"() : () -> ()
    %cst_88 = arith.constant 2.500000e-01 : f32
    %136 = vector.broadcast %cst_88 : f32 to vector<2x8x8xf32>
    %137 = arith.mulf %135, %136 : vector<2x8x8xf32>
    %cst_89 = arith.constant dense<0xFF800000> : vector<2x8xf32>
    %138 = vector.multi_reduction <maximumf>, %137, %cst_89 [2] : vector<2x8x8xf32> to vector<2x8xf32>
    %139 = vector.shape_cast %138 : vector<2x8xf32> to vector<2x8x1xf32>
    %140 = vector.broadcast %139 : vector<2x8x1xf32> to vector<2x8x8xf32>
    %141 = arith.subf %137, %140 : vector<2x8x8xf32>
    %142 = math.exp %141 : vector<2x8x8xf32>
    %cst_90 = arith.constant dense<0.000000e+00> : vector<2x8xf32>
    %143 = vector.multi_reduction <add>, %142, %cst_90 [2] : vector<2x8x8xf32> to vector<2x8xf32>
    %144 = vector.shape_cast %143 : vector<2x8xf32> to vector<2x8x1xf32>
    %145 = tpu.reciprocal %144 {approx = true} : vector<2x8x1xf32> -> vector<2x8x1xf32>
    %146 = vector.broadcast %145 : vector<2x8x1xf32> to vector<2x8x8xf32>
    %147 = arith.mulf %142, %146 : vector<2x8x8xf32>
    %148 = arith.truncf %147 : vector<2x8x8xf32> to vector<2x8x8xbf16>
    "tpu.trace_start"() <{level = 10 : i32, message = "bqk,bkd->bqd"}> : () -> ()
    %cst_91 = arith.constant dense<0.000000e+00> : vector<2x8x16xf32>
    %149 = tpu.matmul %148, %134, %cst_91 {dimension_numbers = #tpu.dot_dimension_numbers<[2], [1], [1], [2], [0, 0, 0, 1, 1, 2], [0], [0]>} : vector<2x8x8xbf16>, vector<2x8x16xbf16>, vector<2x8x16xf32> -> vector<2x8x16xf32>
    "tpu.trace_stop"() : () -> ()
    %150 = vector.shape_cast %149 : vector<2x8x16xf32> to vector<16x16xf32>
    %151 = arith.truncf %150 : vector<16x16xf32> to vector<16x16xbf16>
    %152 = vector.extract_strided_slice %124 {offsets = [0, 0], sizes = [16, 128], strides = [1, 1]} : vector<128x128xbf16> to vector<16x128xbf16>
    %cst_92 = arith.constant dense<0.000000e+00> : vector<16x128xf32>
    %153 = tpu.matmul %151, %152, %cst_92 {dimension_numbers = #tpu.dot_dimension_numbers<[1], [0], [0], [1], [0, 0, 1, 1], [], []>} : vector<16x16xbf16>, vector<16x128xbf16>, vector<16x128xf32> -> vector<16x128xf32>
    %154 = arith.addf %125, %153 : vector<16x128xf32>
    %155 = vector.extract_strided_slice %108 {offsets = [0, 16], sizes = [16, 16], strides = [1, 1]} : vector<16x128xf32> to vector<16x16xf32>
    %156 = arith.truncf %155 : vector<16x16xf32> to vector<16x16xbf16>
    %157 = vector.shape_cast %156 : vector<16x16xbf16> to vector<2x8x16xbf16>
    %158 = vector.extract_strided_slice %115 {offsets = [0, 16], sizes = [16, 16], strides = [1, 1]} : vector<16x128xf32> to vector<16x16xf32>
    %159 = arith.truncf %158 : vector<16x16xf32> to vector<16x16xbf16>
    %160 = vector.shape_cast %159 : vector<16x16xbf16> to vector<2x8x16xbf16>
    %161 = vector.extract_strided_slice %122 {offsets = [0, 16], sizes = [16, 16], strides = [1, 1]} : vector<16x128xf32> to vector<16x16xf32>
    %162 = arith.truncf %161 : vector<16x16xf32> to vector<16x16xbf16>
    %163 = vector.shape_cast %162 : vector<16x16xbf16> to vector<2x8x16xbf16>
    "tpu.trace_start"() <{level = 10 : i32, message = "bqd,bkd->bqk"}> : () -> ()
    %cst_93 = arith.constant dense<0.000000e+00> : vector<2x8x8xf32>
    %164 = tpu.matmul %157, %160, %cst_93 {dimension_numbers = #tpu.dot_dimension_numbers<[2], [2], [1], [1], [0, 0, 0, 1, 1, 1], [0], [0]>} : vector<2x8x16xbf16>, vector<2x8x16xbf16>, vector<2x8x8xf32> -> vector<2x8x8xf32>
    "tpu.trace_stop"() : () -> ()
    %cst_94 = arith.constant 2.500000e-01 : f32
    %165 = vector.broadcast %cst_94 : f32 to vector<2x8x8xf32>
    %166 = arith.mulf %164, %165 : vector<2x8x8xf32>
    %cst_95 = arith.constant dense<0xFF800000> : vector<2x8xf32>
    %167 = vector.multi_reduction <maximumf>, %166, %cst_95 [2] : vector<2x8x8xf32> to vector<2x8xf32>
    %168 = vector.shape_cast %167 : vector<2x8xf32> to vector<2x8x1xf32>
    %169 = vector.broadcast %168 : vector<2x8x1xf32> to vector<2x8x8xf32>
    %170 = arith.subf %166, %169 : vector<2x8x8xf32>
    %171 = math.exp %170 : vector<2x8x8xf32>
    %cst_96 = arith.constant dense<0.000000e+00> : vector<2x8xf32>
    %172 = vector.multi_reduction <add>, %171, %cst_96 [2] : vector<2x8x8xf32> to vector<2x8xf32>
    %173 = vector.shape_cast %172 : vector<2x8xf32> to vector<2x8x1xf32>
    %174 = tpu.reciprocal %173 {approx = true} : vector<2x8x1xf32> -> vector<2x8x1xf32>
    %175 = vector.broadcast %174 : vector<2x8x1xf32> to vector<2x8x8xf32>
    %176 = arith.mulf %171, %175 : vector<2x8x8xf32>
    %177 = arith.truncf %176 : vector<2x8x8xf32> to vector<2x8x8xbf16>
    "tpu.trace_start"() <{level = 10 : i32, message = "bqk,bkd->bqd"}> : () -> ()
    %cst_97 = arith.constant dense<0.000000e+00> : vector<2x8x16xf32>
    %178 = tpu.matmul %177, %163, %cst_97 {dimension_numbers = #tpu.dot_dimension_numbers<[2], [1], [1], [2], [0, 0, 0, 1, 1, 2], [0], [0]>} : vector<2x8x8xbf16>, vector<2x8x16xbf16>, vector<2x8x16xf32> -> vector<2x8x16xf32>
    "tpu.trace_stop"() : () -> ()
    %179 = vector.shape_cast %178 : vector<2x8x16xf32> to vector<16x16xf32>
    %180 = arith.truncf %179 : vector<16x16xf32> to vector<16x16xbf16>
    %181 = vector.extract_strided_slice %124 {offsets = [16, 0], sizes = [16, 128], strides = [1, 1]} : vector<128x128xbf16> to vector<16x128xbf16>
    %cst_98 = arith.constant dense<0.000000e+00> : vector<16x128xf32>
    %182 = tpu.matmul %180, %181, %cst_98 {dimension_numbers = #tpu.dot_dimension_numbers<[1], [0], [0], [1], [0, 0, 1, 1], [], []>} : vector<16x16xbf16>, vector<16x128xbf16>, vector<16x128xf32> -> vector<16x128xf32>
    %183 = arith.addf %154, %182 : vector<16x128xf32>
    %c10_99 = arith.constant 10 : index
    %c0_100 = arith.constant 0 : index
    %c0_101 = arith.constant 0 : index
    %184 = vector.load %arg6[%c10_99, %c0_100, %c0_101] : memref<22x1x128xf32, #tpu.memory_space<vmem>>, vector<1x1x128xf32>
    %185 = vector.shape_cast %184 : vector<1x1x128xf32> to vector<1x128xf32>
    %186 = vector.broadcast %185 : vector<1x128xf32> to vector<16x128xf32>
    %187 = arith.addf %183, %186 : vector<16x128xf32>
    %188 = arith.addf %101, %20 : vector<16x128xf32>
    %cst_102 = arith.constant 0.999994993 : f32
    %189 = vector.broadcast %cst_102 : f32 to vector<16x128xf32>
    %190 = arith.mulf %188, %189 : vector<16x128xf32>
    %191 = arith.addf %187, %20 : vector<16x128xf32>
    %cst_103 = arith.constant 0.999994993 : f32
    %192 = vector.broadcast %cst_103 : f32 to vector<16x128xf32>
    %193 = arith.mulf %191, %192 : vector<16x128xf32>
    %194 = arith.addf %190, %193 : vector<16x128xf32>
    %195 = arith.truncf %194 : vector<16x128xf32> to vector<16x128xbf16>
    %c11 = arith.constant 11 : index
    %c0_104 = arith.constant 0 : index
    %c0_105 = arith.constant 0 : index
    %196 = vector.load %arg5[%c11, %c0_104, %c0_105] : memref<22x128x128xbf16, #tpu.memory_space<vmem>>, vector<1x128x128xbf16>
    %197 = vector.shape_cast %196 : vector<1x128x128xbf16> to vector<128x128xbf16>
    %cst_106 = arith.constant dense<0.000000e+00> : vector<16x128xf32>
    %198 = tpu.matmul %195, %197, %cst_106 {dimension_numbers = #tpu.dot_dimension_numbers<[1], [0], [0], [1], [0, 0, 1, 1], [], []>} : vector<16x128xbf16>, vector<128x128xbf16>, vector<16x128xf32> -> vector<16x128xf32>
    %c11_107 = arith.constant 11 : index
    %c0_108 = arith.constant 0 : index
    %c0_109 = arith.constant 0 : index
    %199 = vector.load %arg6[%c11_107, %c0_108, %c0_109] : memref<22x1x128xf32, #tpu.memory_space<vmem>>, vector<1x1x128xf32>
    %200 = vector.shape_cast %199 : vector<1x1x128xf32> to vector<1x128xf32>
    %201 = vector.broadcast %200 : vector<1x128xf32> to vector<16x128xf32>
    %202 = arith.addf %198, %201 : vector<16x128xf32>
    %cst_110 = arith.constant 0.000000e+00 : f32
    %203 = vector.broadcast %cst_110 : f32 to vector<16x128xf32>
    %204 = arith.maximumf %202, %203 : vector<16x128xf32>
    %205 = arith.truncf %204 : vector<16x128xf32> to vector<16x128xbf16>
    %c12 = arith.constant 12 : index
    %c0_111 = arith.constant 0 : index
    %c0_112 = arith.constant 0 : index
    %206 = vector.load %arg5[%c12, %c0_111, %c0_112] : memref<22x128x128xbf16, #tpu.memory_space<vmem>>, vector<1x128x128xbf16>
    %207 = vector.shape_cast %206 : vector<1x128x128xbf16> to vector<128x128xbf16>
    %cst_113 = arith.constant dense<0.000000e+00> : vector<16x128xf32>
    %208 = tpu.matmul %205, %207, %cst_113 {dimension_numbers = #tpu.dot_dimension_numbers<[1], [0], [0], [1], [0, 0, 1, 1], [], []>} : vector<16x128xbf16>, vector<128x128xbf16>, vector<16x128xf32> -> vector<16x128xf32>
    %c12_114 = arith.constant 12 : index
    %c0_115 = arith.constant 0 : index
    %c0_116 = arith.constant 0 : index
    %209 = vector.load %arg6[%c12_114, %c0_115, %c0_116] : memref<22x1x128xf32, #tpu.memory_space<vmem>>, vector<1x1x128xf32>
    %210 = vector.shape_cast %209 : vector<1x1x128xf32> to vector<1x128xf32>
    %211 = vector.broadcast %210 : vector<1x128xf32> to vector<16x128xf32>
    %212 = arith.addf %208, %211 : vector<16x128xf32>
    %213 = arith.addf %194, %212 : vector<16x128xf32>
    %cst_117 = arith.constant 0.999994993 : f32
    %214 = vector.broadcast %cst_117 : f32 to vector<16x128xf32>
    %215 = arith.mulf %213, %214 : vector<16x128xf32>
    %216 = arith.truncf %215 : vector<16x128xf32> to vector<16x128xbf16>
    %cst_118 = arith.constant dense<0.000000e+00> : vector<32x128xf32>
    %217 = tpu.matmul %51, %216, %cst_118 {dimension_numbers = #tpu.dot_dimension_numbers<[1], [0], [0], [1], [0, 0, 1, 1], [], []>} : vector<32x16xbf16>, vector<16x128xbf16>, vector<32x128xf32> -> vector<32x128xf32>
    %218 = arith.addf %217, %73 : vector<32x128xf32>
    %cst_119 = arith.constant 0.000000e+00 : f32
    %219 = vector.broadcast %cst_119 : f32 to vector<32x128xf32>
    %220 = arith.maximumf %218, %219 : vector<32x128xf32>
    %221 = arith.truncf %220 : vector<32x128xf32> to vector<32x128xbf16>
    %cst_120 = arith.constant dense<0.000000e+00> : vector<16x128xf32>
    %222 = tpu.matmul %58, %221, %cst_120 {dimension_numbers = #tpu.dot_dimension_numbers<[1], [0], [0], [1], [0, 0, 1, 1], [], []>} : vector<16x32xbf16>, vector<32x128xbf16>, vector<16x128xf32> -> vector<16x128xf32>
    %223 = arith.addf %222, %215 : vector<16x128xf32>
    %224 = arith.truncf %223 : vector<16x128xf32> to vector<16x128xbf16>
    %c5_121 = arith.constant 5 : index
    %c0_122 = arith.constant 0 : index
    %c0_123 = arith.constant 0 : index
    %225 = vector.load %arg5[%c5_121, %c0_122, %c0_123] : memref<22x128x128xbf16, #tpu.memory_space<vmem>>, vector<1x128x128xbf16>
    %226 = vector.shape_cast %225 : vector<1x128x128xbf16> to vector<128x128xbf16>
    %cst_124 = arith.constant dense<0.000000e+00> : vector<16x128xf32>
    %227 = tpu.matmul %224, %226, %cst_124 {dimension_numbers = #tpu.dot_dimension_numbers<[1], [0], [0], [1], [0, 0, 1, 1], [], []>} : vector<16x128xbf16>, vector<128x128xbf16>, vector<16x128xf32> -> vector<16x128xf32>
    %c5_125 = arith.constant 5 : index
    %c0_126 = arith.constant 0 : index
    %c0_127 = arith.constant 0 : index
    %228 = vector.load %arg6[%c5_125, %c0_126, %c0_127] : memref<22x1x128xf32, #tpu.memory_space<vmem>>, vector<1x1x128xf32>
    %229 = vector.shape_cast %228 : vector<1x1x128xf32> to vector<1x128xf32>
    %230 = vector.broadcast %229 : vector<1x128xf32> to vector<16x128xf32>
    %231 = arith.addf %227, %230 : vector<16x128xf32>
    %cst_128 = arith.constant 0.000000e+00 : f32
    %232 = vector.broadcast %cst_128 : f32 to vector<16x128xf32>
    %233 = arith.maximumf %231, %232 : vector<16x128xf32>
    %234 = arith.truncf %233 : vector<16x128xf32> to vector<16x128xbf16>
    %c6_129 = arith.constant 6 : index
    %c0_130 = arith.constant 0 : index
    %c0_131 = arith.constant 0 : index
    %235 = vector.load %arg5[%c6_129, %c0_130, %c0_131] : memref<22x128x128xbf16, #tpu.memory_space<vmem>>, vector<1x128x128xbf16>
    %236 = vector.shape_cast %235 : vector<1x128x128xbf16> to vector<128x128xbf16>
    %cst_132 = arith.constant dense<0.000000e+00> : vector<16x128xf32>
    %237 = tpu.matmul %234, %236, %cst_132 {dimension_numbers = #tpu.dot_dimension_numbers<[1], [0], [0], [1], [0, 0, 1, 1], [], []>} : vector<16x128xbf16>, vector<128x128xbf16>, vector<16x128xf32> -> vector<16x128xf32>
    %c6_133 = arith.constant 6 : index
    %c0_134 = arith.constant 0 : index
    %c0_135 = arith.constant 0 : index
    %238 = vector.load %arg6[%c6_133, %c0_134, %c0_135] : memref<22x1x128xf32, #tpu.memory_space<vmem>>, vector<1x1x128xf32>
    %239 = vector.shape_cast %238 : vector<1x1x128xf32> to vector<1x128xf32>
    %240 = vector.broadcast %239 : vector<1x128xf32> to vector<16x128xf32>
    %241 = arith.addf %237, %240 : vector<16x128xf32>
    %cst_136 = arith.constant 0.000000e+00 : f32
    %242 = vector.broadcast %cst_136 : f32 to vector<16x128xf32>
    %243 = arith.maximumf %241, %242 : vector<16x128xf32>
    %c13 = arith.constant 13 : index
    %c0_137 = arith.constant 0 : index
    %c0_138 = arith.constant 0 : index
    %244 = vector.load %arg5[%c13, %c0_137, %c0_138] : memref<22x128x128xbf16, #tpu.memory_space<vmem>>, vector<1x128x128xbf16>
    %245 = vector.shape_cast %244 : vector<1x128x128xbf16> to vector<128x128xbf16>
    %cst_139 = arith.constant dense<0.000000e+00> : vector<16x128xf32>
    %246 = tpu.matmul %216, %245, %cst_139 {dimension_numbers = #tpu.dot_dimension_numbers<[1], [0], [0], [1], [0, 0, 1, 1], [], []>} : vector<16x128xbf16>, vector<128x128xbf16>, vector<16x128xf32> -> vector<16x128xf32>
    %c13_140 = arith.constant 13 : index
    %c0_141 = arith.constant 0 : index
    %c0_142 = arith.constant 0 : index
    %247 = vector.load %arg6[%c13_140, %c0_141, %c0_142] : memref<22x1x128xf32, #tpu.memory_space<vmem>>, vector<1x1x128xf32>
    %248 = vector.shape_cast %247 : vector<1x1x128xf32> to vector<1x128xf32>
    %249 = vector.broadcast %248 : vector<1x128xf32> to vector<16x128xf32>
    %250 = arith.addf %246, %249 : vector<16x128xf32>
    %c14 = arith.constant 14 : index
    %c0_143 = arith.constant 0 : index
    %c0_144 = arith.constant 0 : index
    %251 = vector.load %arg5[%c14, %c0_143, %c0_144] : memref<22x128x128xbf16, #tpu.memory_space<vmem>>, vector<1x128x128xbf16>
    %252 = vector.shape_cast %251 : vector<1x128x128xbf16> to vector<128x128xbf16>
    %cst_145 = arith.constant dense<0.000000e+00> : vector<16x128xf32>
    %253 = tpu.matmul %216, %252, %cst_145 {dimension_numbers = #tpu.dot_dimension_numbers<[1], [0], [0], [1], [0, 0, 1, 1], [], []>} : vector<16x128xbf16>, vector<128x128xbf16>, vector<16x128xf32> -> vector<16x128xf32>
    %c14_146 = arith.constant 14 : index
    %c0_147 = arith.constant 0 : index
    %c0_148 = arith.constant 0 : index
    %254 = vector.load %arg6[%c14_146, %c0_147, %c0_148] : memref<22x1x128xf32, #tpu.memory_space<vmem>>, vector<1x1x128xf32>
    %255 = vector.shape_cast %254 : vector<1x1x128xf32> to vector<1x128xf32>
    %256 = vector.broadcast %255 : vector<1x128xf32> to vector<16x128xf32>
    %257 = arith.addf %253, %256 : vector<16x128xf32>
    %c15 = arith.constant 15 : index
    %c0_149 = arith.constant 0 : index
    %c0_150 = arith.constant 0 : index
    %258 = vector.load %arg5[%c15, %c0_149, %c0_150] : memref<22x128x128xbf16, #tpu.memory_space<vmem>>, vector<1x128x128xbf16>
    %259 = vector.shape_cast %258 : vector<1x128x128xbf16> to vector<128x128xbf16>
    %cst_151 = arith.constant dense<0.000000e+00> : vector<16x128xf32>
    %260 = tpu.matmul %216, %259, %cst_151 {dimension_numbers = #tpu.dot_dimension_numbers<[1], [0], [0], [1], [0, 0, 1, 1], [], []>} : vector<16x128xbf16>, vector<128x128xbf16>, vector<16x128xf32> -> vector<16x128xf32>
    %c15_152 = arith.constant 15 : index
    %c0_153 = arith.constant 0 : index
    %c0_154 = arith.constant 0 : index
    %261 = vector.load %arg6[%c15_152, %c0_153, %c0_154] : memref<22x1x128xf32, #tpu.memory_space<vmem>>, vector<1x1x128xf32>
    %262 = vector.shape_cast %261 : vector<1x1x128xf32> to vector<1x128xf32>
    %263 = vector.broadcast %262 : vector<1x128xf32> to vector<16x128xf32>
    %264 = arith.addf %260, %263 : vector<16x128xf32>
    %c16 = arith.constant 16 : index
    %c0_155 = arith.constant 0 : index
    %c0_156 = arith.constant 0 : index
    %265 = vector.load %arg5[%c16, %c0_155, %c0_156] : memref<22x128x128xbf16, #tpu.memory_space<vmem>>, vector<1x128x128xbf16>
    %266 = vector.shape_cast %265 : vector<1x128x128xbf16> to vector<128x128xbf16>
    %cst_157 = arith.constant 0.000000e+00 : f32
    %267 = vector.broadcast %cst_157 : f32 to vector<16x128xf32>
    %268 = vector.extract_strided_slice %250 {offsets = [0, 0], sizes = [16, 16], strides = [1, 1]} : vector<16x128xf32> to vector<16x16xf32>
    %269 = arith.truncf %268 : vector<16x16xf32> to vector<16x16xbf16>
    %270 = vector.shape_cast %269 : vector<16x16xbf16> to vector<2x8x16xbf16>
    %271 = vector.extract_strided_slice %257 {offsets = [0, 0], sizes = [16, 16], strides = [1, 1]} : vector<16x128xf32> to vector<16x16xf32>
    %272 = arith.truncf %271 : vector<16x16xf32> to vector<16x16xbf16>
    %273 = vector.shape_cast %272 : vector<16x16xbf16> to vector<2x8x16xbf16>
    %274 = vector.extract_strided_slice %264 {offsets = [0, 0], sizes = [16, 16], strides = [1, 1]} : vector<16x128xf32> to vector<16x16xf32>
    %275 = arith.truncf %274 : vector<16x16xf32> to vector<16x16xbf16>
    %276 = vector.shape_cast %275 : vector<16x16xbf16> to vector<2x8x16xbf16>
    "tpu.trace_start"() <{level = 10 : i32, message = "bqd,bkd->bqk"}> : () -> ()
    %cst_158 = arith.constant dense<0.000000e+00> : vector<2x8x8xf32>
    %277 = tpu.matmul %270, %273, %cst_158 {dimension_numbers = #tpu.dot_dimension_numbers<[2], [2], [1], [1], [0, 0, 0, 1, 1, 1], [0], [0]>} : vector<2x8x16xbf16>, vector<2x8x16xbf16>, vector<2x8x8xf32> -> vector<2x8x8xf32>
    "tpu.trace_stop"() : () -> ()
    %cst_159 = arith.constant 2.500000e-01 : f32
    %278 = vector.broadcast %cst_159 : f32 to vector<2x8x8xf32>
    %279 = arith.mulf %277, %278 : vector<2x8x8xf32>
    %cst_160 = arith.constant dense<0xFF800000> : vector<2x8xf32>
    %280 = vector.multi_reduction <maximumf>, %279, %cst_160 [2] : vector<2x8x8xf32> to vector<2x8xf32>
    %281 = vector.shape_cast %280 : vector<2x8xf32> to vector<2x8x1xf32>
    %282 = vector.broadcast %281 : vector<2x8x1xf32> to vector<2x8x8xf32>
    %283 = arith.subf %279, %282 : vector<2x8x8xf32>
    %284 = math.exp %283 : vector<2x8x8xf32>
    %cst_161 = arith.constant dense<0.000000e+00> : vector<2x8xf32>
    %285 = vector.multi_reduction <add>, %284, %cst_161 [2] : vector<2x8x8xf32> to vector<2x8xf32>
    %286 = vector.shape_cast %285 : vector<2x8xf32> to vector<2x8x1xf32>
    %287 = tpu.reciprocal %286 {approx = true} : vector<2x8x1xf32> -> vector<2x8x1xf32>
    %288 = vector.broadcast %287 : vector<2x8x1xf32> to vector<2x8x8xf32>
    %289 = arith.mulf %284, %288 : vector<2x8x8xf32>
    %290 = arith.truncf %289 : vector<2x8x8xf32> to vector<2x8x8xbf16>
    "tpu.trace_start"() <{level = 10 : i32, message = "bqk,bkd->bqd"}> : () -> ()
    %cst_162 = arith.constant dense<0.000000e+00> : vector<2x8x16xf32>
    %291 = tpu.matmul %290, %276, %cst_162 {dimension_numbers = #tpu.dot_dimension_numbers<[2], [1], [1], [2], [0, 0, 0, 1, 1, 2], [0], [0]>} : vector<2x8x8xbf16>, vector<2x8x16xbf16>, vector<2x8x16xf32> -> vector<2x8x16xf32>
    "tpu.trace_stop"() : () -> ()
    %292 = vector.shape_cast %291 : vector<2x8x16xf32> to vector<16x16xf32>
    %293 = arith.truncf %292 : vector<16x16xf32> to vector<16x16xbf16>
    %294 = vector.extract_strided_slice %266 {offsets = [0, 0], sizes = [16, 128], strides = [1, 1]} : vector<128x128xbf16> to vector<16x128xbf16>
    %cst_163 = arith.constant dense<0.000000e+00> : vector<16x128xf32>
    %295 = tpu.matmul %293, %294, %cst_163 {dimension_numbers = #tpu.dot_dimension_numbers<[1], [0], [0], [1], [0, 0, 1, 1], [], []>} : vector<16x16xbf16>, vector<16x128xbf16>, vector<16x128xf32> -> vector<16x128xf32>
    %296 = arith.addf %267, %295 : vector<16x128xf32>
    %297 = vector.extract_strided_slice %250 {offsets = [0, 16], sizes = [16, 16], strides = [1, 1]} : vector<16x128xf32> to vector<16x16xf32>
    %298 = arith.truncf %297 : vector<16x16xf32> to vector<16x16xbf16>
    %299 = vector.shape_cast %298 : vector<16x16xbf16> to vector<2x8x16xbf16>
    %300 = vector.extract_strided_slice %257 {offsets = [0, 16], sizes = [16, 16], strides = [1, 1]} : vector<16x128xf32> to vector<16x16xf32>
    %301 = arith.truncf %300 : vector<16x16xf32> to vector<16x16xbf16>
    %302 = vector.shape_cast %301 : vector<16x16xbf16> to vector<2x8x16xbf16>
    %303 = vector.extract_strided_slice %264 {offsets = [0, 16], sizes = [16, 16], strides = [1, 1]} : vector<16x128xf32> to vector<16x16xf32>
    %304 = arith.truncf %303 : vector<16x16xf32> to vector<16x16xbf16>
    %305 = vector.shape_cast %304 : vector<16x16xbf16> to vector<2x8x16xbf16>
    "tpu.trace_start"() <{level = 10 : i32, message = "bqd,bkd->bqk"}> : () -> ()
    %cst_164 = arith.constant dense<0.000000e+00> : vector<2x8x8xf32>
    %306 = tpu.matmul %299, %302, %cst_164 {dimension_numbers = #tpu.dot_dimension_numbers<[2], [2], [1], [1], [0, 0, 0, 1, 1, 1], [0], [0]>} : vector<2x8x16xbf16>, vector<2x8x16xbf16>, vector<2x8x8xf32> -> vector<2x8x8xf32>
    "tpu.trace_stop"() : () -> ()
    %cst_165 = arith.constant 2.500000e-01 : f32
    %307 = vector.broadcast %cst_165 : f32 to vector<2x8x8xf32>
    %308 = arith.mulf %306, %307 : vector<2x8x8xf32>
    %cst_166 = arith.constant dense<0xFF800000> : vector<2x8xf32>
    %309 = vector.multi_reduction <maximumf>, %308, %cst_166 [2] : vector<2x8x8xf32> to vector<2x8xf32>
    %310 = vector.shape_cast %309 : vector<2x8xf32> to vector<2x8x1xf32>
    %311 = vector.broadcast %310 : vector<2x8x1xf32> to vector<2x8x8xf32>
    %312 = arith.subf %308, %311 : vector<2x8x8xf32>
    %313 = math.exp %312 : vector<2x8x8xf32>
    %cst_167 = arith.constant dense<0.000000e+00> : vector<2x8xf32>
    %314 = vector.multi_reduction <add>, %313, %cst_167 [2] : vector<2x8x8xf32> to vector<2x8xf32>
    %315 = vector.shape_cast %314 : vector<2x8xf32> to vector<2x8x1xf32>
    %316 = tpu.reciprocal %315 {approx = true} : vector<2x8x1xf32> -> vector<2x8x1xf32>
    %317 = vector.broadcast %316 : vector<2x8x1xf32> to vector<2x8x8xf32>
    %318 = arith.mulf %313, %317 : vector<2x8x8xf32>
    %319 = arith.truncf %318 : vector<2x8x8xf32> to vector<2x8x8xbf16>
    "tpu.trace_start"() <{level = 10 : i32, message = "bqk,bkd->bqd"}> : () -> ()
    %cst_168 = arith.constant dense<0.000000e+00> : vector<2x8x16xf32>
    %320 = tpu.matmul %319, %305, %cst_168 {dimension_numbers = #tpu.dot_dimension_numbers<[2], [1], [1], [2], [0, 0, 0, 1, 1, 2], [0], [0]>} : vector<2x8x8xbf16>, vector<2x8x16xbf16>, vector<2x8x16xf32> -> vector<2x8x16xf32>
    "tpu.trace_stop"() : () -> ()
    %321 = vector.shape_cast %320 : vector<2x8x16xf32> to vector<16x16xf32>
    %322 = arith.truncf %321 : vector<16x16xf32> to vector<16x16xbf16>
    %323 = vector.extract_strided_slice %266 {offsets = [16, 0], sizes = [16, 128], strides = [1, 1]} : vector<128x128xbf16> to vector<16x128xbf16>
    %cst_169 = arith.constant dense<0.000000e+00> : vector<16x128xf32>
    %324 = tpu.matmul %322, %323, %cst_169 {dimension_numbers = #tpu.dot_dimension_numbers<[1], [0], [0], [1], [0, 0, 1, 1], [], []>} : vector<16x16xbf16>, vector<16x128xbf16>, vector<16x128xf32> -> vector<16x128xf32>
    %325 = arith.addf %296, %324 : vector<16x128xf32>
    %c16_170 = arith.constant 16 : index
    %c0_171 = arith.constant 0 : index
    %c0_172 = arith.constant 0 : index
    %326 = vector.load %arg6[%c16_170, %c0_171, %c0_172] : memref<22x1x128xf32, #tpu.memory_space<vmem>>, vector<1x1x128xf32>
    %327 = vector.shape_cast %326 : vector<1x1x128xf32> to vector<1x128xf32>
    %328 = vector.broadcast %327 : vector<1x128xf32> to vector<16x128xf32>
    %329 = arith.addf %325, %328 : vector<16x128xf32>
    %330 = arith.addf %243, %215 : vector<16x128xf32>
    %cst_173 = arith.constant 0.999994993 : f32
    %331 = vector.broadcast %cst_173 : f32 to vector<16x128xf32>
    %332 = arith.mulf %330, %331 : vector<16x128xf32>
    %333 = arith.addf %329, %215 : vector<16x128xf32>
    %cst_174 = arith.constant 0.999994993 : f32
    %334 = vector.broadcast %cst_174 : f32 to vector<16x128xf32>
    %335 = arith.mulf %333, %334 : vector<16x128xf32>
    %336 = arith.addf %332, %335 : vector<16x128xf32>
    %337 = arith.truncf %336 : vector<16x128xf32> to vector<16x128xbf16>
    %c17 = arith.constant 17 : index
    %c0_175 = arith.constant 0 : index
    %c0_176 = arith.constant 0 : index
    %338 = vector.load %arg5[%c17, %c0_175, %c0_176] : memref<22x128x128xbf16, #tpu.memory_space<vmem>>, vector<1x128x128xbf16>
    %339 = vector.shape_cast %338 : vector<1x128x128xbf16> to vector<128x128xbf16>
    %cst_177 = arith.constant dense<0.000000e+00> : vector<16x128xf32>
    %340 = tpu.matmul %337, %339, %cst_177 {dimension_numbers = #tpu.dot_dimension_numbers<[1], [0], [0], [1], [0, 0, 1, 1], [], []>} : vector<16x128xbf16>, vector<128x128xbf16>, vector<16x128xf32> -> vector<16x128xf32>
    %c17_178 = arith.constant 17 : index
    %c0_179 = arith.constant 0 : index
    %c0_180 = arith.constant 0 : index
    %341 = vector.load %arg6[%c17_178, %c0_179, %c0_180] : memref<22x1x128xf32, #tpu.memory_space<vmem>>, vector<1x1x128xf32>
    %342 = vector.shape_cast %341 : vector<1x1x128xf32> to vector<1x128xf32>
    %343 = vector.broadcast %342 : vector<1x128xf32> to vector<16x128xf32>
    %344 = arith.addf %340, %343 : vector<16x128xf32>
    %cst_181 = arith.constant 0.000000e+00 : f32
    %345 = vector.broadcast %cst_181 : f32 to vector<16x128xf32>
    %346 = arith.maximumf %344, %345 : vector<16x128xf32>
    %347 = arith.truncf %346 : vector<16x128xf32> to vector<16x128xbf16>
    %c18 = arith.constant 18 : index
    %c0_182 = arith.constant 0 : index
    %c0_183 = arith.constant 0 : index
    %348 = vector.load %arg5[%c18, %c0_182, %c0_183] : memref<22x128x128xbf16, #tpu.memory_space<vmem>>, vector<1x128x128xbf16>
    %349 = vector.shape_cast %348 : vector<1x128x128xbf16> to vector<128x128xbf16>
    %cst_184 = arith.constant dense<0.000000e+00> : vector<16x128xf32>
    %350 = tpu.matmul %347, %349, %cst_184 {dimension_numbers = #tpu.dot_dimension_numbers<[1], [0], [0], [1], [0, 0, 1, 1], [], []>} : vector<16x128xbf16>, vector<128x128xbf16>, vector<16x128xf32> -> vector<16x128xf32>
    %c18_185 = arith.constant 18 : index
    %c0_186 = arith.constant 0 : index
    %c0_187 = arith.constant 0 : index
    %351 = vector.load %arg6[%c18_185, %c0_186, %c0_187] : memref<22x1x128xf32, #tpu.memory_space<vmem>>, vector<1x1x128xf32>
    %352 = vector.shape_cast %351 : vector<1x1x128xf32> to vector<1x128xf32>
    %353 = vector.broadcast %352 : vector<1x128xf32> to vector<16x128xf32>
    %354 = arith.addf %350, %353 : vector<16x128xf32>
    %355 = arith.addf %336, %354 : vector<16x128xf32>
    %cst_188 = arith.constant 0.999994993 : f32
    %356 = vector.broadcast %cst_188 : f32 to vector<16x128xf32>
    %357 = arith.mulf %355, %356 : vector<16x128xf32>
    %358 = arith.truncf %357 : vector<16x128xf32> to vector<16x128xbf16>
    %cst_189 = arith.constant dense<0.000000e+00> : vector<2x128xf32>
    %359 = tpu.matmul %65, %358, %cst_189 {dimension_numbers = #tpu.dot_dimension_numbers<[1], [0], [0], [1], [0, 0, 1, 1], [], []>} : vector<2x16xbf16>, vector<16x128xbf16>, vector<2x128xf32> -> vector<2x128xf32>
    %cst_190 = arith.constant 1.250000e-01 : f32
    %360 = vector.broadcast %cst_190 : f32 to vector<2x128xf32>
    %361 = arith.mulf %359, %360 : vector<2x128xf32>
    %362 = arith.truncf %361 : vector<2x128xf32> to vector<2x128xbf16>
    %c19 = arith.constant 19 : index
    %c0_191 = arith.constant 0 : index
    %c0_192 = arith.constant 0 : index
    %363 = vector.load %arg5[%c19, %c0_191, %c0_192] : memref<22x128x128xbf16, #tpu.memory_space<vmem>>, vector<1x128x128xbf16>
    %364 = vector.shape_cast %363 : vector<1x128x128xbf16> to vector<128x128xbf16>
    %cst_193 = arith.constant dense<0.000000e+00> : vector<2x128xf32>
    %365 = tpu.matmul %362, %364, %cst_193 {dimension_numbers = #tpu.dot_dimension_numbers<[1], [0], [0], [1], [0, 0, 1, 1], [], []>} : vector<2x128xbf16>, vector<128x128xbf16>, vector<2x128xf32> -> vector<2x128xf32>
    %c19_194 = arith.constant 19 : index
    %c0_195 = arith.constant 0 : index
    %c0_196 = arith.constant 0 : index
    %366 = vector.load %arg6[%c19_194, %c0_195, %c0_196] : memref<22x1x128xf32, #tpu.memory_space<vmem>>, vector<1x1x128xf32>
    %367 = vector.shape_cast %366 : vector<1x1x128xf32> to vector<1x128xf32>
    %368 = vector.broadcast %367 : vector<1x128xf32> to vector<2x128xf32>
    %369 = arith.addf %365, %368 : vector<2x128xf32>
    %cst_197 = arith.constant 0.000000e+00 : f32
    %370 = vector.broadcast %cst_197 : f32 to vector<2x128xf32>
    %371 = arith.cmpf oge, %369, %370 : vector<2x128xf32>
    %cst_198 = arith.constant 2.000000e-01 : f32
    %372 = vector.broadcast %cst_198 : f32 to vector<2x128xf32>
    %373 = arith.mulf %372, %369 : vector<2x128xf32>
    %374 = arith.select %371, %369, %373 : vector<2x128xi1>, vector<2x128xf32>
    %375 = arith.truncf %374 : vector<2x128xf32> to vector<2x128xbf16>
    %c20 = arith.constant 20 : index
    %c0_199 = arith.constant 0 : index
    %c0_200 = arith.constant 0 : index
    %376 = vector.load %arg5[%c20, %c0_199, %c0_200] : memref<22x128x128xbf16, #tpu.memory_space<vmem>>, vector<1x128x128xbf16>
    %377 = vector.shape_cast %376 : vector<1x128x128xbf16> to vector<128x128xbf16>
    %cst_201 = arith.constant dense<0.000000e+00> : vector<2x128xf32>
    %378 = tpu.matmul %375, %377, %cst_201 {dimension_numbers = #tpu.dot_dimension_numbers<[1], [0], [0], [1], [0, 0, 1, 1], [], []>} : vector<2x128xbf16>, vector<128x128xbf16>, vector<2x128xf32> -> vector<2x128xf32>
    %c20_202 = arith.constant 20 : index
    %c0_203 = arith.constant 0 : index
    %c0_204 = arith.constant 0 : index
    %379 = vector.load %arg6[%c20_202, %c0_203, %c0_204] : memref<22x1x128xf32, #tpu.memory_space<vmem>>, vector<1x1x128xf32>
    %380 = vector.shape_cast %379 : vector<1x1x128xf32> to vector<1x128xf32>
    %381 = vector.broadcast %380 : vector<1x128xf32> to vector<2x128xf32>
    %382 = arith.addf %378, %381 : vector<2x128xf32>
    %cst_205 = arith.constant 0.000000e+00 : f32
    %383 = vector.broadcast %cst_205 : f32 to vector<2x128xf32>
    %384 = arith.cmpf oge, %382, %383 : vector<2x128xf32>
    %cst_206 = arith.constant 2.000000e-01 : f32
    %385 = vector.broadcast %cst_206 : f32 to vector<2x128xf32>
    %386 = arith.mulf %385, %382 : vector<2x128xf32>
    %387 = arith.select %384, %382, %386 : vector<2x128xi1>, vector<2x128xf32>
    %388 = arith.truncf %387 : vector<2x128xf32> to vector<2x128xbf16>
    %c21 = arith.constant 21 : index
    %c0_207 = arith.constant 0 : index
    %c0_208 = arith.constant 0 : index
    %389 = vector.load %arg5[%c21, %c0_207, %c0_208] : memref<22x128x128xbf16, #tpu.memory_space<vmem>>, vector<1x128x128xbf16>
    %390 = vector.shape_cast %389 : vector<1x128x128xbf16> to vector<128x128xbf16>
    %cst_209 = arith.constant dense<0.000000e+00> : vector<2x128xf32>
    %391 = tpu.matmul %388, %390, %cst_209 {dimension_numbers = #tpu.dot_dimension_numbers<[1], [0], [0], [1], [0, 0, 1, 1], [], []>} : vector<2x128xbf16>, vector<128x128xbf16>, vector<2x128xf32> -> vector<2x128xf32>
    %c21_210 = arith.constant 21 : index
    %c0_211 = arith.constant 0 : index
    %c0_212 = arith.constant 0 : index
    %392 = vector.load %arg6[%c21_210, %c0_211, %c0_212] : memref<22x1x128xf32, #tpu.memory_space<vmem>>, vector<1x1x128xf32>
    %393 = vector.shape_cast %392 : vector<1x1x128xf32> to vector<1x128xf32>
    %394 = vector.broadcast %393 : vector<1x128xf32> to vector<2x128xf32>
    %395 = arith.addf %391, %394 : vector<2x128xf32>
    %c0_213 = arith.constant 0 : index
    %c0_214 = arith.constant 0 : index
    %396 = vector.load %arg7[%c0_213, %c0_214] : memref<2x128xf32, #tpu.memory_space<vmem>>, vector<2x128xf32>
    tpu.vector_store %arg7[%c0_213, %c0_214], %395 {strides = array<i32>} : memref<2x128xf32, #tpu.memory_space<vmem>>, vector<2x128xf32>,
    return
  }
}

</mosaic_0001>

<llo_original>
// kernel: tpu_custom_call.1
$region0: #{tpu_custom_call.1}
  #allocation0 [shape = 'u32[]', space=smem, size = 0x4, offset = 0x4, fixed_abs, tag = 'smem constant byte address 0x4 - core index']
  #allocation1 [shape = 'u32[144,128]{1,0:T(1,128)}', space=vmem, size = 0x12000, scoped, tag = 'internal scratch']
  %s0 = inlined_call_operand.hbm [shape: f32[16,128], index: 0, kind: input, shape index: {}]
  %s1 = inlined_call_operand.vmem [shape: f32[32,128], index: 1, kind: input, shape index: {}]
  %s2 = inlined_call_operand.vmem [shape: s32[32,1], index: 2, kind: input, shape index: {}]
  %s3 = inlined_call_operand.vmem [shape: s32[1,32], index: 3, kind: input, shape index: {}]
  %s4 = inlined_call_operand.vmem [shape: s32[1,16], index: 4, kind: input, shape index: {}]
  %s5 = inlined_call_operand.hbm [shape: bf16[22,128,128], index: 5, kind: input, shape index: {}]
  %s6 = inlined_call_operand.hbm [shape: f32[22,1,128], index: 6, kind: input, shape index: {}]
  %s7 = inlined_call_operand.hbm [shape: f32[2,128], index: 7, kind: output, shape index: {}]
  %s8 = sld [smem:[#allocation0]]
  $region50: #{tpu_custom_call.1} parent=0
    _
  %s10 = ssub.s32 1, %s8
  %s11 = scalar_select 0, %s10, %s8
  $region1: #{tpu_custom_call.1} parent=0
    #allocation2 [shape = 'u8[8192]{0}', space=vmem, size = 0x2000, scoped, tag = 'input window, operand 0, single buffered']
    #allocation3 [shape = 's32[1]{0}', space=sflag, size = 0x4, scoped, tag = 'scoped memory for tpu_custom_call.1']
    #allocation4 [shape = 's32[1]{0}', space=sflag, size = 0x4, scoped, tag = 'scoped memory for tpu_custom_call.1']
    #allocation5 [shape = 'u8[720896]{0}', space=vmem, size = 0xb0000, scoped, tag = 'input window, operand 5, single buffered']
    #allocation6 [shape = 's32[1]{0}', space=sflag, size = 0x4, scoped, tag = 'scoped memory for tpu_custom_call.1']
    #allocation7 [shape = 'u8[11264]{0}', space=vmem, size = 0x2c00, scoped, tag = 'input window, operand 6, single buffered']
    #allocation8 [shape = 'u8[1024]{0}', space=vmem, size = 0x400, scoped, tag = 'output window, operand 0, single buffered']
    %12 = vsyncpa [#allocation3], 0
    %13 = vsyncpa [#allocation6], 0
    %14 = vsyncpa [#allocation4], 0
    // Predicated region
    $region2: #{tpu_custom_call.1} parent=1 // pred_check
      _
    $region3: #{tpu_custom_call.1} parent=1 // pred_check_branch
      %16 = sbr.rel (0) target = $region5
    $region4: #{tpu_custom_call.1} parent=1 // pred_region
      %s18 = ssub.s32 256, 256
      %19 = vsyncadd [#allocation3], %s18
      %s20 = sshll.u32 [#allocation2], 4
      %s21 = int_to_ptr.vmem [resolvable:$true] %s20
      %26 = dma.hbm_to_vmem [thread:$0]  %s0, 256, %s21, [#allocation3], 128, 128, 8
    $region5: #{tpu_custom_call.1} parent=1 // pred_fallthru
      _
    // Predicated region
    $region6: #{tpu_custom_call.1} parent=1 // pred_check
      _
    $region7: #{tpu_custom_call.1} parent=1 // pred_check_branch
      %28 = sbr.rel (0) target = $region9
    $region8: #{tpu_custom_call.1} parent=1 // pred_region
      _
    $region9: #{tpu_custom_call.1} parent=1 // pred_fallthru
      _
    // Predicated region
    $region10: #{tpu_custom_call.1} parent=1 // pred_check
      _
    $region11: #{tpu_custom_call.1} parent=1 // pred_check_branch
      %30 = sbr.rel (0) target = $region13
    $region12: #{tpu_custom_call.1} parent=1 // pred_region
      _
    $region13: #{tpu_custom_call.1} parent=1 // pred_fallthru
      _
    // Predicated region
    $region14: #{tpu_custom_call.1} parent=1 // pred_check
      _
    $region15: #{tpu_custom_call.1} parent=1 // pred_check_branch
      %32 = sbr.rel (0) target = $region17
    $region16: #{tpu_custom_call.1} parent=1 // pred_region
      _
    $region17: #{tpu_custom_call.1} parent=1 // pred_fallthru
      _
    // Predicated region
    $region18: #{tpu_custom_call.1} parent=1 // pred_check
      _
    $region19: #{tpu_custom_call.1} parent=1 // pred_check_branch
      %34 = sbr.rel (0) target = $region21
    $region20: #{tpu_custom_call.1} parent=1 // pred_region
      _
    $region21: #{tpu_custom_call.1} parent=1 // pred_fallthru
      _
    // Predicated region
    $region22: #{tpu_custom_call.1} parent=1 // pred_check
      _
    $region23: #{tpu_custom_call.1} parent=1 // pred_check_branch
      %36 = sbr.rel (0) target = $region25
    $region24: #{tpu_custom_call.1} parent=1 // pred_region
      %s38 = ssub.s32 22528, 22528
      %39 = vsyncadd [#allocation6], %s38
      %s40 = sshll.u32 [#allocation5], 4
      %s41 = int_to_ptr.vmem [resolvable:$true] %s40
      %46 = dma.hbm_to_vmem [thread:$0]  %s5, 22528, %s41, [#allocation6], 64, 64, 4
    $region25: #{tpu_custom_call.1} parent=1 // pred_fallthru
      _
    // Predicated region
    $region26: #{tpu_custom_call.1} parent=1 // pred_check
      _
    $region27: #{tpu_custom_call.1} parent=1 // pred_check_branch
      %48 = sbr.rel (0) target = $region29
    $region28: #{tpu_custom_call.1} parent=1 // pred_region
      %s50 = ssub.s32 352, 352
      %51 = vsyncadd [#allocation6], %s50
      %s52 = sshll.u32 [#allocation7], 4
      %s53 = int_to_ptr.vmem [resolvable:$true] %s52
      %58 = dma.hbm_to_vmem [thread:$0]  %s6, 352, %s53, [#allocation6], 16, 16, 1
    $region29: #{tpu_custom_call.1} parent=1 // pred_fallthru
      _
    // Predicated region
    $region30: #{tpu_custom_call.1} parent=1 // pred_check
      _
    $region31: #{tpu_custom_call.1} parent=1 // pred_check_branch
      %60 = sbr.rel (0) target = $region33
    $region32: #{tpu_custom_call.1} parent=1 // pred_region
      %61 = dma.done [#allocation3], 256
    $region33: #{tpu_custom_call.1} parent=1 // pred_fallthru
      _
    // Predicated region
    $region34: #{tpu_custom_call.1} parent=1 // pred_check
      _
    $region35: #{tpu_custom_call.1} parent=1 // pred_check_branch
      %63 = sbr.rel (0) target = $region37
    $region36: #{tpu_custom_call.1} parent=1 // pred_region
      %64 = dma.done [#allocation6], 22528
    $region37: #{tpu_custom_call.1} parent=1 // pred_fallthru
      _
    // Predicated region
    $region38: #{tpu_custom_call.1} parent=1 // pred_check
      _
    $region39: #{tpu_custom_call.1} parent=1 // pred_check_branch
      %66 = sbr.rel (0) target = $region41
    $region40: #{tpu_custom_call.1} parent=1 // pred_region
      %67 = dma.done [#allocation6], 352
    $region41: #{tpu_custom_call.1} parent=1 // pred_fallthru
      _
    %v69 = vld [vmem:[#allocation2] sm:$0xff]
    %v70 = vld [vmem:[#allocation2 + $0x8] sm:$0xff]
    %v71 = vpack.c.bf16 %v70, %v69
    %v72 = vld [vmem:[#allocation5] sm:$0xf]
    %v73 = vld [vmem:[#allocation5 + $0x4] sm:$0xf]
    %v74 = vld [vmem:[#allocation5 + $0x8] sm:$0xf]
    %v75 = vld [vmem:[#allocation5 + $0xc] sm:$0xf]
    %v76 = vld [vmem:[#allocation5 + $0x10] sm:$0xf]
    %v77 = vld [vmem:[#allocation5 + $0x14] sm:$0xf]
    %v78 = vld [vmem:[#allocation5 + $0x18] sm:$0xf]
    %v79 = vld [vmem:[#allocation5 + $0x1c] sm:$0xf]
    %v80 = vld [vmem:[#allocation5 + $0x20] sm:$0xf]
    %v81 = vld [vmem:[#allocation5 + $0x24] sm:$0xf]
    %v82 = vld [vmem:[#allocation5 + $0x28] sm:$0xf]
    %v83 = vld [vmem:[#allocation5 + $0x2c] sm:$0xf]
    %v84 = vld [vmem:[#allocation5 + $0x30] sm:$0xf]
    %v85 = vld [vmem:[#allocation5 + $0x34] sm:$0xf]
    %v86 = vld [vmem:[#allocation5 + $0x38] sm:$0xf]
    %v87 = vld [vmem:[#allocation5 + $0x3c] sm:$0xf]
    %v88 = vld [vmem:[#allocation7] sm:$0x1]
    %v90 = vlaneseq
    %v91 = vshrl.u32 %v90, 7
    %v92 = vsub.s32 0, %v91
    %v93 = vrot.slane %v88, %v92
    %v111 = vunpack.c.l.b16 %v72
    %v112 = vunpack.c.l.b16 %v73
    %v113 = vunpack.c.l.b16 %v74
    %v114 = vunpack.c.l.b16 %v75
    %v115 = vunpack.c.l.b16 %v76
    %v116 = vunpack.c.l.b16 %v77
    %v117 = vunpack.c.l.b16 %v78
    %v118 = vunpack.c.l.b16 %v79
    %v119 = vunpack.c.l.b16 %v80
    %v120 = vunpack.c.l.b16 %v81
    %v121 = vunpack.c.l.b16 %v82
    %v122 = vunpack.c.l.b16 %v83
    %v123 = vunpack.c.l.b16 %v84
    %v124 = vunpack.c.l.b16 %v85
    %v125 = vunpack.c.l.b16 %v86
    %v126 = vunpack.c.l.b16 %v87
    %v127 = vpack.c.b16 %v112, %v111
    %v128 = vpack.c.b16 %v114, %v113
    %v129 = vpack.c.b16 %v116, %v115
    %v130 = vpack.c.b16 %v118, %v117
    %v131 = vpack.c.b16 %v120, %v119
    %v132 = vpack.c.b16 %v122, %v121
    %v133 = vpack.c.b16 %v124, %v123
    %v134 = vpack.c.b16 %v126, %v125
    %143 = vmatprep.subr.bf16.mxu0 0
    %144 = vmatpush1.bf16.msra.mxu0 %v134
    %145 = vmatprep.subr.bf16.mxu0 0
    %146 = vmatpush1.bf16.msra.mxu0 %v133
    %147 = vmatprep.subr.bf16.mxu0 0
    %148 = vmatpush1.bf16.msra.mxu0 %v132
    %149 = vmatprep.subr.bf16.mxu0 0
    %150 = vmatpush1.bf16.msra.mxu0 %v131
    %151 = vmatprep.subr.bf16.mxu0 0
    %152 = vmatpush1.bf16.msra.mxu0 %v130
    %153 = vmatprep.subr.bf16.mxu0 0
    %154 = vmatpush1.bf16.msra.mxu0 %v129
    %155 = vmatprep.subr.bf16.mxu0 0
    %156 = vmatpush1.bf16.msra.mxu0 %v128
    %157 = vmatprep.subr.bf16.mxu0 0
    %158 = vmatpush1.bf16.msra.mxu0 %v127
    %159 = vmatprep.subr.bf16.mxu0 0
    %160 = vmatpush2.bf16.msra.mxu0 0
    %161 = vmatprep.subr.bf16.mxu0 0
    %162 = vmatpush2.bf16.msra.mxu0 0
    %163 = vmatprep.subr.bf16.mxu0 0
    %164 = vmatpush2.bf16.msra.mxu0 0
    %165 = vmatprep.subr.bf16.mxu0 0
    %166 = vmatpush2.bf16.msra.mxu0 0
    %167 = vmatprep.subr.bf16.mxu0 0
    %168 = vmatpush2.bf16.msra.mxu0 0
    %169 = vmatprep.subr.bf16.mxu0 0
    %170 = vmatpush2.bf16.msra.mxu0 0
    %171 = vmatprep.subr.bf16.mxu0 0
    %172 = vmatpush2.bf16.msra.mxu0 0
    %173 = vmatprep.subr.bf16.mxu0 0
    %174 = vmatpush2.bf16.msra.mxu0 0
    %175 = vmatprep.mubr.bf16.mxu0 0
    %176 = vmatmul.mubr.bf16.gmra.mxu0 %v71
    %v177 = vpop.f32.mrf.mxu0
    %v178 = vadd.f32 %v93, %v177
    %v179 = vpop.f32.mrf.mxu0
    %v180 = vpop.f32.mrf.mxu0
    %v181 = vadd.f32 %v93, %v180
    %v182 = vpop.f32.mrf.mxu0
    %183 = vdwg.mxu0
    %v184 = vmax.f32 %v178, 0.0
    %v185 = vmax.f32 %v181, 0.0
    %v186 = vpack.c.bf16 %v185, %v184
    %s187 = scalar_lea.vmem [#allocation5], 64
    %v188 = vld [vmem:[%s187] sm:$0xf]
    %v189 = vld [vmem:[%s187 + $0x4] sm:$0xf]
    %v190 = vld [vmem:[%s187 + $0x8] sm:$0xf]
    %v191 = vld [vmem:[%s187 + $0xc] sm:$0xf]
    %v192 = vld [vmem:[%s187 + $0x10] sm:$0xf]
    %v193 = vld [vmem:[%s187 + $0x14] sm:$0xf]
    %v194 = vld [vmem:[%s187 + $0x18] sm:$0xf]
    %v195 = vld [vmem:[%s187 + $0x1c] sm:$0xf]
    %v196 = vld [vmem:[%s187 + $0x20] sm:$0xf]
    %v197 = vld [vmem:[%s187 + $0x24] sm:$0xf]
    %v198 = vld [vmem:[%s187 + $0x28] sm:$0xf]
    %v199 = vld [vmem:[%s187 + $0x2c] sm:$0xf]
    %v200 = vld [vmem:[%s187 + $0x30] sm:$0xf]
    %v201 = vld [vmem:[%s187 + $0x34] sm:$0xf]
    %v202 = vld [vmem:[%s187 + $0x38] sm:$0xf]
    %v203 = vld [vmem:[%s187 + $0x3c] sm:$0xf]
    %s204 = scalar_lea.vmem [#allocation7], 1
    %v205 = vld [vmem:[%s204] sm:$0x1]
    %v207 = vlaneseq
    %v208 = vshrl.u32 %v207, 7
    %v209 = vsub.s32 0, %v208
    %v210 = vrot.slane %v205, %v209
    %v228 = vunpack.c.l.b16 %v188
    %v229 = vunpack.c.l.b16 %v189
    %v230 = vunpack.c.l.b16 %v190
    %v231 = vunpack.c.l.b16 %v191
    %v232 = vunpack.c.l.b16 %v192
    %v233 = vunpack.c.l.b16 %v193
    %v234 = vunpack.c.l.b16 %v194
    %v235 = vunpack.c.l.b16 %v195
    %v236 = vunpack.c.l.b16 %v196
    %v237 = vunpack.c.l.b16 %v197
    %v238 = vunpack.c.l.b16 %v198
    %v239 = vunpack.c.l.b16 %v199
    %v240 = vunpack.c.l.b16 %v200
    %v241 = vunpack.c.l.b16 %v201
    %v242 = vunpack.c.l.b16 %v202
    %v243 = vunpack.c.l.b16 %v203
    %v244 = vpack.c.b16 %v229, %v228
    %v245 = vpack.c.b16 %v231, %v230
    %v246 = vpack.c.b16 %v233, %v232
    %v247 = vpack.c.b16 %v235, %v234
    %v248 = vpack.c.b16 %v237, %v236
    %v249 = vpack.c.b16 %v239, %v238
    %v250 = vpack.c.b16 %v241, %v240
    %v251 = vpack.c.b16 %v243, %v242
    %260 = vmatprep.subr.bf16.mxu0 0
    %261 = vmatpush1.bf16.msra.mxu0 %v251
    %262 = vmatprep.subr.bf16.mxu0 0
    %263 = vmatpush1.bf16.msra.mxu0 %v250
    %264 = vmatprep.subr.bf16.mxu0 0
    %265 = vmatpush1.bf16.msra.mxu0 %v249
    %266 = vmatprep.subr.bf16.mxu0 0
    %267 = vmatpush1.bf16.msra.mxu0 %v248
    %268 = vmatprep.subr.bf16.mxu0 0
    %269 = vmatpush1.bf16.msra.mxu0 %v247
    %270 = vmatprep.subr.bf16.mxu0 0
    %271 = vmatpush1.bf16.msra.mxu0 %v246
    %272 = vmatprep.subr.bf16.mxu0 0
    %273 = vmatpush1.bf16.msra.mxu0 %v245
    %274 = vmatprep.subr.bf16.mxu0 0
    %275 = vmatpush1.bf16.msra.mxu0 %v244
    %276 = vmatprep.subr.bf16.mxu0 0
    %277 = vmatpush2.bf16.msra.mxu0 0
    %278 = vmatprep.subr.bf16.mxu0 0
    %279 = vmatpush2.bf16.msra.mxu0 0
    %280 = vmatprep.subr.bf16.mxu0 0
    %281 = vmatpush2.bf16.msra.mxu0 0
    %282 = vmatprep.subr.bf16.mxu0 0
    %283 = vmatpush2.bf16.msra.mxu0 0
    %284 = vmatprep.subr.bf16.mxu0 0
    %285 = vmatpush2.bf16.msra.mxu0 0
    %286 = vmatprep.subr.bf16.mxu0 0
    %287 = vmatpush2.bf16.msra.mxu0 0
    %288 = vmatprep.subr.bf16.mxu0 0
    %289 = vmatpush2.bf16.msra.mxu0 0
    %290 = vmatprep.subr.bf16.mxu0 0
    %291 = vmatpush2.bf16.msra.mxu0 0
    %292 = vmatprep.mubr.bf16.mxu0 0
    %293 = vmatmul.mubr.bf16.gmra.mxu0 %v186
    %v294 = vpop.f32.mrf.mxu0
    %v295 = vadd.f32 %v210, %v294
    %v296 = vpop.f32.mrf.mxu0
    %v297 = vpop.f32.mrf.mxu0
    %v298 = vadd.f32 %v210, %v297
    %v299 = vpop.f32.mrf.mxu0
    %300 = vdwg.mxu0
    %v301 = vmax.f32 %v295, 0.0
    %v302 = vmax.f32 %v298, 0.0
    %v303 = vld [vmem:[%s1] sm:$0xff]
    %v304 = vld [vmem:[%s1 + $0x8] sm:$0xff]
    %v305 = vld [vmem:[%s1 + $0x10] sm:$0xff]
    %v306 = vld [vmem:[%s1 + $0x18] sm:$0xff]
    %v307 = vpack.c.bf16 %v304, %v303
    %v308 = vpack.c.bf16 %v306, %v305
    %s309 = scalar_lea.vmem [#allocation5], 128
    %v310 = vld [vmem:[%s309] sm:$0xf]
    %v311 = vld [vmem:[%s309 + $0x4] sm:$0xf]
    %v312 = vld [vmem:[%s309 + $0x8] sm:$0xf]
    %v313 = vld [vmem:[%s309 + $0xc] sm:$0xf]
    %v314 = vld [vmem:[%s309 + $0x10] sm:$0xf]
    %v315 = vld [vmem:[%s309 + $0x14] sm:$0xf]
    %v316 = vld [vmem:[%s309 + $0x18] sm:$0xf]
    %v317 = vld [vmem:[%s309 + $0x1c] sm:$0xf]
    %v318 = vld [vmem:[%s309 + $0x20] sm:$0xf]
    %v319 = vld [vmem:[%s309 + $0x24] sm:$0xf]
    %v320 = vld [vmem:[%s309 + $0x28] sm:$0xf]
    %v321 = vld [vmem:[%s309 + $0x2c] sm:$0xf]
    %v322 = vld [vmem:[%s309 + $0x30] sm:$0xf]
    %v323 = vld [vmem:[%s309 + $0x34] sm:$0xf]
    %v324 = vld [vmem:[%s309 + $0x38] sm:$0xf]
    %v325 = vld [vmem:[%s309 + $0x3c] sm:$0xf]
    %s326 = scalar_lea.vmem [#allocation7], 2
    %v327 = vld [vmem:[%s326] sm:$0x1]
    %v329 = vlaneseq
    %v330 = vshrl.u32 %v329, 7
    %v331 = vsub.s32 0, %v330
    %v332 = vrot.slane %v327, %v331
    %v350 = vunpack.c.l.b16 %v310
    %v351 = vunpack.c.l.b16 %v311
    %v352 = vunpack.c.l.b16 %v312
    %v353 = vunpack.c.l.b16 %v313
    %v354 = vunpack.c.l.b16 %v314
    %v355 = vunpack.c.l.b16 %v315
    %v356 = vunpack.c.l.b16 %v316
    %v357 = vunpack.c.l.b16 %v317
    %v358 = vunpack.c.l.b16 %v318
    %v359 = vunpack.c.l.b16 %v319
    %v360 = vunpack.c.l.b16 %v320
    %v361 = vunpack.c.l.b16 %v321
    %v362 = vunpack.c.l.b16 %v322
    %v363 = vunpack.c.l.b16 %v323
    %v364 = vunpack.c.l.b16 %v324
    %v365 = vunpack.c.l.b16 %v325
    %v366 = vpack.c.b16 %v351, %v350
    %v367 = vpack.c.b16 %v353, %v352
    %v368 = vpack.c.b16 %v355, %v354
    %v369 = vpack.c.b16 %v357, %v356
    %v370 = vpack.c.b16 %v359, %v358
    %v371 = vpack.c.b16 %v361, %v360
    %v372 = vpack.c.b16 %v363, %v362
    %v373 = vpack.c.b16 %v365, %v364
    %382 = vmatprep.subr.bf16.mxu0 0
    %383 = vmatpush1.bf16.msra.mxu0 %v373
    %384 = vmatprep.subr.bf16.mxu0 0
    %385 = vmatpush1.bf16.msra.mxu0 %v372
    %386 = vmatprep.subr.bf16.mxu0 0
    %387 = vmatpush1.bf16.msra.mxu0 %v371
    %388 = vmatprep.subr.bf16.mxu0 0
    %389 = vmatpush1.bf16.msra.mxu0 %v370
    %390 = vmatprep.subr.bf16.mxu0 0
    %391 = vmatpush1.bf16.msra.mxu0 %v369
    %392 = vmatprep.subr.bf16.mxu0 0
    %393 = vmatpush1.bf16.msra.mxu0 %v368
    %394 = vmatprep.subr.bf16.mxu0 0
    %395 = vmatpush1.bf16.msra.mxu0 %v367
    %396 = vmatprep.subr.bf16.mxu0 0
    %397 = vmatpush1.bf16.msra.mxu0 %v366
    %398 = vmatprep.subr.bf16.mxu0 0
    %399 = vmatpush2.bf16.msra.mxu0 0
    %400 = vmatprep.subr.bf16.mxu0 0
    %401 = vmatpush2.bf16.msra.mxu0 0
    %402 = vmatprep.subr.bf16.mxu0 0
    %403 = vmatpush2.bf16.msra.mxu0 0
    %404 = vmatprep.subr.bf16.mxu0 0
    %405 = vmatpush2.bf16.msra.mxu0 0
    %406 = vmatprep.subr.bf16.mxu0 0
    %407 = vmatpush2.bf16.msra.mxu0 0
    %408 = vmatprep.subr.bf16.mxu0 0
    %409 = vmatpush2.bf16.msra.mxu0 0
    %410 = vmatprep.subr.bf16.mxu0 0
    %411 = vmatpush2.bf16.msra.mxu0 0
    %412 = vmatprep.subr.bf16.mxu0 0
    %413 = vmatpush2.bf16.msra.mxu0 0
    %414 = vmatprep.mubr.bf16.mxu0 0
    %415 = vmatmul.mubr.bf16.gmra.mxu0 %v307
    %v416 = vpop.f32.mrf.mxu0
    %v417 = vadd.f32 %v332, %v416
    %v418 = vpop.f32.mrf.mxu0
    %v419 = vpop.f32.mrf.mxu0
    %v420 = vadd.f32 %v332, %v419
    %v421 = vpop.f32.mrf.mxu0
    %422 = vmatprep.mubr.bf16.mxu0 0
    %423 = vmatmul.mubr.bf16.gmra.mxu0 %v308
    %v424 = vpop.f32.mrf.mxu0
    %v425 = vadd.f32 %v332, %v424
    %v426 = vpop.f32.mrf.mxu0
    %v427 = vpop.f32.mrf.mxu0
    %v428 = vadd.f32 %v332, %v427
    %v429 = vpop.f32.mrf.mxu0
    %430 = vdwg.mxu0
    %v431 = vmax.f32 %v417, 0.0
    %v432 = vmax.f32 %v420, 0.0
    %v433 = vmax.f32 %v425, 0.0
    %v434 = vmax.f32 %v428, 0.0
    %v435 = vpack.c.bf16 %v432, %v431
    %v436 = vpack.c.bf16 %v434, %v433
    %s437 = scalar_lea.vmem [#allocation5], 192
    %v438 = vld [vmem:[%s437] sm:$0xf]
    %v439 = vld [vmem:[%s437 + $0x4] sm:$0xf]
    %v440 = vld [vmem:[%s437 + $0x8] sm:$0xf]
    %v441 = vld [vmem:[%s437 + $0xc] sm:$0xf]
    %v442 = vld [vmem:[%s437 + $0x10] sm:$0xf]
    %v443 = vld [vmem:[%s437 + $0x14] sm:$0xf]
    %v444 = vld [vmem:[%s437 + $0x18] sm:$0xf]
    %v445 = vld [vmem:[%s437 + $0x1c] sm:$0xf]
    %v446 = vld [vmem:[%s437 + $0x20] sm:$0xf]
    %v447 = vld [vmem:[%s437 + $0x24] sm:$0xf]
    %v448 = vld [vmem:[%s437 + $0x28] sm:$0xf]
    %v449 = vld [vmem:[%s437 + $0x2c] sm:$0xf]
    %v450 = vld [vmem:[%s437 + $0x30] sm:$0xf]
    %v451 = vld [vmem:[%s437 + $0x34] sm:$0xf]
    %v452 = vld [vmem:[%s437 + $0x38] sm:$0xf]
    %v453 = vld [vmem:[%s437 + $0x3c] sm:$0xf]
    %s454 = scalar_lea.vmem [#allocation7], 3
    %v455 = vld [vmem:[%s454] sm:$0x1]
    %v457 = vlaneseq
    %v458 = vshrl.u32 %v457, 7
    %v459 = vsub.s32 0, %v458
    %v460 = vrot.slane %v455, %v459
    %v478 = vunpack.c.l.b16 %v438
    %v479 = vunpack.c.l.b16 %v439
    %v480 = vunpack.c.l.b16 %v440
    %v481 = vunpack.c.l.b16 %v441
    %v482 = vunpack.c.l.b16 %v442
    %v483 = vunpack.c.l.b16 %v443
    %v484 = vunpack.c.l.b16 %v444
    %v485 = vunpack.c.l.b16 %v445
    %v486 = vunpack.c.l.b16 %v446
    %v487 = vunpack.c.l.b16 %v447
    %v488 = vunpack.c.l.b16 %v448
    %v489 = vunpack.c.l.b16 %v449
    %v490 = vunpack.c.l.b16 %v450
    %v491 = vunpack.c.l.b16 %v451
    %v492 = vunpack.c.l.b16 %v452
    %v493 = vunpack.c.l.b16 %v453
    %v494 = vpack.c.b16 %v479, %v478
    %v495 = vpack.c.b16 %v481, %v480
    %v496 = vpack.c.b16 %v483, %v482
    %v497 = vpack.c.b16 %v485, %v484
    %v498 = vpack.c.b16 %v487, %v486
    %v499 = vpack.c.b16 %v489, %v488
    %v500 = vpack.c.b16 %v491, %v490
    %v501 = vpack.c.b16 %v493, %v492
    %510 = vmatprep.subr.bf16.mxu0 0
    %511 = vmatpush1.bf16.msra.mxu0 %v501
    %512 = vmatprep.subr.bf16.mxu0 0
    %513 = vmatpush1.bf16.msra.mxu0 %v500
    %514 = vmatprep.subr.bf16.mxu0 0
    %515 = vmatpush1.bf16.msra.mxu0 %v499
    %516 = vmatprep.subr.bf16.mxu0 0
    %517 = vmatpush1.bf16.msra.mxu0 %v498
    %518 = vmatprep.subr.bf16.mxu0 0
    %519 = vmatpush1.bf16.msra.mxu0 %v497
    %520 = vmatprep.subr.bf16.mxu0 0
    %521 = vmatpush1.bf16.msra.mxu0 %v496
    %522 = vmatprep.subr.bf16.mxu0 0
    %523 = vmatpush1.bf16.msra.mxu0 %v495
    %524 = vmatprep.subr.bf16.mxu0 0
    %525 = vmatpush1.bf16.msra.mxu0 %v494
    %526 = vmatprep.subr.bf16.mxu0 0
    %527 = vmatpush2.bf16.msra.mxu0 0
    %528 = vmatprep.subr.bf16.mxu0 0
    %529 = vmatpush2.bf16.msra.mxu0 0
    %530 = vmatprep.subr.bf16.mxu0 0
    %531 = vmatpush2.bf16.msra.mxu0 0
    %532 = vmatprep.subr.bf16.mxu0 0
    %533 = vmatpush2.bf16.msra.mxu0 0
    %534 = vmatprep.subr.bf16.mxu0 0
    %535 = vmatpush2.bf16.msra.mxu0 0
    %536 = vmatprep.subr.bf16.mxu0 0
    %537 = vmatpush2.bf16.msra.mxu0 0
    %538 = vmatprep.subr.bf16.mxu0 0
    %539 = vmatpush2.bf16.msra.mxu0 0
    %540 = vmatprep.subr.bf16.mxu0 0
    %541 = vmatpush2.bf16.msra.mxu0 0
    %542 = vmatprep.mubr.bf16.mxu0 0
    %543 = vmatmul.mubr.bf16.gmra.mxu0 %v435
    %v544 = vpop.f32.mrf.mxu0
    %v545 = vadd.f32 %v460, %v544
    %v546 = vpop.f32.mrf.mxu0
    %v547 = vpop.f32.mrf.mxu0
    %v548 = vadd.f32 %v460, %v547
    %v549 = vpop.f32.mrf.mxu0
    %550 = vmatprep.mubr.bf16.mxu0 0
    %551 = vmatmul.mubr.bf16.gmra.mxu0 %v436
    %v552 = vpop.f32.mrf.mxu0
    %v553 = vadd.f32 %v460, %v552
    %v554 = vpop.f32.mrf.mxu0
    %v555 = vpop.f32.mrf.mxu0
    %v556 = vadd.f32 %v460, %v555
    %v557 = vpop.f32.mrf.mxu0
    %558 = vdwg.mxu0
    %v559 = vmax.f32 %v545, 0.0
    %v560 = vmax.f32 %v548, 0.0
    %v561 = vmax.f32 %v553, 0.0
    %v562 = vmax.f32 %v556, 0.0
    %v563 = vld [vmem:[%s2] sm:$0xff]
    %v564 = vld [vmem:[%s2 + $0x8] sm:$0xff]
    %v565 = vld [vmem:[%s2 + $0x10] sm:$0xff]
    %v566 = vld [vmem:[%s2 + $0x18] sm:$0xff]
    %v567 = vld [vmem:[%s3] sm:$0x1]
    %v568 = vld [vmem:[%s4] sm:$0x1]
    %v569 = vlaneseq
    %v570 = vand.u32 %v569, 127
    %571 = vset.pattern.permute.xlu0 0
    %572 = vperm.xlu0 %571, %v563
    %v573 = vpop.permute.xlu0 %572
    %574 = vset.pattern.permute.xlu0 0
    %575 = vperm.xlu0 %574, %v564
    %v576 = vpop.permute.xlu0 %575
    %577 = vset.pattern.permute.xlu0 0
    %578 = vperm.xlu0 %577, %v565
    %v579 = vpop.permute.xlu0 %578
    %580 = vset.pattern.permute.xlu0 0
    %581 = vperm.xlu0 %580, %v566
    %v582 = vpop.permute.xlu0 %581
    %vm583 = vcmp.eq.s32.totalorder %v570, %v573
    %vm584 = vcmp.eq.s32.totalorder %v570, %v576
    %vm585 = vcmp.eq.s32.totalorder %v570, %v579
    %vm586 = vcmp.eq.s32.totalorder %v570, %v582
    %v587 = vsel %vm583, 1.0, 0.0
    %v588 = vsel %vm584, 1.0, 0.0
    %v589 = vsel %vm585, 1.0, 0.0
    %v590 = vsel %vm586, 1.0, 0.0
    %v591 = vpack.c.bf16 %v588, %v587
    %v592 = vpack.c.bf16 %v590, %v589
    %v593 = vlaneseq
    %v594 = vshrl.u32 %v593, 7
    %v595 = vadd.s32 %v594, 8
    %v596 = vlaneseq
    %v597 = vshrl.u32 %v596, 7
    %v598 = vsub.s32 0, %v597
    %v599 = vrot.slane %v567, %v598
    %vm600 = vcmp.eq.s32.totalorder %v594, %v599
    %vm601 = vcmp.eq.s32.totalorder %v595, %v599
    %v602 = vsel %vm600, 1.0, 0.0
    %v603 = vsel %vm601, 1.0, 0.0
    %v604 = vpack.c.bf16 %v603, %v602
    %v605 = vlaneseq
    %v606 = vshrl.u32 %v605, 7
    %v607 = vsub.s32 0, %v606
    %v608 = vrot.slane %v568, %v607
    %vm609 = vcmp.eq.s32.totalorder %v594, %v608
    %v610 = vsel %vm609, 1.0, 0.0
    %v611 = vpack.c.bf16 %v610, %v610
    %v612 = vpack.c.bf16 %v560, %v559
    %v613 = vpack.c.bf16 %v562, %v561
    %s614 = scalar_lea.vmem [#allocation5], 256
    %v615 = vld [vmem:[%s614] sm:$0xf]
    %v616 = vld [vmem:[%s614 + $0x4] sm:$0xf]
    %v617 = vld [vmem:[%s614 + $0x8] sm:$0xf]
    %v618 = vld [vmem:[%s614 + $0xc] sm:$0xf]
    %v619 = vld [vmem:[%s614 + $0x10] sm:$0xf]
    %v620 = vld [vmem:[%s614 + $0x14] sm:$0xf]
    %v621 = vld [vmem:[%s614 + $0x18] sm:$0xf]
    %v622 = vld [vmem:[%s614 + $0x1c] sm:$0xf]
    %v623 = vld [vmem:[%s614 + $0x20] sm:$0xf]
    %v624 = vld [vmem:[%s614 + $0x24] sm:$0xf]
    %v625 = vld [vmem:[%s614 + $0x28] sm:$0xf]
    %v626 = vld [vmem:[%s614 + $0x2c] sm:$0xf]
    %v627 = vld [vmem:[%s614 + $0x30] sm:$0xf]
    %v628 = vld [vmem:[%s614 + $0x34] sm:$0xf]
    %v629 = vld [vmem:[%s614 + $0x38] sm:$0xf]
    %v630 = vld [vmem:[%s614 + $0x3c] sm:$0xf]
    %s631 = scalar_lea.vmem [#allocation7], 4
    %v632 = vld [vmem:[%s631] sm:$0x1]
    %v634 = vlaneseq
    %v635 = vshrl.u32 %v634, 7
    %v636 = vsub.s32 0, %v635
    %v637 = vrot.slane %v632, %v636
    %v655 = vunpack.c.l.b16 %v615
    %v656 = vunpack.c.l.b16 %v616
    %v657 = vunpack.c.l.b16 %v617
    %v658 = vunpack.c.l.b16 %v618
    %v659 = vunpack.c.l.b16 %v619
    %v660 = vunpack.c.l.b16 %v620
    %v661 = vunpack.c.l.b16 %v621
    %v662 = vunpack.c.l.b16 %v622
    %v663 = vunpack.c.l.b16 %v623
    %v664 = vunpack.c.l.b16 %v624
    %v665 = vunpack.c.l.b16 %v625
    %v666 = vunpack.c.l.b16 %v626
    %v667 = vunpack.c.l.b16 %v627
    %v668 = vunpack.c.l.b16 %v628
    %v669 = vunpack.c.l.b16 %v629
    %v670 = vunpack.c.l.b16 %v630
    %v671 = vpack.c.b16 %v656, %v655
    %v672 = vpack.c.b16 %v658, %v657
    %v673 = vpack.c.b16 %v660, %v659
    %v674 = vpack.c.b16 %v662, %v661
    %v675 = vpack.c.b16 %v664, %v663
    %v676 = vpack.c.b16 %v666, %v665
    %v677 = vpack.c.b16 %v668, %v667
    %v678 = vpack.c.b16 %v670, %v669
    %687 = vmatprep.subr.bf16.mxu0 0
    %688 = vmatpush1.bf16.msra.mxu0 %v678
    %689 = vmatprep.subr.bf16.mxu0 0
    %690 = vmatpush1.bf16.msra.mxu0 %v677
    %691 = vmatprep.subr.bf16.mxu0 0
    %692 = vmatpush1.bf16.msra.mxu0 %v676
    %693 = vmatprep.subr.bf16.mxu0 0
    %694 = vmatpush1.bf16.msra.mxu0 %v675
    %695 = vmatprep.subr.bf16.mxu0 0
    %696 = vmatpush1.bf16.msra.mxu0 %v674
    %697 = vmatprep.subr.bf16.mxu0 0
    %698 = vmatpush1.bf16.msra.mxu0 %v673
    %699 = vmatprep.subr.bf16.mxu0 0
    %700 = vmatpush1.bf16.msra.mxu0 %v672
    %701 = vmatprep.subr.bf16.mxu0 0
    %702 = vmatpush1.bf16.msra.mxu0 %v671
    %703 = vmatprep.subr.bf16.mxu0 0
    %704 = vmatpush2.bf16.msra.mxu0 0
    %705 = vmatprep.subr.bf16.mxu0 0
    %706 = vmatpush2.bf16.msra.mxu0 0
    %707 = vmatprep.subr.bf16.mxu0 0
    %708 = vmatpush2.bf16.msra.mxu0 0
    %709 = vmatprep.subr.bf16.mxu0 0
    %710 = vmatpush2.bf16.msra.mxu0 0
    %711 = vmatprep.subr.bf16.mxu0 0
    %712 = vmatpush2.bf16.msra.mxu0 0
    %713 = vmatprep.subr.bf16.mxu0 0
    %714 = vmatpush2.bf16.msra.mxu0 0
    %715 = vmatprep.subr.bf16.mxu0 0
    %716 = vmatpush2.bf16.msra.mxu0 0
    %717 = vmatprep.subr.bf16.mxu0 0
    %718 = vmatpush2.bf16.msra.mxu0 0
    %719 = vmatprep.mubr.bf16.mxu0 0
    %720 = vmatmul.mubr.bf16.gmra.mxu0 %v612
    %v721 = vpop.f32.mrf.mxu0
    %v722 = vadd.f32 %v637, %v721
    %v723 = vpop.f32.mrf.mxu0
    %v724 = vpop.f32.mrf.mxu0
    %v725 = vadd.f32 %v637, %v724
    %v726 = vpop.f32.mrf.mxu0
    %727 = vmatprep.mubr.bf16.mxu0 0
    %728 = vmatmul.mubr.bf16.gmra.mxu0 %v613
    %v729 = vpop.f32.mrf.mxu0
    %v730 = vadd.f32 %v637, %v729
    %v731 = vpop.f32.mrf.mxu0
    %v732 = vpop.f32.mrf.mxu0
    %v733 = vadd.f32 %v637, %v732
    %v734 = vpop.f32.mrf.mxu0
    %735 = vdwg.mxu0
    %v736 = vpack.c.bf16 %v302, %v301
    %vm737 = vcmask 130048
    %v739 = vsel %vm737, %v591, 0
    %v742 = vsel %vm737, %v592, 0
    %744 = vmatprep.subr.bf16.mxu0 0
    %745 = vmatpush1.bf16.msra.mxu0 0
    %746 = vmatprep.subr.bf16.mxu0 0
    %747 = vmatpush1.bf16.msra.mxu0 0
    %748 = vmatprep.subr.bf16.mxu0 0
    %749 = vmatpush1.bf16.msra.mxu0 0
    %750 = vmatprep.subr.bf16.mxu0 0
    %751 = vmatpush1.bf16.msra.mxu0 0
    %752 = vmatprep.subr.bf16.mxu0 0
    %753 = vmatpush1.bf16.msra.mxu0 0
    %754 = vmatprep.subr.bf16.mxu0 0
    %755 = vmatpush1.bf16.msra.mxu0 0
    %756 = vmatprep.subr.bf16.mxu0 0
    %757 = vmatpush1.bf16.msra.mxu0 0
    %758 = vmatprep.subr.bf16.mxu0 0
    %759 = vmatpush1.bf16.msra.mxu0 %v736
    %760 = vmatprep.subr.bf16.mxu0 0
    %761 = vmatpush2.bf16.msra.mxu0 0
    %762 = vmatprep.subr.bf16.mxu0 0
    %763 = vmatpush2.bf16.msra.mxu0 0
    %764 = vmatprep.subr.bf16.mxu0 0
    %765 = vmatpush2.bf16.msra.mxu0 0
    %766 = vmatprep.subr.bf16.mxu0 0
    %767 = vmatpush2.bf16.msra.mxu0 0
    %768 = vmatprep.subr.bf16.mxu0 0
    %769 = vmatpush2.bf16.msra.mxu0 0
    %770 = vmatprep.subr.bf16.mxu0 0
    %771 = vmatpush2.bf16.msra.mxu0 0
    %772 = vmatprep.subr.bf16.mxu0 0
    %773 = vmatpush2.bf16.msra.mxu0 0
    %774 = vmatprep.subr.bf16.mxu0 0
    %775 = vmatpush2.bf16.msra.mxu0 0
    %776 = vmatprep.mubr.bf16.mxu0 0
    %777 = vmatmul.mubr.bf16.gmra.mxu0 %v739
    %v778 = vpop.f32.mrf.mxu0
    %v779 = vadd.f32 %v722, %v778
    %v780 = vpop.f32.mrf.mxu0
    %v781 = vpop.f32.mrf.mxu0
    %v782 = vadd.f32 %v725, %v781
    %v783 = vpop.f32.mrf.mxu0
    %784 = vmatprep.mubr.bf16.mxu0 0
    %785 = vmatmul.mubr.bf16.gmra.mxu0 %v742
    %v786 = vpop.f32.mrf.mxu0
    %v787 = vadd.f32 %v730, %v786
    %v788 = vpop.f32.mrf.mxu0
    %v789 = vpop.f32.mrf.mxu0
    %v790 = vadd.f32 %v733, %v789
    %v791 = vpop.f32.mrf.mxu0
    %792 = vdwg.mxu0
    %v793 = vmax.f32 %v779, 0.0
    %v794 = vmax.f32 %v782, 0.0
    %v795 = vmax.f32 %v787, 0.0
    %v796 = vmax.f32 %v790, 0.0
    %v797 = vpack.c.bf16 %v794, %v793
    %v798 = vpack.c.bf16 %v796, %v795
    %vm799 = vcmask 261120
    %v801 = vsel %vm799, %v604, 0
    %803 = vmatprep.subr.bf16.mxu0 0
    %804 = vmatpush1.bf16.msra.mxu0 0
    %805 = vmatprep.subr.bf16.mxu0 0
    %806 = vmatpush1.bf16.msra.mxu0 0
    %807 = vmatprep.subr.bf16.mxu0 0
    %808 = vmatpush1.bf16.msra.mxu0 0
    %809 = vmatprep.subr.bf16.mxu0 0
    %810 = vmatpush1.bf16.msra.mxu0 0
    %811 = vmatprep.subr.bf16.mxu0 0
    %812 = vmatpush1.bf16.msra.mxu0 0
    %813 = vmatprep.subr.bf16.mxu0 0
    %814 = vmatpush1.bf16.msra.mxu0 0
    %815 = vmatprep.subr.bf16.mxu0 0
    %816 = vmatpush1.bf16.msra.mxu0 %v798
    %817 = vmatprep.subr.bf16.mxu0 0
    %818 = vmatpush1.bf16.msra.mxu0 %v797
    %819 = vmatprep.subr.bf16.mxu0 0
    %820 = vmatpush2.bf16.msra.mxu0 0
    %821 = vmatprep.subr.bf16.mxu0 0
    %822 = vmatpush2.bf16.msra.mxu0 0
    %823 = vmatprep.subr.bf16.mxu0 0
    %824 = vmatpush2.bf16.msra.mxu0 0
    %825 = vmatprep.subr.bf16.mxu0 0
    %826 = vmatpush2.bf16.msra.mxu0 0
    %827 = vmatprep.subr.bf16.mxu0 0
    %828 = vmatpush2.bf16.msra.mxu0 0
    %829 = vmatprep.subr.bf16.mxu0 0
    %830 = vmatpush2.bf16.msra.mxu0 0
    %831 = vmatprep.subr.bf16.mxu0 0
    %832 = vmatpush2.bf16.msra.mxu0 0
    %833 = vmatprep.subr.bf16.mxu0 0
    %834 = vmatpush2.bf16.msra.mxu0 0
    %835 = vmatprep.mubr.bf16.mxu0 0
    %836 = vmatmul.mubr.bf16.gmra.mxu0 %v801
    %v837 = vpop.f32.mrf.mxu0
    %v838 = vadd.f32 %v301, %v837
    %v839 = vpop.f32.mrf.mxu0
    %v840 = vpop.f32.mrf.mxu0
    %v841 = vadd.f32 %v302, %v840
    %v842 = vpop.f32.mrf.mxu0
    %843 = vdwg.mxu0
    %v844 = vpack.c.bf16 %v841, %v838
    %s845 = scalar_lea.vmem [#allocation5], 320
    %v846 = vld [vmem:[%s845] sm:$0xf]
    %v847 = vld [vmem:[%s845 + $0x4] sm:$0xf]
    %v848 = vld [vmem:[%s845 + $0x8] sm:$0xf]
    %v849 = vld [vmem:[%s845 + $0xc] sm:$0xf]
    %v850 = vld [vmem:[%s845 + $0x10] sm:$0xf]
    %v851 = vld [vmem:[%s845 + $0x14] sm:$0xf]
    %v852 = vld [vmem:[%s845 + $0x18] sm:$0xf]
    %v853 = vld [vmem:[%s845 + $0x1c] sm:$0xf]
    %v854 = vld [vmem:[%s845 + $0x20] sm:$0xf]
    %v855 = vld [vmem:[%s845 + $0x24] sm:$0xf]
    %v856 = vld [vmem:[%s845 + $0x28] sm:$0xf]
    %v857 = vld [vmem:[%s845 + $0x2c] sm:$0xf]
    %v858 = vld [vmem:[%s845 + $0x30] sm:$0xf]
    %v859 = vld [vmem:[%s845 + $0x34] sm:$0xf]
    %v860 = vld [vmem:[%s845 + $0x38] sm:$0xf]
    %v861 = vld [vmem:[%s845 + $0x3c] sm:$0xf]
    %s862 = scalar_lea.vmem [#allocation7], 5
    %v863 = vld [vmem:[%s862] sm:$0x1]
    %v865 = vlaneseq
    %v866 = vshrl.u32 %v865, 7
    %v867 = vsub.s32 0, %v866
    %v868 = vrot.slane %v863, %v867
    %v886 = vunpack.c.l.b16 %v846
    %v887 = vunpack.c.l.b16 %v847
    %v888 = vunpack.c.l.b16 %v848
    %v889 = vunpack.c.l.b16 %v849
    %v890 = vunpack.c.l.b16 %v850
    %v891 = vunpack.c.l.b16 %v851
    %v892 = vunpack.c.l.b16 %v852
    %v893 = vunpack.c.l.b16 %v853
    %v894 = vunpack.c.l.b16 %v854
    %v895 = vunpack.c.l.b16 %v855
    %v896 = vunpack.c.l.b16 %v856
    %v897 = vunpack.c.l.b16 %v857
    %v898 = vunpack.c.l.b16 %v858
    %v899 = vunpack.c.l.b16 %v859
    %v900 = vunpack.c.l.b16 %v860
    %v901 = vunpack.c.l.b16 %v861
    %v902 = vpack.c.b16 %v887, %v886
    %v903 = vpack.c.b16 %v889, %v888
    %v904 = vpack.c.b16 %v891, %v890
    %v905 = vpack.c.b16 %v893, %v892
    %v906 = vpack.c.b16 %v895, %v894
    %v907 = vpack.c.b16 %v897, %v896
    %v908 = vpack.c.b16 %v899, %v898
    %v909 = vpack.c.b16 %v901, %v900
    %918 = vmatprep.subr.bf16.mxu0 0
    %919 = vmatpush1.bf16.msra.mxu0 %v909
    %920 = vmatprep.subr.bf16.mxu0 0
    %921 = vmatpush1.bf16.msra.mxu0 %v908
    %922 = vmatprep.subr.bf16.mxu0 0
    %923 = vmatpush1.bf16.msra.mxu0 %v907
    %924 = vmatprep.subr.bf16.mxu0 0
    %925 = vmatpush1.bf16.msra.mxu0 %v906
    %926 = vmatprep.subr.bf16.mxu0 0
    %927 = vmatpush1.bf16.msra.mxu0 %v905
    %928 = vmatprep.subr.bf16.mxu0 0
    %929 = vmatpush1.bf16.msra.mxu0 %v904
    %930 = vmatprep.subr.bf16.mxu0 0
    %931 = vmatpush1.bf16.msra.mxu0 %v903
    %932 = vmatprep.subr.bf16.mxu0 0
    %933 = vmatpush1.bf16.msra.mxu0 %v902
    %934 = vmatprep.subr.bf16.mxu0 0
    %935 = vmatpush2.bf16.msra.mxu0 0
    %936 = vmatprep.subr.bf16.mxu0 0
    %937 = vmatpush2.bf16.msra.mxu0 0
    %938 = vmatprep.subr.bf16.mxu0 0
    %939 = vmatpush2.bf16.msra.mxu0 0
    %940 = vmatprep.subr.bf16.mxu0 0
    %941 = vmatpush2.bf16.msra.mxu0 0
    %942 = vmatprep.subr.bf16.mxu0 0
    %943 = vmatpush2.bf16.msra.mxu0 0
    %944 = vmatprep.subr.bf16.mxu0 0
    %945 = vmatpush2.bf16.msra.mxu0 0
    %946 = vmatprep.subr.bf16.mxu0 0
    %947 = vmatpush2.bf16.msra.mxu0 0
    %948 = vmatprep.subr.bf16.mxu0 0
    %949 = vmatpush2.bf16.msra.mxu0 0
    %950 = vmatprep.mubr.bf16.mxu0 0
    %951 = vmatmul.mubr.bf16.gmra.mxu0 %v844
    %v952 = vpop.f32.mrf.mxu0
    %v953 = vadd.f32 %v868, %v952
    %v954 = vpop.f32.mrf.mxu0
    %v955 = vpop.f32.mrf.mxu0
    %v956 = vadd.f32 %v868, %v955
    %v957 = vpop.f32.mrf.mxu0
    %958 = vdwg.mxu0
    %v959 = vmax.f32 %v953, 0.0
    %v960 = vmax.f32 %v956, 0.0
    %v961 = vpack.c.bf16 %v960, %v959
    %s962 = scalar_lea.vmem [#allocation5], 384
    %v963 = vld [vmem:[%s962] sm:$0xf]
    %v964 = vld [vmem:[%s962 + $0x4] sm:$0xf]
    %v965 = vld [vmem:[%s962 + $0x8] sm:$0xf]
    %v966 = vld [vmem:[%s962 + $0xc] sm:$0xf]
    %v967 = vld [vmem:[%s962 + $0x10] sm:$0xf]
    %v968 = vld [vmem:[%s962 + $0x14] sm:$0xf]
    %v969 = vld [vmem:[%s962 + $0x18] sm:$0xf]
    %v970 = vld [vmem:[%s962 + $0x1c] sm:$0xf]
    %v971 = vld [vmem:[%s962 + $0x20] sm:$0xf]
    %v972 = vld [vmem:[%s962 + $0x24] sm:$0xf]
    %v973 = vld [vmem:[%s962 + $0x28] sm:$0xf]
    %v974 = vld [vmem:[%s962 + $0x2c] sm:$0xf]
    %v975 = vld [vmem:[%s962 + $0x30] sm:$0xf]
    %v976 = vld [vmem:[%s962 + $0x34] sm:$0xf]
    %v977 = vld [vmem:[%s962 + $0x38] sm:$0xf]
    %v978 = vld [vmem:[%s962 + $0x3c] sm:$0xf]
    %s979 = scalar_lea.vmem [#allocation7], 6
    %v980 = vld [vmem:[%s979] sm:$0x1]
    %v982 = vlaneseq
    %v983 = vshrl.u32 %v982, 7
    %v984 = vsub.s32 0, %v983
    %v985 = vrot.slane %v980, %v984
    %v1003 = vunpack.c.l.b16 %v963
    %v1004 = vunpack.c.l.b16 %v964
    %v1005 = vunpack.c.l.b16 %v965
    %v1006 = vunpack.c.l.b16 %v966
    %v1007 = vunpack.c.l.b16 %v967
    %v1008 = vunpack.c.l.b16 %v968
    %v1009 = vunpack.c.l.b16 %v969
    %v1010 = vunpack.c.l.b16 %v970
    %v1011 = vunpack.c.l.b16 %v971
    %v1012 = vunpack.c.l.b16 %v972
    %v1013 = vunpack.c.l.b16 %v973
    %v1014 = vunpack.c.l.b16 %v974
    %v1015 = vunpack.c.l.b16 %v975
    %v1016 = vunpack.c.l.b16 %v976
    %v1017 = vunpack.c.l.b16 %v977
    %v1018 = vunpack.c.l.b16 %v978
    %v1019 = vpack.c.b16 %v1004, %v1003
    %v1020 = vpack.c.b16 %v1006, %v1005
    %v1021 = vpack.c.b16 %v1008, %v1007
    %v1022 = vpack.c.b16 %v1010, %v1009
    %v1023 = vpack.c.b16 %v1012, %v1011
    %v1024 = vpack.c.b16 %v1014, %v1013
    %v1025 = vpack.c.b16 %v1016, %v1015
    %v1026 = vpack.c.b16 %v1018, %v1017
    %1035 = vmatprep.subr.bf16.mxu0 0
    %1036 = vmatpush1.bf16.msra.mxu0 %v1026
    %1037 = vmatprep.subr.bf16.mxu0 0
    %1038 = vmatpush1.bf16.msra.mxu0 %v1025
    %1039 = vmatprep.subr.bf16.mxu0 0
    %1040 = vmatpush1.bf16.msra.mxu0 %v1024
    %1041 = vmatprep.subr.bf16.mxu0 0
    %1042 = vmatpush1.bf16.msra.mxu0 %v1023
    %1043 = vmatprep.subr.bf16.mxu0 0
    %1044 = vmatpush1.bf16.msra.mxu0 %v1022
    %1045 = vmatprep.subr.bf16.mxu0 0
    %1046 = vmatpush1.bf16.msra.mxu0 %v1021
    %1047 = vmatprep.subr.bf16.mxu0 0
    %1048 = vmatpush1.bf16.msra.mxu0 %v1020
    %1049 = vmatprep.subr.bf16.mxu0 0
    %1050 = vmatpush1.bf16.msra.mxu0 %v1019
    %1051 = vmatprep.subr.bf16.mxu0 0
    %1052 = vmatpush2.bf16.msra.mxu0 0
    %1053 = vmatprep.subr.bf16.mxu0 0
    %1054 = vmatpush2.bf16.msra.mxu0 0
    %1055 = vmatprep.subr.bf16.mxu0 0
    %1056 = vmatpush2.bf16.msra.mxu0 0
    %1057 = vmatprep.subr.bf16.mxu0 0
    %1058 = vmatpush2.bf16.msra.mxu0 0
    %1059 = vmatprep.subr.bf16.mxu0 0
    %1060 = vmatpush2.bf16.msra.mxu0 0
    %1061 = vmatprep.subr.bf16.mxu0 0
    %1062 = vmatpush2.bf16.msra.mxu0 0
    %1063 = vmatprep.subr.bf16.mxu0 0
    %1064 = vmatpush2.bf16.msra.mxu0 0
    %1065 = vmatprep.subr.bf16.mxu0 0
    %1066 = vmatpush2.bf16.msra.mxu0 0
    %1067 = vmatprep.mubr.bf16.mxu0 0
    %1068 = vmatmul.mubr.bf16.gmra.mxu0 %v961
    %v1069 = vpop.f32.mrf.mxu0
    %v1070 = vadd.f32 %v985, %v1069
    %v1071 = vpop.f32.mrf.mxu0
    %v1072 = vpop.f32.mrf.mxu0
    %v1073 = vadd.f32 %v985, %v1072
    %v1074 = vpop.f32.mrf.mxu0
    %1075 = vdwg.mxu0
    %v1076 = vmax.f32 %v1070, 0.0
    %v1077 = vmax.f32 %v1073, 0.0
    %s1078 = scalar_lea.vmem [#allocation5], 448
    %v1079 = vld [vmem:[%s1078] sm:$0xf]
    %v1080 = vld [vmem:[%s1078 + $0x4] sm:$0xf]
    %v1081 = vld [vmem:[%s1078 + $0x8] sm:$0xf]
    %v1082 = vld [vmem:[%s1078 + $0xc] sm:$0xf]
    %v1083 = vld [vmem:[%s1078 + $0x10] sm:$0xf]
    %v1084 = vld [vmem:[%s1078 + $0x14] sm:$0xf]
    %v1085 = vld [vmem:[%s1078 + $0x18] sm:$0xf]
    %v1086 = vld [vmem:[%s1078 + $0x1c] sm:$0xf]
    %v1087 = vld [vmem:[%s1078 + $0x20] sm:$0xf]
    %v1088 = vld [vmem:[%s1078 + $0x24] sm:$0xf]
    %v1089 = vld [vmem:[%s1078 + $0x28] sm:$0xf]
    %v1090 = vld [vmem:[%s1078 + $0x2c] sm:$0xf]
    %v1091 = vld [vmem:[%s1078 + $0x30] sm:$0xf]
    %v1092 = vld [vmem:[%s1078 + $0x34] sm:$0xf]
    %v1093 = vld [vmem:[%s1078 + $0x38] sm:$0xf]
    %v1094 = vld [vmem:[%s1078 + $0x3c] sm:$0xf]
    %s1095 = scalar_lea.vmem [#allocation7], 7
    %v1096 = vld [vmem:[%s1095] sm:$0x1]
    %v1098 = vlaneseq
    %v1099 = vshrl.u32 %v1098, 7
    %v1100 = vsub.s32 0, %v1099
    %v1101 = vrot.slane %v1096, %v1100
    %v1119 = vunpack.c.l.b16 %v1079
    %v1120 = vunpack.c.l.b16 %v1080
    %v1121 = vunpack.c.l.b16 %v1081
    %v1122 = vunpack.c.l.b16 %v1082
    %v1123 = vunpack.c.l.b16 %v1083
    %v1124 = vunpack.c.l.b16 %v1084
    %v1125 = vunpack.c.l.b16 %v1085
    %v1126 = vunpack.c.l.b16 %v1086
    %v1127 = vunpack.c.l.b16 %v1087
    %v1128 = vunpack.c.l.b16 %v1088
    %v1129 = vunpack.c.l.b16 %v1089
    %v1130 = vunpack.c.l.b16 %v1090
    %v1131 = vunpack.c.l.b16 %v1091
    %v1132 = vunpack.c.l.b16 %v1092
    %v1133 = vunpack.c.l.b16 %v1093
    %v1134 = vunpack.c.l.b16 %v1094
    %v1135 = vpack.c.b16 %v1120, %v1119
    %v1136 = vpack.c.b16 %v1122, %v1121
    %v1137 = vpack.c.b16 %v1124, %v1123
    %v1138 = vpack.c.b16 %v1126, %v1125
    %v1139 = vpack.c.b16 %v1128, %v1127
    %v1140 = vpack.c.b16 %v1130, %v1129
    %v1141 = vpack.c.b16 %v1132, %v1131
    %v1142 = vpack.c.b16 %v1134, %v1133
    %1151 = vmatprep.subr.bf16.mxu0 0
    %1152 = vmatpush1.bf16.msra.mxu0 %v1142
    %1153 = vmatprep.subr.bf16.mxu0 0
    %1154 = vmatpush1.bf16.msra.mxu0 %v1141
    %1155 = vmatprep.subr.bf16.mxu0 0
    %1156 = vmatpush1.bf16.msra.mxu0 %v1140
    %1157 = vmatprep.subr.bf16.mxu0 0
    %1158 = vmatpush1.bf16.msra.mxu0 %v1139
    %1159 = vmatprep.subr.bf16.mxu0 0
    %1160 = vmatpush1.bf16.msra.mxu0 %v1138
    %1161 = vmatprep.subr.bf16.mxu0 0
    %1162 = vmatpush1.bf16.msra.mxu0 %v1137
    %1163 = vmatprep.subr.bf16.mxu0 0
    %1164 = vmatpush1.bf16.msra.mxu0 %v1136
    %1165 = vmatprep.subr.bf16.mxu0 0
    %1166 = vmatpush1.bf16.msra.mxu0 %v1135
    %1167 = vmatprep.subr.bf16.mxu0 0
    %1168 = vmatpush2.bf16.msra.mxu0 0
    %1169 = vmatprep.subr.bf16.mxu0 0
    %1170 = vmatpush2.bf16.msra.mxu0 0
    %1171 = vmatprep.subr.bf16.mxu0 0
    %1172 = vmatpush2.bf16.msra.mxu0 0
    %1173 = vmatprep.subr.bf16.mxu0 0
    %1174 = vmatpush2.bf16.msra.mxu0 0
    %1175 = vmatprep.subr.bf16.mxu0 0
    %1176 = vmatpush2.bf16.msra.mxu0 0
    %1177 = vmatprep.subr.bf16.mxu0 0
    %1178 = vmatpush2.bf16.msra.mxu0 0
    %1179 = vmatprep.subr.bf16.mxu0 0
    %1180 = vmatpush2.bf16.msra.mxu0 0
    %1181 = vmatprep.subr.bf16.mxu0 0
    %1182 = vmatpush2.bf16.msra.mxu0 0
    %1183 = vmatprep.mubr.bf16.mxu0 0
    %1184 = vmatmul.mubr.bf16.gmra.mxu0 %v736
    %v1185 = vpop.f32.mrf.mxu0
    %v1186 = vadd.f32 %v1101, %v1185
    %v1187 = vpop.f32.mrf.mxu0
    %v1188 = vpop.f32.mrf.mxu0
    %v1189 = vadd.f32 %v1101, %v1188
    %v1190 = vpop.f32.mrf.mxu0
    %1191 = vdwg.mxu0
    %s1192 = scalar_lea.vmem [#allocation5], 512
    %v1193 = vld [vmem:[%s1192] sm:$0xf]
    %v1194 = vld [vmem:[%s1192 + $0x4] sm:$0xf]
    %v1195 = vld [vmem:[%s1192 + $0x8] sm:$0xf]
    %v1196 = vld [vmem:[%s1192 + $0xc] sm:$0xf]
    %v1197 = vld [vmem:[%s1192 + $0x10] sm:$0xf]
    %v1198 = vld [vmem:[%s1192 + $0x14] sm:$0xf]
    %v1199 = vld [vmem:[%s1192 + $0x18] sm:$0xf]
    %v1200 = vld [vmem:[%s1192 + $0x1c] sm:$0xf]
    %v1201 = vld [vmem:[%s1192 + $0x20] sm:$0xf]
    %v1202 = vld [vmem:[%s1192 + $0x24] sm:$0xf]
    %v1203 = vld [vmem:[%s1192 + $0x28] sm:$0xf]
    %v1204 = vld [vmem:[%s1192 + $0x2c] sm:$0xf]
    %v1205 = vld [vmem:[%s1192 + $0x30] sm:$0xf]
    %v1206 = vld [vmem:[%s1192 + $0x34] sm:$0xf]
    %v1207 = vld [vmem:[%s1192 + $0x38] sm:$0xf]
    %v1208 = vld [vmem:[%s1192 + $0x3c] sm:$0xf]
    %s1209 = scalar_lea.vmem [#allocation7], 8
    %v1210 = vld [vmem:[%s1209] sm:$0x1]
    %v1212 = vlaneseq
    %v1213 = vshrl.u32 %v1212, 7
    %v1214 = vsub.s32 0, %v1213
    %v1215 = vrot.slane %v1210, %v1214
    %v1233 = vunpack.c.l.b16 %v1193
    %v1234 = vunpack.c.l.b16 %v1194
    %v1235 = vunpack.c.l.b16 %v1195
    %v1236 = vunpack.c.l.b16 %v1196
    %v1237 = vunpack.c.l.b16 %v1197
    %v1238 = vunpack.c.l.b16 %v1198
    %v1239 = vunpack.c.l.b16 %v1199
    %v1240 = vunpack.c.l.b16 %v1200
    %v1241 = vunpack.c.l.b16 %v1201
    %v1242 = vunpack.c.l.b16 %v1202
    %v1243 = vunpack.c.l.b16 %v1203
    %v1244 = vunpack.c.l.b16 %v1204
    %v1245 = vunpack.c.l.b16 %v1205
    %v1246 = vunpack.c.l.b16 %v1206
    %v1247 = vunpack.c.l.b16 %v1207
    %v1248 = vunpack.c.l.b16 %v1208
    %v1249 = vpack.c.b16 %v1234, %v1233
    %v1250 = vpack.c.b16 %v1236, %v1235
    %v1251 = vpack.c.b16 %v1238, %v1237
    %v1252 = vpack.c.b16 %v1240, %v1239
    %v1253 = vpack.c.b16 %v1242, %v1241
    %v1254 = vpack.c.b16 %v1244, %v1243
    %v1255 = vpack.c.b16 %v1246, %v1245
    %v1256 = vpack.c.b16 %v1248, %v1247
    %1265 = vmatprep.subr.bf16.mxu0 0
    %1266 = vmatpush1.bf16.msra.mxu0 %v1256
    %1267 = vmatprep.subr.bf16.mxu0 0
    %1268 = vmatpush1.bf16.msra.mxu0 %v1255
    %1269 = vmatprep.subr.bf16.mxu0 0
    %1270 = vmatpush1.bf16.msra.mxu0 %v1254
    %1271 = vmatprep.subr.bf16.mxu0 0
    %1272 = vmatpush1.bf16.msra.mxu0 %v1253
    %1273 = vmatprep.subr.bf16.mxu0 0
    %1274 = vmatpush1.bf16.msra.mxu0 %v1252
    %1275 = vmatprep.subr.bf16.mxu0 0
    %1276 = vmatpush1.bf16.msra.mxu0 %v1251
    %1277 = vmatprep.subr.bf16.mxu0 0
    %1278 = vmatpush1.bf16.msra.mxu0 %v1250
    %1279 = vmatprep.subr.bf16.mxu0 0
    %1280 = vmatpush1.bf16.msra.mxu0 %v1249
    %1281 = vmatprep.subr.bf16.mxu0 0
    %1282 = vmatpush2.bf16.msra.mxu0 0
    %1283 = vmatprep.subr.bf16.mxu0 0
    %1284 = vmatpush2.bf16.msra.mxu0 0
    %1285 = vmatprep.subr.bf16.mxu0 0
    %1286 = vmatpush2.bf16.msra.mxu0 0
    %1287 = vmatprep.subr.bf16.mxu0 0
    %1288 = vmatpush2.bf16.msra.mxu0 0
    %1289 = vmatprep.subr.bf16.mxu0 0
    %1290 = vmatpush2.bf16.msra.mxu0 0
    %1291 = vmatprep.subr.bf16.mxu0 0
    %1292 = vmatpush2.bf16.msra.mxu0 0
    %1293 = vmatprep.subr.bf16.mxu0 0
    %1294 = vmatpush2.bf16.msra.mxu0 0
    %1295 = vmatprep.subr.bf16.mxu0 0
    %1296 = vmatpush2.bf16.msra.mxu0 0
    %1297 = vmatprep.mubr.bf16.mxu0 0
    %1298 = vmatmul.mubr.bf16.gmra.mxu0 %v736
    %v1299 = vpop.f32.mrf.mxu0
    %v1300 = vadd.f32 %v1215, %v1299
    %v1301 = vpop.f32.mrf.mxu0
    %v1302 = vpop.f32.mrf.mxu0
    %v1303 = vadd.f32 %v1215, %v1302
    %v1304 = vpop.f32.mrf.mxu0
    %1305 = vdwg.mxu0
    %s1306 = scalar_lea.vmem [#allocation5], 576
    %v1307 = vld [vmem:[%s1306] sm:$0xf]
    %v1308 = vld [vmem:[%s1306 + $0x4] sm:$0xf]
    %v1309 = vld [vmem:[%s1306 + $0x8] sm:$0xf]
    %v1310 = vld [vmem:[%s1306 + $0xc] sm:$0xf]
    %v1311 = vld [vmem:[%s1306 + $0x10] sm:$0xf]
    %v1312 = vld [vmem:[%s1306 + $0x14] sm:$0xf]
    %v1313 = vld [vmem:[%s1306 + $0x18] sm:$0xf]
    %v1314 = vld [vmem:[%s1306 + $0x1c] sm:$0xf]
    %v1315 = vld [vmem:[%s1306 + $0x20] sm:$0xf]
    %v1316 = vld [vmem:[%s1306 + $0x24] sm:$0xf]
    %v1317 = vld [vmem:[%s1306 + $0x28] sm:$0xf]
    %v1318 = vld [vmem:[%s1306 + $0x2c] sm:$0xf]
    %v1319 = vld [vmem:[%s1306 + $0x30] sm:$0xf]
    %v1320 = vld [vmem:[%s1306 + $0x34] sm:$0xf]
    %v1321 = vld [vmem:[%s1306 + $0x38] sm:$0xf]
    %v1322 = vld [vmem:[%s1306 + $0x3c] sm:$0xf]
    %s1323 = scalar_lea.vmem [#allocation7], 9
    %v1324 = vld [vmem:[%s1323] sm:$0x1]
    %v1326 = vlaneseq
    %v1327 = vshrl.u32 %v1326, 7
    %v1328 = vsub.s32 0, %v1327
    %v1329 = vrot.slane %v1324, %v1328
    %v1347 = vunpack.c.l.b16 %v1307
    %v1348 = vunpack.c.l.b16 %v1308
    %v1349 = vunpack.c.l.b16 %v1309
    %v1350 = vunpack.c.l.b16 %v1310
    %v1351 = vunpack.c.l.b16 %v1311
    %v1352 = vunpack.c.l.b16 %v1312
    %v1353 = vunpack.c.l.b16 %v1313
    %v1354 = vunpack.c.l.b16 %v1314
    %v1355 = vunpack.c.l.b16 %v1315
    %v1356 = vunpack.c.l.b16 %v1316
    %v1357 = vunpack.c.l.b16 %v1317
    %v1358 = vunpack.c.l.b16 %v1318
    %v1359 = vunpack.c.l.b16 %v1319
    %v1360 = vunpack.c.l.b16 %v1320
    %v1361 = vunpack.c.l.b16 %v1321
    %v1362 = vunpack.c.l.b16 %v1322
    %v1363 = vpack.c.b16 %v1348, %v1347
    %v1364 = vpack.c.b16 %v1350, %v1349
    %v1365 = vpack.c.b16 %v1352, %v1351
    %v1366 = vpack.c.b16 %v1354, %v1353
    %v1367 = vpack.c.b16 %v1356, %v1355
    %v1368 = vpack.c.b16 %v1358, %v1357
    %v1369 = vpack.c.b16 %v1360, %v1359
    %v1370 = vpack.c.b16 %v1362, %v1361
    %1379 = vmatprep.subr.bf16.mxu0 0
    %1380 = vmatpush1.bf16.msra.mxu0 %v1370
    %1381 = vmatprep.subr.bf16.mxu0 0
    %1382 = vmatpush1.bf16.msra.mxu0 %v1369
    %1383 = vmatprep.subr.bf16.mxu0 0
    %1384 = vmatpush1.bf16.msra.mxu0 %v1368
    %1385 = vmatprep.subr.bf16.mxu0 0
    %1386 = vmatpush1.bf16.msra.mxu0 %v1367
    %1387 = vmatprep.subr.bf16.mxu0 0
    %1388 = vmatpush1.bf16.msra.mxu0 %v1366
    %1389 = vmatprep.subr.bf16.mxu0 0
    %1390 = vmatpush1.bf16.msra.mxu0 %v1365
    %1391 = vmatprep.subr.bf16.mxu0 0
    %1392 = vmatpush1.bf16.msra.mxu0 %v1364
    %1393 = vmatprep.subr.bf16.mxu0 0
    %1394 = vmatpush1.bf16.msra.mxu0 %v1363
    %1395 = vmatprep.subr.bf16.mxu0 0
    %1396 = vmatpush2.bf16.msra.mxu0 0
    %1397 = vmatprep.subr.bf16.mxu0 0
    %1398 = vmatpush2.bf16.msra.mxu0 0
    %1399 = vmatprep.subr.bf16.mxu0 0
    %1400 = vmatpush2.bf16.msra.mxu0 0
    %1401 = vmatprep.subr.bf16.mxu0 0
    %1402 = vmatpush2.bf16.msra.mxu0 0
    %1403 = vmatprep.subr.bf16.mxu0 0
    %1404 = vmatpush2.bf16.msra.mxu0 0
    %1405 = vmatprep.subr.bf16.mxu0 0
    %1406 = vmatpush2.bf16.msra.mxu0 0
    %1407 = vmatprep.subr.bf16.mxu0 0
    %1408 = vmatpush2.bf16.msra.mxu0 0
    %1409 = vmatprep.subr.bf16.mxu0 0
    %1410 = vmatpush2.bf16.msra.mxu0 0
    %1411 = vmatprep.mubr.bf16.mxu0 0
    %1412 = vmatmul.mubr.bf16.gmra.mxu0 %v736
    %v1413 = vpop.f32.mrf.mxu0
    %v1414 = vadd.f32 %v1329, %v1413
    %v1415 = vpop.f32.mrf.mxu0
    %v1416 = vpop.f32.mrf.mxu0
    %v1417 = vadd.f32 %v1329, %v1416
    %v1418 = vpop.f32.mrf.mxu0
    %1419 = vdwg.mxu0
    %s1420 = scalar_lea.vmem [#allocation5], 640
    %v1421 = vld [vmem:[%s1420] sm:$0xf]
    %v1422 = vld [vmem:[%s1420 + $0x4] sm:$0xf]
    %v1423 = vld [vmem:[%s1420 + $0x8] sm:$0xf]
    %v1424 = vld [vmem:[%s1420 + $0xc] sm:$0xf]
    %v1425 = vpack.c.bf16 %v1189, %v1186
    %v1427 = vunpack.c.l.b16 %v1425
    %v1428 = vunpack.c.h.b16 %v1425
    %v1429 = vpack.c.b16 %v1427, %v1427
    %v1430 = vpack.c.b16 %v1428, %v1428
    %v1431 = vpack.c.bf16 %v1303, %v1300
    %v1433 = vunpack.c.l.b16 %v1431
    %v1434 = vunpack.c.h.b16 %v1431
    %v1435 = vpack.c.b16 %v1433, %v1433
    %v1436 = vpack.c.b16 %v1434, %v1434
    %v1437 = vpack.c.bf16 %v1417, %v1414
    %v1439 = vunpack.c.l.b16 %v1437
    %v1440 = vunpack.c.h.b16 %v1437
    %v1441 = vpack.c.b16 %v1439, %v1439
    %v1442 = vpack.c.b16 %v1440, %v1440
    %v1444 = vsel %vm737, %v1429, 0
    %v1447 = vsel %vm737, %v1435, 0
    %1449 = vmatprep.subr.bf16.mxu0 0
    %1450 = vmatpush1.bf16.xpose.msra.mxu0 0
    %1451 = vmatprep.subr.bf16.mxu0 0
    %1452 = vmatpush1.bf16.xpose.msra.mxu0 0
    %1453 = vmatprep.subr.bf16.mxu0 0
    %1454 = vmatpush1.bf16.xpose.msra.mxu0 0
    %1455 = vmatprep.subr.bf16.mxu0 0
    %1456 = vmatpush1.bf16.xpose.msra.mxu0 0
    %1457 = vmatprep.subr.bf16.mxu0 0
    %1458 = vmatpush1.bf16.xpose.msra.mxu0 0
    %1459 = vmatprep.subr.bf16.mxu0 0
    %1460 = vmatpush1.bf16.xpose.msra.mxu0 0
    %1461 = vmatprep.subr.bf16.mxu0 0
    %1462 = vmatpush1.bf16.xpose.msra.mxu0 0
    %1463 = vmatprep.subr.bf16.mxu0 0
    %1464 = vmatpush1.bf16.xpose.msra.mxu0 %v1447
    %1465 = vmatprep.subr.bf16.mxu0 0
    %1466 = vmatpush2.bf16.xpose.msra.mxu0 0
    %1467 = vmatprep.subr.bf16.mxu0 0
    %1468 = vmatpush2.bf16.xpose.msra.mxu0 0
    %1469 = vmatprep.subr.bf16.mxu0 0
    %1470 = vmatpush2.bf16.xpose.msra.mxu0 0
    %1471 = vmatprep.subr.bf16.mxu0 0
    %1472 = vmatpush2.bf16.xpose.msra.mxu0 0
    %1473 = vmatprep.subr.bf16.mxu0 0
    %1474 = vmatpush2.bf16.xpose.msra.mxu0 0
    %1475 = vmatprep.subr.bf16.mxu0 0
    %1476 = vmatpush2.bf16.xpose.msra.mxu0 0
    %1477 = vmatprep.subr.bf16.mxu0 0
    %1478 = vmatpush2.bf16.xpose.msra.mxu0 0
    %1479 = vmatprep.subr.bf16.mxu0 0
    %1480 = vmatpush2.bf16.xpose.msra.mxu0 0
    %1481 = vmatprep.mubr.bf16.mxu0 0
    %1482 = vmatmul.mubr.bf16.gmra.mxu0 %v1444
    %v1483 = vpop.f32.mrf.mxu0
    %v1484 = vadd.f32 0.0, %v1483
    %v1485 = vpop.f32.mrf.mxu0
    %v1486 = vpop.f32.mrf.mxu0
    %v1487 = vpop.f32.mrf.mxu0
    %1488 = vdwg.mxu0
    %v1490 = vsel %vm737, %v1430, 0
    %v1493 = vsel %vm737, %v1436, 0
    %1495 = vmatprep.subr.bf16.mxu0 0
    %1496 = vmatpush1.bf16.xpose.msra.mxu0 0
    %1497 = vmatprep.subr.bf16.mxu0 0
    %1498 = vmatpush1.bf16.xpose.msra.mxu0 0
    %1499 = vmatprep.subr.bf16.mxu0 0
    %1500 = vmatpush1.bf16.xpose.msra.mxu0 0
    %1501 = vmatprep.subr.bf16.mxu0 0
    %1502 = vmatpush1.bf16.xpose.msra.mxu0 0
    %1503 = vmatprep.subr.bf16.mxu0 0
    %1504 = vmatpush1.bf16.xpose.msra.mxu0 0
    %1505 = vmatprep.subr.bf16.mxu0 0
    %1506 = vmatpush1.bf16.xpose.msra.mxu0 0
    %1507 = vmatprep.subr.bf16.mxu0 0
    %1508 = vmatpush1.bf16.xpose.msra.mxu0 0
    %1509 = vmatprep.subr.bf16.mxu0 0
    %1510 = vmatpush1.bf16.xpose.msra.mxu0 %v1493
    %1511 = vmatprep.subr.bf16.mxu0 0
    %1512 = vmatpush2.bf16.xpose.msra.mxu0 0
    %1513 = vmatprep.subr.bf16.mxu0 0
    %1514 = vmatpush2.bf16.xpose.msra.mxu0 0
    %1515 = vmatprep.subr.bf16.mxu0 0
    %1516 = vmatpush2.bf16.xpose.msra.mxu0 0
    %1517 = vmatprep.subr.bf16.mxu0 0
    %1518 = vmatpush2.bf16.xpose.msra.mxu0 0
    %1519 = vmatprep.subr.bf16.mxu0 0
    %1520 = vmatpush2.bf16.xpose.msra.mxu0 0
    %1521 = vmatprep.subr.bf16.mxu0 0
    %1522 = vmatpush2.bf16.xpose.msra.mxu0 0
    %1523 = vmatprep.subr.bf16.mxu0 0
    %1524 = vmatpush2.bf16.xpose.msra.mxu0 0
    %1525 = vmatprep.subr.bf16.mxu0 0
    %1526 = vmatpush2.bf16.xpose.msra.mxu0 0
    %1527 = vmatprep.mubr.bf16.mxu0 0
    %1528 = vmatmul.mubr.bf16.gmra.mxu0 %v1490
    %v1529 = vpop.f32.mrf.mxu0
    %v1530 = vadd.f32 0.0, %v1529
    %v1531 = vpop.f32.mrf.mxu0
    %v1532 = vpop.f32.mrf.mxu0
    %v1533 = vpop.f32.mrf.mxu0
    %1534 = vdwg.mxu0
    %v1535 = vmul.f32 %v1484, 0.25
    %v1536 = vmul.f32 %v1530, 0.25
    %vm1537 = vcmask 64512
    %v1538 = vsel %vm1537, %v1535, -inf
    %1539 = vmax.xlane.f32.xlu0 %v1538
    %v1540 = vpop.xlane.xlu0 %1539
    %v1541 = vsel %vm1537, %v1536, -inf
    %1542 = vmax.xlane.f32.xlu0 %v1541
    %v1543 = vpop.xlane.xlu0 %1542
    %v1544 = vsub.f32 %v1535, %v1540
    %v1545 = vsub.f32 %v1536, %v1543
    %v1546 = vmul.f32 %v1544, 1.442695
    %v1547 = vpow.pop %v1546
    %v1548 = vmul.f32 %v1545, 1.442695
    %v1549 = vpow.pop %v1548
    %v1550 = vsel %vm1537, %v1547, 0.0
    %1551 = vadd.xlane.f32.xlu0 %v1550
    %v1552 = vpop.xlane.xlu0 %1551
    %v1553 = vsel %vm1537, %v1549, 0.0
    %1554 = vadd.xlane.f32.xlu0 %v1553
    %v1555 = vpop.xlane.xlu0 %1554
    %v1556 = vrcp.pop %v1552
    %v1557 = vrcp.pop %v1555
    %v1558 = vmul.f32 %v1547, %v1556
    %v1559 = vmul.f32 %v1549, %v1557
    %v1560 = vpack.c.bf16 %v1558, %v1558
    %v1561 = vpack.c.bf16 %v1559, %v1559
    %v1563 = vsel %vm1537, %v1560, 0
    %vm1565 = vcmask 1043456
    %v1567 = vsel %vm1565, %v1441, 0
    %1569 = vmatprep.subr.bf16.mxu0 0
    %1570 = vmatpush1.bf16.msra.mxu0 0
    %1571 = vmatprep.subr.bf16.mxu0 0
    %1572 = vmatpush1.bf16.msra.mxu0 0
    %1573 = vmatprep.subr.bf16.mxu0 0
    %1574 = vmatpush1.bf16.msra.mxu0 0
    %1575 = vmatprep.subr.bf16.mxu0 0
    %1576 = vmatpush1.bf16.msra.mxu0 0
    %1577 = vmatprep.subr.bf16.mxu0 0
    %1578 = vmatpush1.bf16.msra.mxu0 0
    %1579 = vmatprep.subr.bf16.mxu0 0
    %1580 = vmatpush1.bf16.msra.mxu0 0
    %1581 = vmatprep.subr.bf16.mxu0 0
    %1582 = vmatpush1.bf16.msra.mxu0 0
    %1583 = vmatprep.subr.bf16.mxu0 0
    %1584 = vmatpush1.bf16.msra.mxu0 %v1567
    %1585 = vmatprep.subr.bf16.mxu0 0
    %1586 = vmatpush2.bf16.msra.mxu0 0
    %1587 = vmatprep.subr.bf16.mxu0 0
    %1588 = vmatpush2.bf16.msra.mxu0 0
    %1589 = vmatprep.subr.bf16.mxu0 0
    %1590 = vmatpush2.bf16.msra.mxu0 0
    %1591 = vmatprep.subr.bf16.mxu0 0
    %1592 = vmatpush2.bf16.msra.mxu0 0
    %1593 = vmatprep.subr.bf16.mxu0 0
    %1594 = vmatpush2.bf16.msra.mxu0 0
    %1595 = vmatprep.subr.bf16.mxu0 0
    %1596 = vmatpush2.bf16.msra.mxu0 0
    %1597 = vmatprep.subr.bf16.mxu0 0
    %1598 = vmatpush2.bf16.msra.mxu0 0
    %1599 = vmatprep.subr.bf16.mxu0 0
    %1600 = vmatpush2.bf16.msra.mxu0 0
    %1601 = vmatprep.mubr.bf16.mxu0 0
    %1602 = vmatmul.mubr.bf16.gmra.mxu0 %v1563
    %v1603 = vpop.f32.mrf.mxu0
    %v1604 = vadd.f32 0.0, %v1603
    %v1605 = vpop.f32.mrf.mxu0
    %v1606 = vpop.f32.mrf.mxu0
    %v1607 = vpop.f32.mrf.mxu0
    %1608 = vdwg.mxu0
    %v1610 = vsel %vm1537, %v1561, 0
    %v1613 = vsel %vm1565, %v1442, 0
    %1615 = vmatprep.subr.bf16.mxu0 0
    %1616 = vmatpush1.bf16.msra.mxu0 0
    %1617 = vmatprep.subr.bf16.mxu0 0
    %1618 = vmatpush1.bf16.msra.mxu0 0
    %1619 = vmatprep.subr.bf16.mxu0 0
    %1620 = vmatpush1.bf16.msra.mxu0 0
    %1621 = vmatprep.subr.bf16.mxu0 0
    %1622 = vmatpush1.bf16.msra.mxu0 0
    %1623 = vmatprep.subr.bf16.mxu0 0
    %1624 = vmatpush1.bf16.msra.mxu0 0
    %1625 = vmatprep.subr.bf16.mxu0 0
    %1626 = vmatpush1.bf16.msra.mxu0 0
    %1627 = vmatprep.subr.bf16.mxu0 0
    %1628 = vmatpush1.bf16.msra.mxu0 0
    %1629 = vmatprep.subr.bf16.mxu0 0
    %1630 = vmatpush1.bf16.msra.mxu0 %v1613
    %1631 = vmatprep.subr.bf16.mxu0 0
    %1632 = vmatpush2.bf16.msra.mxu0 0
    %1633 = vmatprep.subr.bf16.mxu0 0
    %1634 = vmatpush2.bf16.msra.mxu0 0
    %1635 = vmatprep.subr.bf16.mxu0 0
    %1636 = vmatpush2.bf16.msra.mxu0 0
    %1637 = vmatprep.subr.bf16.mxu0 0
    %1638 = vmatpush2.bf16.msra.mxu0 0
    %1639 = vmatprep.subr.bf16.mxu0 0
    %1640 = vmatpush2.bf16.msra.mxu0 0
    %1641 = vmatprep.subr.bf16.mxu0 0
    %1642 = vmatpush2.bf16.msra.mxu0 0
    %1643 = vmatprep.subr.bf16.mxu0 0
    %1644 = vmatpush2.bf16.msra.mxu0 0
    %1645 = vmatprep.subr.bf16.mxu0 0
    %1646 = vmatpush2.bf16.msra.mxu0 0
    %1647 = vmatprep.mubr.bf16.mxu0 0
    %1648 = vmatmul.mubr.bf16.gmra.mxu0 %v1610
    %v1649 = vpop.f32.mrf.mxu0
    %v1650 = vadd.f32 0.0, %v1649
    %v1651 = vpop.f32.mrf.mxu0
    %v1652 = vpop.f32.mrf.mxu0
    %v1653 = vpop.f32.mrf.mxu0
    %1654 = vdwg.mxu0
    %v1655 = vpack.c.bf16 %v1650, %v1604
    %1656 = vrot.lane.b32.xlu0 %v1429, 112
    %v1657 = vpop.permute.xlu0 %1656
    %1658 = vrot.lane.b32.xlu0 %v1435, 112
    %v1659 = vpop.permute.xlu0 %1658
    %v1661 = vsel %vm737, %v1657, 0
    %v1664 = vsel %vm737, %v1659, 0
    %1666 = vmatprep.subr.bf16.mxu0 0
    %1667 = vmatpush1.bf16.xpose.msra.mxu0 0
    %1668 = vmatprep.subr.bf16.mxu0 0
    %1669 = vmatpush1.bf16.xpose.msra.mxu0 0
    %1670 = vmatprep.subr.bf16.mxu0 0
    %1671 = vmatpush1.bf16.xpose.msra.mxu0 0
    %1672 = vmatprep.subr.bf16.mxu0 0
    %1673 = vmatpush1.bf16.xpose.msra.mxu0 0
    %1674 = vmatprep.subr.bf16.mxu0 0
    %1675 = vmatpush1.bf16.xpose.msra.mxu0 0
    %1676 = vmatprep.subr.bf16.mxu0 0
    %1677 = vmatpush1.bf16.xpose.msra.mxu0 0
    %1678 = vmatprep.subr.bf16.mxu0 0
    %1679 = vmatpush1.bf16.xpose.msra.mxu0 0
    %1680 = vmatprep.subr.bf16.mxu0 0
    %1681 = vmatpush1.bf16.xpose.msra.mxu0 %v1664
    %1682 = vmatprep.subr.bf16.mxu0 0
    %1683 = vmatpush2.bf16.xpose.msra.mxu0 0
    %1684 = vmatprep.subr.bf16.mxu0 0
    %1685 = vmatpush2.bf16.xpose.msra.mxu0 0
    %1686 = vmatprep.subr.bf16.mxu0 0
    %1687 = vmatpush2.bf16.xpose.msra.mxu0 0
    %1688 = vmatprep.subr.bf16.mxu0 0
    %1689 = vmatpush2.bf16.xpose.msra.mxu0 0
    %1690 = vmatprep.subr.bf16.mxu0 0
    %1691 = vmatpush2.bf16.xpose.msra.mxu0 0
    %1692 = vmatprep.subr.bf16.mxu0 0
    %1693 = vmatpush2.bf16.xpose.msra.mxu0 0
    %1694 = vmatprep.subr.bf16.mxu0 0
    %1695 = vmatpush2.bf16.xpose.msra.mxu0 0
    %1696 = vmatprep.subr.bf16.mxu0 0
    %1697 = vmatpush2.bf16.xpose.msra.mxu0 0
    %1698 = vmatprep.mubr.bf16.mxu0 0
    %1699 = vmatmul.mubr.bf16.gmra.mxu0 %v1661
    %v1700 = vpop.f32.mrf.mxu0
    %v1701 = vadd.f32 0.0, %v1700
    %v1702 = vpop.f32.mrf.mxu0
    %v1703 = vpop.f32.mrf.mxu0
    %v1704 = vpop.f32.mrf.mxu0
    %1705 = vdwg.mxu0
    %1706 = vrot.lane.b32.xlu0 %v1430, 112
    %v1707 = vpop.permute.xlu0 %1706
    %1708 = vrot.lane.b32.xlu0 %v1436, 112
    %v1709 = vpop.permute.xlu0 %1708
    %v1711 = vsel %vm737, %v1707, 0
    %v1714 = vsel %vm737, %v1709, 0
    %1716 = vmatprep.subr.bf16.mxu0 0
    %1717 = vmatpush1.bf16.xpose.msra.mxu0 0
    %1718 = vmatprep.subr.bf16.mxu0 0
    %1719 = vmatpush1.bf16.xpose.msra.mxu0 0
    %1720 = vmatprep.subr.bf16.mxu0 0
    %1721 = vmatpush1.bf16.xpose.msra.mxu0 0
    %1722 = vmatprep.subr.bf16.mxu0 0
    %1723 = vmatpush1.bf16.xpose.msra.mxu0 0
    %1724 = vmatprep.subr.bf16.mxu0 0
    %1725 = vmatpush1.bf16.xpose.msra.mxu0 0
    %1726 = vmatprep.subr.bf16.mxu0 0
    %1727 = vmatpush1.bf16.xpose.msra.mxu0 0
    %1728 = vmatprep.subr.bf16.mxu0 0
    %1729 = vmatpush1.bf16.xpose.msra.mxu0 0
    %1730 = vmatprep.subr.bf16.mxu0 0
    %1731 = vmatpush1.bf16.xpose.msra.mxu0 %v1714
    %1732 = vmatprep.subr.bf16.mxu0 0
    %1733 = vmatpush2.bf16.xpose.msra.mxu0 0
    %1734 = vmatprep.subr.bf16.mxu0 0
    %1735 = vmatpush2.bf16.xpose.msra.mxu0 0
    %1736 = vmatprep.subr.bf16.mxu0 0
    %1737 = vmatpush2.bf16.xpose.msra.mxu0 0
    %1738 = vmatprep.subr.bf16.mxu0 0
    %1739 = vmatpush2.bf16.xpose.msra.mxu0 0
    %1740 = vmatprep.subr.bf16.mxu0 0
    %1741 = vmatpush2.bf16.xpose.msra.mxu0 0
    %1742 = vmatprep.subr.bf16.mxu0 0
    %1743 = vmatpush2.bf16.xpose.msra.mxu0 0
    %1744 = vmatprep.subr.bf16.mxu0 0
    %1745 = vmatpush2.bf16.xpose.msra.mxu0 0
    %1746 = vmatprep.subr.bf16.mxu0 0
    %1747 = vmatpush2.bf16.xpose.msra.mxu0 0
    %1748 = vmatprep.mubr.bf16.mxu0 0
    %1749 = vmatmul.mubr.bf16.gmra.mxu0 %v1711
    %v1750 = vpop.f32.mrf.mxu0
    %v1751 = vadd.f32 0.0, %v1750
    %v1752 = vpop.f32.mrf.mxu0
    %v1753 = vpop.f32.mrf.mxu0
    %v1754 = vpop.f32.mrf.mxu0
    %1755 = vdwg.mxu0
    %v1756 = vmul.f32 %v1701, 0.25
    %v1757 = vmul.f32 %v1751, 0.25
    %v1758 = vsel %vm1537, %v1756, -inf
    %1759 = vmax.xlane.f32.xlu0 %v1758
    %v1760 = vpop.xlane.xlu0 %1759
    %v1761 = vsel %vm1537, %v1757, -inf
    %1762 = vmax.xlane.f32.xlu0 %v1761
    %v1763 = vpop.xlane.xlu0 %1762
    %v1764 = vsub.f32 %v1756, %v1760
    %v1765 = vsub.f32 %v1757, %v1763
    %v1766 = vmul.f32 %v1764, 1.442695
    %v1767 = vpow.pop %v1766
    %v1768 = vmul.f32 %v1765, 1.442695
    %v1769 = vpow.pop %v1768
    %v1770 = vsel %vm1537, %v1767, 0.0
    %1771 = vadd.xlane.f32.xlu0 %v1770
    %v1772 = vpop.xlane.xlu0 %1771
    %v1773 = vsel %vm1537, %v1769, 0.0
    %1774 = vadd.xlane.f32.xlu0 %v1773
    %v1775 = vpop.xlane.xlu0 %1774
    %v1776 = vrcp.pop %v1772
    %v1777 = vrcp.pop %v1775
    %v1778 = vmul.f32 %v1767, %v1776
    %v1779 = vmul.f32 %v1769, %v1777
    %v1780 = vpack.c.bf16 %v1778, %v1778
    %v1781 = vpack.c.bf16 %v1779, %v1779
    %1782 = vrot.lane.b32.xlu0 %v1441, 112
    %v1783 = vpop.permute.xlu0 %1782
    %v1785 = vsel %vm1537, %v1780, 0
    %v1788 = vsel %vm1565, %v1783, 0
    %1790 = vmatprep.subr.bf16.mxu0 0
    %1791 = vmatpush1.bf16.msra.mxu0 0
    %1792 = vmatprep.subr.bf16.mxu0 0
    %1793 = vmatpush1.bf16.msra.mxu0 0
    %1794 = vmatprep.subr.bf16.mxu0 0
    %1795 = vmatpush1.bf16.msra.mxu0 0
    %1796 = vmatprep.subr.bf16.mxu0 0
    %1797 = vmatpush1.bf16.msra.mxu0 0
    %1798 = vmatprep.subr.bf16.mxu0 0
    %1799 = vmatpush1.bf16.msra.mxu0 0
    %1800 = vmatprep.subr.bf16.mxu0 0
    %1801 = vmatpush1.bf16.msra.mxu0 0
    %1802 = vmatprep.subr.bf16.mxu0 0
    %1803 = vmatpush1.bf16.msra.mxu0 0
    %1804 = vmatprep.subr.bf16.mxu0 0
    %1805 = vmatpush1.bf16.msra.mxu0 %v1788
    %1806 = vmatprep.subr.bf16.mxu0 0
    %1807 = vmatpush2.bf16.msra.mxu0 0
    %1808 = vmatprep.subr.bf16.mxu0 0
    %1809 = vmatpush2.bf16.msra.mxu0 0
    %1810 = vmatprep.subr.bf16.mxu0 0
    %1811 = vmatpush2.bf16.msra.mxu0 0
    %1812 = vmatprep.subr.bf16.mxu0 0
    %1813 = vmatpush2.bf16.msra.mxu0 0
    %1814 = vmatprep.subr.bf16.mxu0 0
    %1815 = vmatpush2.bf16.msra.mxu0 0
    %1816 = vmatprep.subr.bf16.mxu0 0
    %1817 = vmatpush2.bf16.msra.mxu0 0
    %1818 = vmatprep.subr.bf16.mxu0 0
    %1819 = vmatpush2.bf16.msra.mxu0 0
    %1820 = vmatprep.subr.bf16.mxu0 0
    %1821 = vmatpush2.bf16.msra.mxu0 0
    %1822 = vmatprep.mubr.bf16.mxu0 0
    %1823 = vmatmul.mubr.bf16.gmra.mxu0 %v1785
    %v1824 = vpop.f32.mrf.mxu0
    %v1825 = vadd.f32 0.0, %v1824
    %v1826 = vpop.f32.mrf.mxu0
    %v1827 = vpop.f32.mrf.mxu0
    %v1828 = vpop.f32.mrf.mxu0
    %1829 = vdwg.mxu0
    %1830 = vrot.lane.b32.xlu0 %v1442, 112
    %v1831 = vpop.permute.xlu0 %1830
    %v1833 = vsel %vm1537, %v1781, 0
    %v1836 = vsel %vm1565, %v1831, 0
    %1838 = vmatprep.subr.bf16.mxu0 0
    %1839 = vmatpush1.bf16.msra.mxu0 0
    %1840 = vmatprep.subr.bf16.mxu0 0
    %1841 = vmatpush1.bf16.msra.mxu0 0
    %1842 = vmatprep.subr.bf16.mxu0 0
    %1843 = vmatpush1.bf16.msra.mxu0 0
    %1844 = vmatprep.subr.bf16.mxu0 0
    %1845 = vmatpush1.bf16.msra.mxu0 0
    %1846 = vmatprep.subr.bf16.mxu0 0
    %1847 = vmatpush1.bf16.msra.mxu0 0
    %1848 = vmatprep.subr.bf16.mxu0 0
    %1849 = vmatpush1.bf16.msra.mxu0 0
    %1850 = vmatprep.subr.bf16.mxu0 0
    %1851 = vmatpush1.bf16.msra.mxu0 0
    %1852 = vmatprep.subr.bf16.mxu0 0
    %1853 = vmatpush1.bf16.msra.mxu0 %v1836
    %1854 = vmatprep.subr.bf16.mxu0 0
    %1855 = vmatpush2.bf16.msra.mxu0 0
    %1856 = vmatprep.subr.bf16.mxu0 0
    %1857 = vmatpush2.bf16.msra.mxu0 0
    %1858 = vmatprep.subr.bf16.mxu0 0
    %1859 = vmatpush2.bf16.msra.mxu0 0
    %1860 = vmatprep.subr.bf16.mxu0 0
    %1861 = vmatpush2.bf16.msra.mxu0 0
    %1862 = vmatprep.subr.bf16.mxu0 0
    %1863 = vmatpush2.bf16.msra.mxu0 0
    %1864 = vmatprep.subr.bf16.mxu0 0
    %1865 = vmatpush2.bf16.msra.mxu0 0
    %1866 = vmatprep.subr.bf16.mxu0 0
    %1867 = vmatpush2.bf16.msra.mxu0 0
    %1868 = vmatprep.subr.bf16.mxu0 0
    %1869 = vmatpush2.bf16.msra.mxu0 0
    %1870 = vmatprep.mubr.bf16.mxu0 0
    %1871 = vmatmul.mubr.bf16.gmra.mxu0 %v1833
    %v1872 = vpop.f32.mrf.mxu0
    %v1873 = vadd.f32 0.0, %v1872
    %v1874 = vpop.f32.mrf.mxu0
    %v1875 = vpop.f32.mrf.mxu0
    %v1876 = vpop.f32.mrf.mxu0
    %1877 = vdwg.mxu0
    %v1878 = vpack.c.bf16 %v1873, %v1825
    %v1881 = vunpack.c.l.b16 %v1423
    %v1882 = vunpack.c.l.b16 %v1424
    %v1883 = vpack.c.b16 %v1882, %v1881
    %v1886 = vsel %vm737, %v1878, 0
    %1888 = vmatprep.subr.bf16.mxu0 0
    %1889 = vmatpush1.bf16.msra.mxu0 0
    %1890 = vmatprep.subr.bf16.mxu0 0
    %1891 = vmatpush1.bf16.msra.mxu0 0
    %1892 = vmatprep.subr.bf16.mxu0 0
    %1893 = vmatpush1.bf16.msra.mxu0 0
    %1894 = vmatprep.subr.bf16.mxu0 0
    %1895 = vmatpush1.bf16.msra.mxu0 0
    %1896 = vmatprep.subr.bf16.mxu0 0
    %1897 = vmatpush1.bf16.msra.mxu0 0
    %1898 = vmatprep.subr.bf16.mxu0 0
    %1899 = vmatpush1.bf16.msra.mxu0 0
    %1900 = vmatprep.subr.bf16.mxu0 0
    %1901 = vmatpush1.bf16.msra.mxu0 0
    %1902 = vmatprep.subr.bf16.mxu0 0
    %1903 = vmatpush1.bf16.msra.mxu0 %v1883
    %1904 = vmatprep.subr.bf16.mxu0 0
    %1905 = vmatpush2.bf16.msra.mxu0 0
    %1906 = vmatprep.subr.bf16.mxu0 0
    %1907 = vmatpush2.bf16.msra.mxu0 0
    %1908 = vmatprep.subr.bf16.mxu0 0
    %1909 = vmatpush2.bf16.msra.mxu0 0
    %1910 = vmatprep.subr.bf16.mxu0 0
    %1911 = vmatpush2.bf16.msra.mxu0 0
    %1912 = vmatprep.subr.bf16.mxu0 0
    %1913 = vmatpush2.bf16.msra.mxu0 0
    %1914 = vmatprep.subr.bf16.mxu0 0
    %1915 = vmatpush2.bf16.msra.mxu0 0
    %1916 = vmatprep.subr.bf16.mxu0 0
    %1917 = vmatpush2.bf16.msra.mxu0 0
    %1918 = vmatprep.subr.bf16.mxu0 0
    %1919 = vmatpush2.bf16.msra.mxu0 0
    %1920 = vmatprep.mubr.bf16.mxu0 0
    %1921 = vmatmul.mubr.bf16.gmra.mxu0 %v1886
    %v1922 = vpop.f32.mrf.mxu0
    %v1923 = vadd.f32 0.0, %v1922
    %v1924 = vpop.f32.mrf.mxu0
    %v1925 = vpop.f32.mrf.mxu0
    %v1926 = vadd.f32 0.0, %v1925
    %v1927 = vpop.f32.mrf.mxu0
    %1928 = vdwg.mxu0
    %v1931 = vunpack.c.l.b16 %v1421
    %v1932 = vunpack.c.l.b16 %v1422
    %v1933 = vpack.c.b16 %v1932, %v1931
    %v1936 = vsel %vm737, %v1655, 0
    %1938 = vmatprep.subr.bf16.mxu0 0
    %1939 = vmatpush1.bf16.msra.mxu0 0
    %1940 = vmatprep.subr.bf16.mxu0 0
    %1941 = vmatpush1.bf16.msra.mxu0 0
    %1942 = vmatprep.subr.bf16.mxu0 0
    %1943 = vmatpush1.bf16.msra.mxu0 0
    %1944 = vmatprep.subr.bf16.mxu0 0
    %1945 = vmatpush1.bf16.msra.mxu0 0
    %1946 = vmatprep.subr.bf16.mxu0 0
    %1947 = vmatpush1.bf16.msra.mxu0 0
    %1948 = vmatprep.subr.bf16.mxu0 0
    %1949 = vmatpush1.bf16.msra.mxu0 0
    %1950 = vmatprep.subr.bf16.mxu0 0
    %1951 = vmatpush1.bf16.msra.mxu0 0
    %1952 = vmatprep.subr.bf16.mxu0 0
    %1953 = vmatpush1.bf16.msra.mxu0 %v1933
    %1954 = vmatprep.subr.bf16.mxu0 0
    %1955 = vmatpush2.bf16.msra.mxu0 0
    %1956 = vmatprep.subr.bf16.mxu0 0
    %1957 = vmatpush2.bf16.msra.mxu0 0
    %1958 = vmatprep.subr.bf16.mxu0 0
    %1959 = vmatpush2.bf16.msra.mxu0 0
    %1960 = vmatprep.subr.bf16.mxu0 0
    %1961 = vmatpush2.bf16.msra.mxu0 0
    %1962 = vmatprep.subr.bf16.mxu0 0
    %1963 = vmatpush2.bf16.msra.mxu0 0
    %1964 = vmatprep.subr.bf16.mxu0 0
    %1965 = vmatpush2.bf16.msra.mxu0 0
    %1966 = vmatprep.subr.bf16.mxu0 0
    %1967 = vmatpush2.bf16.msra.mxu0 0
    %1968 = vmatprep.subr.bf16.mxu0 0
    %1969 = vmatpush2.bf16.msra.mxu0 0
    %1970 = vmatprep.mubr.bf16.mxu0 0
    %1971 = vmatmul.mubr.bf16.gmra.mxu0 %v1936
    %v1972 = vpop.f32.mrf.mxu0
    %v1973 = vadd.f32 %v1923, %v1972
    %v1974 = vpop.f32.mrf.mxu0
    %v1975 = vpop.f32.mrf.mxu0
    %v1976 = vadd.f32 %v1926, %v1975
    %v1977 = vpop.f32.mrf.mxu0
    %1978 = vdwg.mxu0
    %s1979 = scalar_lea.vmem [#allocation7], 10
    %v1980 = vld [vmem:[%s1979] sm:$0x1]
    %v1982 = vlaneseq
    %v1983 = vshrl.u32 %v1982, 7
    %v1984 = vsub.s32 0, %v1983
    %v1985 = vrot.slane %v1980, %v1984
    %v1987 = vadd.f32 %v1973, %v1985
    %v1988 = vadd.f32 %v1976, %v1985
    %v1989 = vadd.f32 %v1076, %v301
    %v1990 = vadd.f32 %v1077, %v302
    %v1991 = vmul.f32 %v1989, 0.999995
    %v1992 = vmul.f32 %v1990, 0.999995
    %v1993 = vadd.f32 %v1987, %v301
    %v1994 = vadd.f32 %v1988, %v302
    %v1995 = vmul.f32 %v1993, 0.999995
    %v1996 = vmul.f32 %v1994, 0.999995
    %v1997 = vadd.f32 %v1991, %v1995
    %v1998 = vadd.f32 %v1992, %v1996
    %v1999 = vpack.c.bf16 %v1998, %v1997
    %s2000 = scalar_lea.vmem [#allocation5], 704
    %v2001 = vld [vmem:[%s2000] sm:$0xf]
    %v2002 = vld [vmem:[%s2000 + $0x4] sm:$0xf]
    %v2003 = vld [vmem:[%s2000 + $0x8] sm:$0xf]
    %v2004 = vld [vmem:[%s2000 + $0xc] sm:$0xf]
    %v2005 = vld [vmem:[%s2000 + $0x10] sm:$0xf]
    %v2006 = vld [vmem:[%s2000 + $0x14] sm:$0xf]
    %v2007 = vld [vmem:[%s2000 + $0x18] sm:$0xf]
    %v2008 = vld [vmem:[%s2000 + $0x1c] sm:$0xf]
    %v2009 = vld [vmem:[%s2000 + $0x20] sm:$0xf]
    %v2010 = vld [vmem:[%s2000 + $0x24] sm:$0xf]
    %v2011 = vld [vmem:[%s2000 + $0x28] sm:$0xf]
    %v2012 = vld [vmem:[%s2000 + $0x2c] sm:$0xf]
    %v2013 = vld [vmem:[%s2000 + $0x30] sm:$0xf]
    %v2014 = vld [vmem:[%s2000 + $0x34] sm:$0xf]
    %v2015 = vld [vmem:[%s2000 + $0x38] sm:$0xf]
    %v2016 = vld [vmem:[%s2000 + $0x3c] sm:$0xf]
    %s2017 = scalar_lea.vmem [#allocation7], 11
    %v2018 = vld [vmem:[%s2017] sm:$0x1]
    %v2020 = vlaneseq
    %v2021 = vshrl.u32 %v2020, 7
    %v2022 = vsub.s32 0, %v2021
    %v2023 = vrot.slane %v2018, %v2022
    %v2041 = vunpack.c.l.b16 %v2001
    %v2042 = vunpack.c.l.b16 %v2002
    %v2043 = vunpack.c.l.b16 %v2003
    %v2044 = vunpack.c.l.b16 %v2004
    %v2045 = vunpack.c.l.b16 %v2005
    %v2046 = vunpack.c.l.b16 %v2006
    %v2047 = vunpack.c.l.b16 %v2007
    %v2048 = vunpack.c.l.b16 %v2008
    %v2049 = vunpack.c.l.b16 %v2009
    %v2050 = vunpack.c.l.b16 %v2010
    %v2051 = vunpack.c.l.b16 %v2011
    %v2052 = vunpack.c.l.b16 %v2012
    %v2053 = vunpack.c.l.b16 %v2013
    %v2054 = vunpack.c.l.b16 %v2014
    %v2055 = vunpack.c.l.b16 %v2015
    %v2056 = vunpack.c.l.b16 %v2016
    %v2057 = vpack.c.b16 %v2042, %v2041
    %v2058 = vpack.c.b16 %v2044, %v2043
    %v2059 = vpack.c.b16 %v2046, %v2045
    %v2060 = vpack.c.b16 %v2048, %v2047
    %v2061 = vpack.c.b16 %v2050, %v2049
    %v2062 = vpack.c.b16 %v2052, %v2051
    %v2063 = vpack.c.b16 %v2054, %v2053
    %v2064 = vpack.c.b16 %v2056, %v2055
    %2073 = vmatprep.subr.bf16.mxu0 0
    %2074 = vmatpush1.bf16.msra.mxu0 %v2064
    %2075 = vmatprep.subr.bf16.mxu0 0
    %2076 = vmatpush1.bf16.msra.mxu0 %v2063
    %2077 = vmatprep.subr.bf16.mxu0 0
    %2078 = vmatpush1.bf16.msra.mxu0 %v2062
    %2079 = vmatprep.subr.bf16.mxu0 0
    %2080 = vmatpush1.bf16.msra.mxu0 %v2061
    %2081 = vmatprep.subr.bf16.mxu0 0
    %2082 = vmatpush1.bf16.msra.mxu0 %v2060
    %2083 = vmatprep.subr.bf16.mxu0 0
    %2084 = vmatpush1.bf16.msra.mxu0 %v2059
    %2085 = vmatprep.subr.bf16.mxu0 0
    %2086 = vmatpush1.bf16.msra.mxu0 %v2058
    %2087 = vmatprep.subr.bf16.mxu0 0
    %2088 = vmatpush1.bf16.msra.mxu0 %v2057
    %2089 = vmatprep.subr.bf16.mxu0 0
    %2090 = vmatpush2.bf16.msra.mxu0 0
    %2091 = vmatprep.subr.bf16.mxu0 0
    %2092 = vmatpush2.bf16.msra.mxu0 0
    %2093 = vmatprep.subr.bf16.mxu0 0
    %2094 = vmatpush2.bf16.msra.mxu0 0
    %2095 = vmatprep.subr.bf16.mxu0 0
    %2096 = vmatpush2.bf16.msra.mxu0 0
    %2097 = vmatprep.subr.bf16.mxu0 0
    %2098 = vmatpush2.bf16.msra.mxu0 0
    %2099 = vmatprep.subr.bf16.mxu0 0
    %2100 = vmatpush2.bf16.msra.mxu0 0
    %2101 = vmatprep.subr.bf16.mxu0 0
    %2102 = vmatpush2.bf16.msra.mxu0 0
    %2103 = vmatprep.subr.bf16.mxu0 0
    %2104 = vmatpush2.bf16.msra.mxu0 0
    %2105 = vmatprep.mubr.bf16.mxu0 0
    %2106 = vmatmul.mubr.bf16.gmra.mxu0 %v1999
    %v2107 = vpop.f32.mrf.mxu0
    %v2108 = vadd.f32 %v2023, %v2107
    %v2109 = vpop.f32.mrf.mxu0
    %v2110 = vpop.f32.mrf.mxu0
    %v2111 = vadd.f32 %v2023, %v2110
    %v2112 = vpop.f32.mrf.mxu0
    %2113 = vdwg.mxu0
    %v2114 = vmax.f32 %v2108, 0.0
    %v2115 = vmax.f32 %v2111, 0.0
    %v2116 = vpack.c.bf16 %v2115, %v2114
    %s2117 = scalar_lea.vmem [#allocation5], 768
    %v2118 = vld [vmem:[%s2117] sm:$0xf]
    %v2119 = vld [vmem:[%s2117 + $0x4] sm:$0xf]
    %v2120 = vld [vmem:[%s2117 + $0x8] sm:$0xf]
    %v2121 = vld [vmem:[%s2117 + $0xc] sm:$0xf]
    %v2122 = vld [vmem:[%s2117 + $0x10] sm:$0xf]
    %v2123 = vld [vmem:[%s2117 + $0x14] sm:$0xf]
    %v2124 = vld [vmem:[%s2117 + $0x18] sm:$0xf]
    %v2125 = vld [vmem:[%s2117 + $0x1c] sm:$0xf]
    %v2126 = vld [vmem:[%s2117 + $0x20] sm:$0xf]
    %v2127 = vld [vmem:[%s2117 + $0x24] sm:$0xf]
    %v2128 = vld [vmem:[%s2117 + $0x28] sm:$0xf]
    %v2129 = vld [vmem:[%s2117 + $0x2c] sm:$0xf]
    %v2130 = vld [vmem:[%s2117 + $0x30] sm:$0xf]
    %v2131 = vld [vmem:[%s2117 + $0x34] sm:$0xf]
    %v2132 = vld [vmem:[%s2117 + $0x38] sm:$0xf]
    %v2133 = vld [vmem:[%s2117 + $0x3c] sm:$0xf]
    %s2134 = scalar_lea.vmem [#allocation7], 12
    %v2135 = vld [vmem:[%s2134] sm:$0x1]
    %v2137 = vlaneseq
    %v2138 = vshrl.u32 %v2137, 7
    %v2139 = vsub.s32 0, %v2138
    %v2140 = vrot.slane %v2135, %v2139
    %v2158 = vunpack.c.l.b16 %v2118
    %v2159 = vunpack.c.l.b16 %v2119
    %v2160 = vunpack.c.l.b16 %v2120
    %v2161 = vunpack.c.l.b16 %v2121
    %v2162 = vunpack.c.l.b16 %v2122
    %v2163 = vunpack.c.l.b16 %v2123
    %v2164 = vunpack.c.l.b16 %v2124
    %v2165 = vunpack.c.l.b16 %v2125
    %v2166 = vunpack.c.l.b16 %v2126
    %v2167 = vunpack.c.l.b16 %v2127
    %v2168 = vunpack.c.l.b16 %v2128
    %v2169 = vunpack.c.l.b16 %v2129
    %v2170 = vunpack.c.l.b16 %v2130
    %v2171 = vunpack.c.l.b16 %v2131
    %v2172 = vunpack.c.l.b16 %v2132
    %v2173 = vunpack.c.l.b16 %v2133
    %v2174 = vpack.c.b16 %v2159, %v2158
    %v2175 = vpack.c.b16 %v2161, %v2160
    %v2176 = vpack.c.b16 %v2163, %v2162
    %v2177 = vpack.c.b16 %v2165, %v2164
    %v2178 = vpack.c.b16 %v2167, %v2166
    %v2179 = vpack.c.b16 %v2169, %v2168
    %v2180 = vpack.c.b16 %v2171, %v2170
    %v2181 = vpack.c.b16 %v2173, %v2172
    %2190 = vmatprep.subr.bf16.mxu0 0
    %2191 = vmatpush1.bf16.msra.mxu0 %v2181
    %2192 = vmatprep.subr.bf16.mxu0 0
    %2193 = vmatpush1.bf16.msra.mxu0 %v2180
    %2194 = vmatprep.subr.bf16.mxu0 0
    %2195 = vmatpush1.bf16.msra.mxu0 %v2179
    %2196 = vmatprep.subr.bf16.mxu0 0
    %2197 = vmatpush1.bf16.msra.mxu0 %v2178
    %2198 = vmatprep.subr.bf16.mxu0 0
    %2199 = vmatpush1.bf16.msra.mxu0 %v2177
    %2200 = vmatprep.subr.bf16.mxu0 0
    %2201 = vmatpush1.bf16.msra.mxu0 %v2176
    %2202 = vmatprep.subr.bf16.mxu0 0
    %2203 = vmatpush1.bf16.msra.mxu0 %v2175
    %2204 = vmatprep.subr.bf16.mxu0 0
    %2205 = vmatpush1.bf16.msra.mxu0 %v2174
    %2206 = vmatprep.subr.bf16.mxu0 0
    %2207 = vmatpush2.bf16.msra.mxu0 0
    %2208 = vmatprep.subr.bf16.mxu0 0
    %2209 = vmatpush2.bf16.msra.mxu0 0
    %2210 = vmatprep.subr.bf16.mxu0 0
    %2211 = vmatpush2.bf16.msra.mxu0 0
    %2212 = vmatprep.subr.bf16.mxu0 0
    %2213 = vmatpush2.bf16.msra.mxu0 0
    %2214 = vmatprep.subr.bf16.mxu0 0
    %2215 = vmatpush2.bf16.msra.mxu0 0
    %2216 = vmatprep.subr.bf16.mxu0 0
    %2217 = vmatpush2.bf16.msra.mxu0 0
    %2218 = vmatprep.subr.bf16.mxu0 0
    %2219 = vmatpush2.bf16.msra.mxu0 0
    %2220 = vmatprep.subr.bf16.mxu0 0
    %2221 = vmatpush2.bf16.msra.mxu0 0
    %2222 = vmatprep.mubr.bf16.mxu0 0
    %2223 = vmatmul.mubr.bf16.gmra.mxu0 %v2116
    %v2224 = vpop.f32.mrf.mxu0
    %v2225 = vadd.f32 %v2140, %v2224
    %v2226 = vpop.f32.mrf.mxu0
    %v2227 = vpop.f32.mrf.mxu0
    %v2228 = vadd.f32 %v2140, %v2227
    %v2229 = vpop.f32.mrf.mxu0
    %2230 = vdwg.mxu0
    %v2231 = vadd.f32 %v1997, %v2225
    %v2232 = vadd.f32 %v1998, %v2228
    %v2233 = vmul.f32 %v2231, 0.999995
    %v2234 = vmul.f32 %v2232, 0.999995
    %v2235 = vpack.c.bf16 %v2234, %v2233
    %2236 = vmatprep.subr.bf16.mxu0 0
    %2237 = vmatpush1.bf16.msra.mxu0 0
    %2238 = vmatprep.subr.bf16.mxu0 0
    %2239 = vmatpush1.bf16.msra.mxu0 0
    %2240 = vmatprep.subr.bf16.mxu0 0
    %2241 = vmatpush1.bf16.msra.mxu0 0
    %2242 = vmatprep.subr.bf16.mxu0 0
    %2243 = vmatpush1.bf16.msra.mxu0 0
    %2244 = vmatprep.subr.bf16.mxu0 0
    %2245 = vmatpush1.bf16.msra.mxu0 0
    %2246 = vmatprep.subr.bf16.mxu0 0
    %2247 = vmatpush1.bf16.msra.mxu0 0
    %2248 = vmatprep.subr.bf16.mxu0 0
    %2249 = vmatpush1.bf16.msra.mxu0 0
    %2250 = vmatprep.subr.bf16.mxu0 0
    %2251 = vmatpush1.bf16.msra.mxu0 %v2235
    %2252 = vmatprep.subr.bf16.mxu0 0
    %2253 = vmatpush2.bf16.msra.mxu0 0
    %2254 = vmatprep.subr.bf16.mxu0 0
    %2255 = vmatpush2.bf16.msra.mxu0 0
    %2256 = vmatprep.subr.bf16.mxu0 0
    %2257 = vmatpush2.bf16.msra.mxu0 0
    %2258 = vmatprep.subr.bf16.mxu0 0
    %2259 = vmatpush2.bf16.msra.mxu0 0
    %2260 = vmatprep.subr.bf16.mxu0 0
    %2261 = vmatpush2.bf16.msra.mxu0 0
    %2262 = vmatprep.subr.bf16.mxu0 0
    %2263 = vmatpush2.bf16.msra.mxu0 0
    %2264 = vmatprep.subr.bf16.mxu0 0
    %2265 = vmatpush2.bf16.msra.mxu0 0
    %2266 = vmatprep.subr.bf16.mxu0 0
    %2267 = vmatpush2.bf16.msra.mxu0 0
    %2268 = vmatprep.mubr.bf16.mxu0 0
    %2269 = vmatmul.mubr.bf16.gmra.mxu0 %v739
    %v2270 = vpop.f32.mrf.mxu0
    %v2271 = vadd.f32 %v722, %v2270
    %v2272 = vpop.f32.mrf.mxu0
    %v2273 = vpop.f32.mrf.mxu0
    %v2274 = vadd.f32 %v725, %v2273
    %v2275 = vpop.f32.mrf.mxu0
    %2276 = vmatprep.mubr.bf16.mxu0 0
    %2277 = vmatmul.mubr.bf16.gmra.mxu0 %v742
    %v2278 = vpop.f32.mrf.mxu0
    %v2279 = vadd.f32 %v730, %v2278
    %v2280 = vpop.f32.mrf.mxu0
    %v2281 = vpop.f32.mrf.mxu0
    %v2282 = vadd.f32 %v733, %v2281
    %v2283 = vpop.f32.mrf.mxu0
    %2284 = vdwg.mxu0
    %v2285 = vmax.f32 %v2271, 0.0
    %v2286 = vmax.f32 %v2274, 0.0
    %v2287 = vmax.f32 %v2279, 0.0
    %v2288 = vmax.f32 %v2282, 0.0
    %v2289 = vpack.c.bf16 %v2286, %v2285
    %v2290 = vpack.c.bf16 %v2288, %v2287
    %2291 = vmatprep.subr.bf16.mxu0 0
    %2292 = vmatpush1.bf16.msra.mxu0 0
    %2293 = vmatprep.subr.bf16.mxu0 0
    %2294 = vmatpush1.bf16.msra.mxu0 0
    %2295 = vmatprep.subr.bf16.mxu0 0
    %2296 = vmatpush1.bf16.msra.mxu0 0
    %2297 = vmatprep.subr.bf16.mxu0 0
    %2298 = vmatpush1.bf16.msra.mxu0 0
    %2299 = vmatprep.subr.bf16.mxu0 0
    %2300 = vmatpush1.bf16.msra.mxu0 0
    %2301 = vmatprep.subr.bf16.mxu0 0
    %2302 = vmatpush1.bf16.msra.mxu0 0
    %2303 = vmatprep.subr.bf16.mxu0 0
    %2304 = vmatpush1.bf16.msra.mxu0 %v2290
    %2305 = vmatprep.subr.bf16.mxu0 0
    %2306 = vmatpush1.bf16.msra.mxu0 %v2289
    %2307 = vmatprep.subr.bf16.mxu0 0
    %2308 = vmatpush2.bf16.msra.mxu0 0
    %2309 = vmatprep.subr.bf16.mxu0 0
    %2310 = vmatpush2.bf16.msra.mxu0 0
    %2311 = vmatprep.subr.bf16.mxu0 0
    %2312 = vmatpush2.bf16.msra.mxu0 0
    %2313 = vmatprep.subr.bf16.mxu0 0
    %2314 = vmatpush2.bf16.msra.mxu0 0
    %2315 = vmatprep.subr.bf16.mxu0 0
    %2316 = vmatpush2.bf16.msra.mxu0 0
    %2317 = vmatprep.subr.bf16.mxu0 0
    %2318 = vmatpush2.bf16.msra.mxu0 0
    %2319 = vmatprep.subr.bf16.mxu0 0
    %2320 = vmatpush2.bf16.msra.mxu0 0
    %2321 = vmatprep.subr.bf16.mxu0 0
    %2322 = vmatpush2.bf16.msra.mxu0 0
    %2323 = vmatprep.mubr.bf16.mxu0 0
    %2324 = vmatmul.mubr.bf16.gmra.mxu0 %v801
    %v2325 = vpop.f32.mrf.mxu0
    %v2326 = vadd.f32 %v2233, %v2325
    %v2327 = vpop.f32.mrf.mxu0
    %v2328 = vpop.f32.mrf.mxu0
    %v2329 = vadd.f32 %v2234, %v2328
    %v2330 = vpop.f32.mrf.mxu0
    %2331 = vdwg.mxu0
    %v2332 = vpack.c.bf16 %v2329, %v2326
    %v2333 = vld [vmem:[%s845] sm:$0xf]
    %v2334 = vld [vmem:[%s845 + $0x4] sm:$0xf]
    %v2335 = vld [vmem:[%s845 + $0x8] sm:$0xf]
    %v2336 = vld [vmem:[%s845 + $0xc] sm:$0xf]
    %v2337 = vld [vmem:[%s845 + $0x10] sm:$0xf]
    %v2338 = vld [vmem:[%s845 + $0x14] sm:$0xf]
    %v2339 = vld [vmem:[%s845 + $0x18] sm:$0xf]
    %v2340 = vld [vmem:[%s845 + $0x1c] sm:$0xf]
    %v2341 = vld [vmem:[%s845 + $0x20] sm:$0xf]
    %v2342 = vld [vmem:[%s845 + $0x24] sm:$0xf]
    %v2343 = vld [vmem:[%s845 + $0x28] sm:$0xf]
    %v2344 = vld [vmem:[%s845 + $0x2c] sm:$0xf]
    %v2345 = vld [vmem:[%s845 + $0x30] sm:$0xf]
    %v2346 = vld [vmem:[%s845 + $0x34] sm:$0xf]
    %v2347 = vld [vmem:[%s845 + $0x38] sm:$0xf]
    %v2348 = vld [vmem:[%s845 + $0x3c] sm:$0xf]
    %v2349 = vld [vmem:[%s862] sm:$0x1]
    %v2351 = vlaneseq
    %v2352 = vshrl.u32 %v2351, 7
    %v2353 = vsub.s32 0, %v2352
    %v2354 = vrot.slane %v2349, %v2353
    %v2372 = vunpack.c.l.b16 %v2333
    %v2373 = vunpack.c.l.b16 %v2334
    %v2374 = vunpack.c.l.b16 %v2335
    %v2375 = vunpack.c.l.b16 %v2336
    %v2376 = vunpack.c.l.b16 %v2337
    %v2377 = vunpack.c.l.b16 %v2338
    %v2378 = vunpack.c.l.b16 %v2339
    %v2379 = vunpack.c.l.b16 %v2340
    %v2380 = vunpack.c.l.b16 %v2341
    %v2381 = vunpack.c.l.b16 %v2342
    %v2382 = vunpack.c.l.b16 %v2343
    %v2383 = vunpack.c.l.b16 %v2344
    %v2384 = vunpack.c.l.b16 %v2345
    %v2385 = vunpack.c.l.b16 %v2346
    %v2386 = vunpack.c.l.b16 %v2347
    %v2387 = vunpack.c.l.b16 %v2348
    %v2388 = vpack.c.b16 %v2373, %v2372
    %v2389 = vpack.c.b16 %v2375, %v2374
    %v2390 = vpack.c.b16 %v2377, %v2376
    %v2391 = vpack.c.b16 %v2379, %v2378
    %v2392 = vpack.c.b16 %v2381, %v2380
    %v2393 = vpack.c.b16 %v2383, %v2382
    %v2394 = vpack.c.b16 %v2385, %v2384
    %v2395 = vpack.c.b16 %v2387, %v2386
    %2404 = vmatprep.subr.bf16.mxu0 0
    %2405 = vmatpush1.bf16.msra.mxu0 %v2395
    %2406 = vmatprep.subr.bf16.mxu0 0
    %2407 = vmatpush1.bf16.msra.mxu0 %v2394
    %2408 = vmatprep.subr.bf16.mxu0 0
    %2409 = vmatpush1.bf16.msra.mxu0 %v2393
    %2410 = vmatprep.subr.bf16.mxu0 0
    %2411 = vmatpush1.bf16.msra.mxu0 %v2392
    %2412 = vmatprep.subr.bf16.mxu0 0
    %2413 = vmatpush1.bf16.msra.mxu0 %v2391
    %2414 = vmatprep.subr.bf16.mxu0 0
    %2415 = vmatpush1.bf16.msra.mxu0 %v2390
    %2416 = vmatprep.subr.bf16.mxu0 0
    %2417 = vmatpush1.bf16.msra.mxu0 %v2389
    %2418 = vmatprep.subr.bf16.mxu0 0
    %2419 = vmatpush1.bf16.msra.mxu0 %v2388
    %2420 = vmatprep.subr.bf16.mxu0 0
    %2421 = vmatpush2.bf16.msra.mxu0 0
    %2422 = vmatprep.subr.bf16.mxu0 0
    %2423 = vmatpush2.bf16.msra.mxu0 0
    %2424 = vmatprep.subr.bf16.mxu0 0
    %2425 = vmatpush2.bf16.msra.mxu0 0
    %2426 = vmatprep.subr.bf16.mxu0 0
    %2427 = vmatpush2.bf16.msra.mxu0 0
    %2428 = vmatprep.subr.bf16.mxu0 0
    %2429 = vmatpush2.bf16.msra.mxu0 0
    %2430 = vmatprep.subr.bf16.mxu0 0
    %2431 = vmatpush2.bf16.msra.mxu0 0
    %2432 = vmatprep.subr.bf16.mxu0 0
    %2433 = vmatpush2.bf16.msra.mxu0 0
    %2434 = vmatprep.subr.bf16.mxu0 0
    %2435 = vmatpush2.bf16.msra.mxu0 0
    %2436 = vmatprep.mubr.bf16.mxu0 0
    %2437 = vmatmul.mubr.bf16.gmra.mxu0 %v2332
    %v2438 = vpop.f32.mrf.mxu0
    %v2439 = vadd.f32 %v2354, %v2438
    %v2440 = vpop.f32.mrf.mxu0
    %v2441 = vpop.f32.mrf.mxu0
    %v2442 = vadd.f32 %v2354, %v2441
    %v2443 = vpop.f32.mrf.mxu0
    %2444 = vdwg.mxu0
    %v2445 = vmax.f32 %v2439, 0.0
    %v2446 = vmax.f32 %v2442, 0.0
    %v2447 = vpack.c.bf16 %v2446, %v2445
    %v2448 = vld [vmem:[%s962] sm:$0xf]
    %v2449 = vld [vmem:[%s962 + $0x4] sm:$0xf]
    %v2450 = vld [vmem:[%s962 + $0x8] sm:$0xf]
    %v2451 = vld [vmem:[%s962 + $0xc] sm:$0xf]
    %v2452 = vld [vmem:[%s962 + $0x10] sm:$0xf]
    %v2453 = vld [vmem:[%s962 + $0x14] sm:$0xf]
    %v2454 = vld [vmem:[%s962 + $0x18] sm:$0xf]
    %v2455 = vld [vmem:[%s962 + $0x1c] sm:$0xf]
    %v2456 = vld [vmem:[%s962 + $0x20] sm:$0xf]
    %v2457 = vld [vmem:[%s962 + $0x24] sm:$0xf]
    %v2458 = vld [vmem:[%s962 + $0x28] sm:$0xf]
    %v2459 = vld [vmem:[%s962 + $0x2c] sm:$0xf]
    %v2460 = vld [vmem:[%s962 + $0x30] sm:$0xf]
    %v2461 = vld [vmem:[%s962 + $0x34] sm:$0xf]
    %v2462 = vld [vmem:[%s962 + $0x38] sm:$0xf]
    %v2463 = vld [vmem:[%s962 + $0x3c] sm:$0xf]
    %v2464 = vld [vmem:[%s979] sm:$0x1]
    %v2466 = vlaneseq
    %v2467 = vshrl.u32 %v2466, 7
    %v2468 = vsub.s32 0, %v2467
    %v2469 = vrot.slane %v2464, %v2468
    %v2487 = vunpack.c.l.b16 %v2448
    %v2488 = vunpack.c.l.b16 %v2449
    %v2489 = vunpack.c.l.b16 %v2450
    %v2490 = vunpack.c.l.b16 %v2451
    %v2491 = vunpack.c.l.b16 %v2452
    %v2492 = vunpack.c.l.b16 %v2453
    %v2493 = vunpack.c.l.b16 %v2454
    %v2494 = vunpack.c.l.b16 %v2455
    %v2495 = vunpack.c.l.b16 %v2456
    %v2496 = vunpack.c.l.b16 %v2457
    %v2497 = vunpack.c.l.b16 %v2458
    %v2498 = vunpack.c.l.b16 %v2459
    %v2499 = vunpack.c.l.b16 %v2460
    %v2500 = vunpack.c.l.b16 %v2461
    %v2501 = vunpack.c.l.b16 %v2462
    %v2502 = vunpack.c.l.b16 %v2463
    %v2503 = vpack.c.b16 %v2488, %v2487
    %v2504 = vpack.c.b16 %v2490, %v2489
    %v2505 = vpack.c.b16 %v2492, %v2491
    %v2506 = vpack.c.b16 %v2494, %v2493
    %v2507 = vpack.c.b16 %v2496, %v2495
    %v2508 = vpack.c.b16 %v2498, %v2497
    %v2509 = vpack.c.b16 %v2500, %v2499
    %v2510 = vpack.c.b16 %v2502, %v2501
    %2519 = vmatprep.subr.bf16.mxu0 0
    %2520 = vmatpush1.bf16.msra.mxu0 %v2510
    %2521 = vmatprep.subr.bf16.mxu0 0
    %2522 = vmatpush1.bf16.msra.mxu0 %v2509
    %2523 = vmatprep.subr.bf16.mxu0 0
    %2524 = vmatpush1.bf16.msra.mxu0 %v2508
    %2525 = vmatprep.subr.bf16.mxu0 0
    %2526 = vmatpush1.bf16.msra.mxu0 %v2507
    %2527 = vmatprep.subr.bf16.mxu0 0
    %2528 = vmatpush1.bf16.msra.mxu0 %v2506
    %2529 = vmatprep.subr.bf16.mxu0 0
    %2530 = vmatpush1.bf16.msra.mxu0 %v2505
    %2531 = vmatprep.subr.bf16.mxu0 0
    %2532 = vmatpush1.bf16.msra.mxu0 %v2504
    %2533 = vmatprep.subr.bf16.mxu0 0
    %2534 = vmatpush1.bf16.msra.mxu0 %v2503
    %2535 = vmatprep.subr.bf16.mxu0 0
    %2536 = vmatpush2.bf16.msra.mxu0 0
    %2537 = vmatprep.subr.bf16.mxu0 0
    %2538 = vmatpush2.bf16.msra.mxu0 0
    %2539 = vmatprep.subr.bf16.mxu0 0
    %2540 = vmatpush2.bf16.msra.mxu0 0
    %2541 = vmatprep.subr.bf16.mxu0 0
    %2542 = vmatpush2.bf16.msra.mxu0 0
    %2543 = vmatprep.subr.bf16.mxu0 0
    %2544 = vmatpush2.bf16.msra.mxu0 0
    %2545 = vmatprep.subr.bf16.mxu0 0
    %2546 = vmatpush2.bf16.msra.mxu0 0
    %2547 = vmatprep.subr.bf16.mxu0 0
    %2548 = vmatpush2.bf16.msra.mxu0 0
    %2549 = vmatprep.subr.bf16.mxu0 0
    %2550 = vmatpush2.bf16.msra.mxu0 0
    %2551 = vmatprep.mubr.bf16.mxu0 0
    %2552 = vmatmul.mubr.bf16.gmra.mxu0 %v2447
    %v2553 = vpop.f32.mrf.mxu0
    %v2554 = vadd.f32 %v2469, %v2553
    %v2555 = vpop.f32.mrf.mxu0
    %v2556 = vpop.f32.mrf.mxu0
    %v2557 = vadd.f32 %v2469, %v2556
    %v2558 = vpop.f32.mrf.mxu0
    %2559 = vdwg.mxu0
    %v2560 = vmax.f32 %v2554, 0.0
    %v2561 = vmax.f32 %v2557, 0.0
    %s2562 = scalar_lea.vmem [#allocation5], 832
    %v2563 = vld [vmem:[%s2562] sm:$0xf]
    %v2564 = vld [vmem:[%s2562 + $0x4] sm:$0xf]
    %v2565 = vld [vmem:[%s2562 + $0x8] sm:$0xf]
    %v2566 = vld [vmem:[%s2562 + $0xc] sm:$0xf]
    %v2567 = vld [vmem:[%s2562 + $0x10] sm:$0xf]
    %v2568 = vld [vmem:[%s2562 + $0x14] sm:$0xf]
    %v2569 = vld [vmem:[%s2562 + $0x18] sm:$0xf]
    %v2570 = vld [vmem:[%s2562 + $0x1c] sm:$0xf]
    %v2571 = vld [vmem:[%s2562 + $0x20] sm:$0xf]
    %v2572 = vld [vmem:[%s2562 + $0x24] sm:$0xf]
    %v2573 = vld [vmem:[%s2562 + $0x28] sm:$0xf]
    %v2574 = vld [vmem:[%s2562 + $0x2c] sm:$0xf]
    %v2575 = vld [vmem:[%s2562 + $0x30] sm:$0xf]
    %v2576 = vld [vmem:[%s2562 + $0x34] sm:$0xf]
    %v2577 = vld [vmem:[%s2562 + $0x38] sm:$0xf]
    %v2578 = vld [vmem:[%s2562 + $0x3c] sm:$0xf]
    %s2579 = scalar_lea.vmem [#allocation7], 13
    %v2580 = vld [vmem:[%s2579] sm:$0x1]
    %v2582 = vlaneseq
    %v2583 = vshrl.u32 %v2582, 7
    %v2584 = vsub.s32 0, %v2583
    %v2585 = vrot.slane %v2580, %v2584
    %v2603 = vunpack.c.l.b16 %v2563
    %v2604 = vunpack.c.l.b16 %v2564
    %v2605 = vunpack.c.l.b16 %v2565
    %v2606 = vunpack.c.l.b16 %v2566
    %v2607 = vunpack.c.l.b16 %v2567
    %v2608 = vunpack.c.l.b16 %v2568
    %v2609 = vunpack.c.l.b16 %v2569
    %v2610 = vunpack.c.l.b16 %v2570
    %v2611 = vunpack.c.l.b16 %v2571
    %v2612 = vunpack.c.l.b16 %v2572
    %v2613 = vunpack.c.l.b16 %v2573
    %v2614 = vunpack.c.l.b16 %v2574
    %v2615 = vunpack.c.l.b16 %v2575
    %v2616 = vunpack.c.l.b16 %v2576
    %v2617 = vunpack.c.l.b16 %v2577
    %v2618 = vunpack.c.l.b16 %v2578
    %v2619 = vpack.c.b16 %v2604, %v2603
    %v2620 = vpack.c.b16 %v2606, %v2605
    %v2621 = vpack.c.b16 %v2608, %v2607
    %v2622 = vpack.c.b16 %v2610, %v2609
    %v2623 = vpack.c.b16 %v2612, %v2611
    %v2624 = vpack.c.b16 %v2614, %v2613
    %v2625 = vpack.c.b16 %v2616, %v2615
    %v2626 = vpack.c.b16 %v2618, %v2617
    %2635 = vmatprep.subr.bf16.mxu0 0
    %2636 = vmatpush1.bf16.msra.mxu0 %v2626
    %2637 = vmatprep.subr.bf16.mxu0 0
    %2638 = vmatpush1.bf16.msra.mxu0 %v2625
    %2639 = vmatprep.subr.bf16.mxu0 0
    %2640 = vmatpush1.bf16.msra.mxu0 %v2624
    %2641 = vmatprep.subr.bf16.mxu0 0
    %2642 = vmatpush1.bf16.msra.mxu0 %v2623
    %2643 = vmatprep.subr.bf16.mxu0 0
    %2644 = vmatpush1.bf16.msra.mxu0 %v2622
    %2645 = vmatprep.subr.bf16.mxu0 0
    %2646 = vmatpush1.bf16.msra.mxu0 %v2621
    %2647 = vmatprep.subr.bf16.mxu0 0
    %2648 = vmatpush1.bf16.msra.mxu0 %v2620
    %2649 = vmatprep.subr.bf16.mxu0 0
    %2650 = vmatpush1.bf16.msra.mxu0 %v2619
    %2651 = vmatprep.subr.bf16.mxu0 0
    %2652 = vmatpush2.bf16.msra.mxu0 0
    %2653 = vmatprep.subr.bf16.mxu0 0
    %2654 = vmatpush2.bf16.msra.mxu0 0
    %2655 = vmatprep.subr.bf16.mxu0 0
    %2656 = vmatpush2.bf16.msra.mxu0 0
    %2657 = vmatprep.subr.bf16.mxu0 0
    %2658 = vmatpush2.bf16.msra.mxu0 0
    %2659 = vmatprep.subr.bf16.mxu0 0
    %2660 = vmatpush2.bf16.msra.mxu0 0
    %2661 = vmatprep.subr.bf16.mxu0 0
    %2662 = vmatpush2.bf16.msra.mxu0 0
    %2663 = vmatprep.subr.bf16.mxu0 0
    %2664 = vmatpush2.bf16.msra.mxu0 0
    %2665 = vmatprep.subr.bf16.mxu0 0
    %2666 = vmatpush2.bf16.msra.mxu0 0
    %2667 = vmatprep.mubr.bf16.mxu0 0
    %2668 = vmatmul.mubr.bf16.gmra.mxu0 %v2235
    %v2669 = vpop.f32.mrf.mxu0
    %v2670 = vadd.f32 %v2585, %v2669
    %v2671 = vpop.f32.mrf.mxu0
    %v2672 = vpop.f32.mrf.mxu0
    %v2673 = vadd.f32 %v2585, %v2672
    %v2674 = vpop.f32.mrf.mxu0
    %2675 = vdwg.mxu0
    %s2676 = scalar_lea.vmem [#allocation5], 896
    %v2677 = vld [vmem:[%s2676] sm:$0xf]
    %v2678 = vld [vmem:[%s2676 + $0x4] sm:$0xf]
    %v2679 = vld [vmem:[%s2676 + $0x8] sm:$0xf]
    %v2680 = vld [vmem:[%s2676 + $0xc] sm:$0xf]
    %v2681 = vld [vmem:[%s2676 + $0x10] sm:$0xf]
    %v2682 = vld [vmem:[%s2676 + $0x14] sm:$0xf]
    %v2683 = vld [vmem:[%s2676 + $0x18] sm:$0xf]
    %v2684 = vld [vmem:[%s2676 + $0x1c] sm:$0xf]
    %v2685 = vld [vmem:[%s2676 + $0x20] sm:$0xf]
    %v2686 = vld [vmem:[%s2676 + $0x24] sm:$0xf]
    %v2687 = vld [vmem:[%s2676 + $0x28] sm:$0xf]
    %v2688 = vld [vmem:[%s2676 + $0x2c] sm:$0xf]
    %v2689 = vld [vmem:[%s2676 + $0x30] sm:$0xf]
    %v2690 = vld [vmem:[%s2676 + $0x34] sm:$0xf]
    %v2691 = vld [vmem:[%s2676 + $0x38] sm:$0xf]
    %v2692 = vld [vmem:[%s2676 + $0x3c] sm:$0xf]
    %s2693 = scalar_lea.vmem [#allocation7], 14
    %v2694 = vld [vmem:[%s2693] sm:$0x1]
    %v2696 = vlaneseq
    %v2697 = vshrl.u32 %v2696, 7
    %v2698 = vsub.s32 0, %v2697
    %v2699 = vrot.slane %v2694, %v2698
    %v2717 = vunpack.c.l.b16 %v2677
    %v2718 = vunpack.c.l.b16 %v2678
    %v2719 = vunpack.c.l.b16 %v2679
    %v2720 = vunpack.c.l.b16 %v2680
    %v2721 = vunpack.c.l.b16 %v2681
    %v2722 = vunpack.c.l.b16 %v2682
    %v2723 = vunpack.c.l.b16 %v2683
    %v2724 = vunpack.c.l.b16 %v2684
    %v2725 = vunpack.c.l.b16 %v2685
    %v2726 = vunpack.c.l.b16 %v2686
    %v2727 = vunpack.c.l.b16 %v2687
    %v2728 = vunpack.c.l.b16 %v2688
    %v2729 = vunpack.c.l.b16 %v2689
    %v2730 = vunpack.c.l.b16 %v2690
    %v2731 = vunpack.c.l.b16 %v2691
    %v2732 = vunpack.c.l.b16 %v2692
    %v2733 = vpack.c.b16 %v2718, %v2717
    %v2734 = vpack.c.b16 %v2720, %v2719
    %v2735 = vpack.c.b16 %v2722, %v2721
    %v2736 = vpack.c.b16 %v2724, %v2723
    %v2737 = vpack.c.b16 %v2726, %v2725
    %v2738 = vpack.c.b16 %v2728, %v2727
    %v2739 = vpack.c.b16 %v2730, %v2729
    %v2740 = vpack.c.b16 %v2732, %v2731
    %2749 = vmatprep.subr.bf16.mxu0 0
    %2750 = vmatpush1.bf16.msra.mxu0 %v2740
    %2751 = vmatprep.subr.bf16.mxu0 0
    %2752 = vmatpush1.bf16.msra.mxu0 %v2739
    %2753 = vmatprep.subr.bf16.mxu0 0
    %2754 = vmatpush1.bf16.msra.mxu0 %v2738
    %2755 = vmatprep.subr.bf16.mxu0 0
    %2756 = vmatpush1.bf16.msra.mxu0 %v2737
    %2757 = vmatprep.subr.bf16.mxu0 0
    %2758 = vmatpush1.bf16.msra.mxu0 %v2736
    %2759 = vmatprep.subr.bf16.mxu0 0
    %2760 = vmatpush1.bf16.msra.mxu0 %v2735
    %2761 = vmatprep.subr.bf16.mxu0 0
    %2762 = vmatpush1.bf16.msra.mxu0 %v2734
    %2763 = vmatprep.subr.bf16.mxu0 0
    %2764 = vmatpush1.bf16.msra.mxu0 %v2733
    %2765 = vmatprep.subr.bf16.mxu0 0
    %2766 = vmatpush2.bf16.msra.mxu0 0
    %2767 = vmatprep.subr.bf16.mxu0 0
    %2768 = vmatpush2.bf16.msra.mxu0 0
    %2769 = vmatprep.subr.bf16.mxu0 0
    %2770 = vmatpush2.bf16.msra.mxu0 0
    %2771 = vmatprep.subr.bf16.mxu0 0
    %2772 = vmatpush2.bf16.msra.mxu0 0
    %2773 = vmatprep.subr.bf16.mxu0 0
    %2774 = vmatpush2.bf16.msra.mxu0 0
    %2775 = vmatprep.subr.bf16.mxu0 0
    %2776 = vmatpush2.bf16.msra.mxu0 0
    %2777 = vmatprep.subr.bf16.mxu0 0
    %2778 = vmatpush2.bf16.msra.mxu0 0
    %2779 = vmatprep.subr.bf16.mxu0 0
    %2780 = vmatpush2.bf16.msra.mxu0 0
    %2781 = vmatprep.mubr.bf16.mxu0 0
    %2782 = vmatmul.mubr.bf16.gmra.mxu0 %v2235
    %v2783 = vpop.f32.mrf.mxu0
    %v2784 = vadd.f32 %v2699, %v2783
    %v2785 = vpop.f32.mrf.mxu0
    %v2786 = vpop.f32.mrf.mxu0
    %v2787 = vadd.f32 %v2699, %v2786
    %v2788 = vpop.f32.mrf.mxu0
    %2789 = vdwg.mxu0
    %s2790 = scalar_lea.vmem [#allocation5], 960
    %v2791 = vld [vmem:[%s2790] sm:$0xf]
    %v2792 = vld [vmem:[%s2790 + $0x4] sm:$0xf]
    %v2793 = vld [vmem:[%s2790 + $0x8] sm:$0xf]
    %v2794 = vld [vmem:[%s2790 + $0xc] sm:$0xf]
    %v2795 = vld [vmem:[%s2790 + $0x10] sm:$0xf]
    %v2796 = vld [vmem:[%s2790 + $0x14] sm:$0xf]
    %v2797 = vld [vmem:[%s2790 + $0x18] sm:$0xf]
    %v2798 = vld [vmem:[%s2790 + $0x1c] sm:$0xf]
    %v2799 = vld [vmem:[%s2790 + $0x20] sm:$0xf]
    %v2800 = vld [vmem:[%s2790 + $0x24] sm:$0xf]
    %v2801 = vld [vmem:[%s2790 + $0x28] sm:$0xf]
    %v2802 = vld [vmem:[%s2790 + $0x2c] sm:$0xf]
    %v2803 = vld [vmem:[%s2790 + $0x30] sm:$0xf]
    %v2804 = vld [vmem:[%s2790 + $0x34] sm:$0xf]
    %v2805 = vld [vmem:[%s2790 + $0x38] sm:$0xf]
    %v2806 = vld [vmem:[%s2790 + $0x3c] sm:$0xf]
    %s2807 = scalar_lea.vmem [#allocation7], 15
    %v2808 = vld [vmem:[%s2807] sm:$0x1]
    %v2810 = vlaneseq
    %v2811 = vshrl.u32 %v2810, 7
    %v2812 = vsub.s32 0, %v2811
    %v2813 = vrot.slane %v2808, %v2812
    %v2831 = vunpack.c.l.b16 %v2791
    %v2832 = vunpack.c.l.b16 %v2792
    %v2833 = vunpack.c.l.b16 %v2793
    %v2834 = vunpack.c.l.b16 %v2794
    %v2835 = vunpack.c.l.b16 %v2795
    %v2836 = vunpack.c.l.b16 %v2796
    %v2837 = vunpack.c.l.b16 %v2797
    %v2838 = vunpack.c.l.b16 %v2798
    %v2839 = vunpack.c.l.b16 %v2799
    %v2840 = vunpack.c.l.b16 %v2800
    %v2841 = vunpack.c.l.b16 %v2801
    %v2842 = vunpack.c.l.b16 %v2802
    %v2843 = vunpack.c.l.b16 %v2803
    %v2844 = vunpack.c.l.b16 %v2804
    %v2845 = vunpack.c.l.b16 %v2805
    %v2846 = vunpack.c.l.b16 %v2806
    %v2847 = vpack.c.b16 %v2832, %v2831
    %v2848 = vpack.c.b16 %v2834, %v2833
    %v2849 = vpack.c.b16 %v2836, %v2835
    %v2850 = vpack.c.b16 %v2838, %v2837
    %v2851 = vpack.c.b16 %v2840, %v2839
    %v2852 = vpack.c.b16 %v2842, %v2841
    %v2853 = vpack.c.b16 %v2844, %v2843
    %v2854 = vpack.c.b16 %v2846, %v2845
    %2863 = vmatprep.subr.bf16.mxu0 0
    %2864 = vmatpush1.bf16.msra.mxu0 %v2854
    %2865 = vmatprep.subr.bf16.mxu0 0
    %2866 = vmatpush1.bf16.msra.mxu0 %v2853
    %2867 = vmatprep.subr.bf16.mxu0 0
    %2868 = vmatpush1.bf16.msra.mxu0 %v2852
    %2869 = vmatprep.subr.bf16.mxu0 0
    %2870 = vmatpush1.bf16.msra.mxu0 %v2851
    %2871 = vmatprep.subr.bf16.mxu0 0
    %2872 = vmatpush1.bf16.msra.mxu0 %v2850
    %2873 = vmatprep.subr.bf16.mxu0 0
    %2874 = vmatpush1.bf16.msra.mxu0 %v2849
    %2875 = vmatprep.subr.bf16.mxu0 0
    %2876 = vmatpush1.bf16.msra.mxu0 %v2848
    %2877 = vmatprep.subr.bf16.mxu0 0
    %2878 = vmatpush1.bf16.msra.mxu0 %v2847
    %2879 = vmatprep.subr.bf16.mxu0 0
    %2880 = vmatpush2.bf16.msra.mxu0 0
    %2881 = vmatprep.subr.bf16.mxu0 0
    %2882 = vmatpush2.bf16.msra.mxu0 0
    %2883 = vmatprep.subr.bf16.mxu0 0
    %2884 = vmatpush2.bf16.msra.mxu0 0
    %2885 = vmatprep.subr.bf16.mxu0 0
    %2886 = vmatpush2.bf16.msra.mxu0 0
    %2887 = vmatprep.subr.bf16.mxu0 0
    %2888 = vmatpush2.bf16.msra.mxu0 0
    %2889 = vmatprep.subr.bf16.mxu0 0
    %2890 = vmatpush2.bf16.msra.mxu0 0
    %2891 = vmatprep.subr.bf16.mxu0 0
    %2892 = vmatpush2.bf16.msra.mxu0 0
    %2893 = vmatprep.subr.bf16.mxu0 0
    %2894 = vmatpush2.bf16.msra.mxu0 0
    %2895 = vmatprep.mubr.bf16.mxu0 0
    %2896 = vmatmul.mubr.bf16.gmra.mxu0 %v2235
    %v2897 = vpop.f32.mrf.mxu0
    %v2898 = vadd.f32 %v2813, %v2897
    %v2899 = vpop.f32.mrf.mxu0
    %v2900 = vpop.f32.mrf.mxu0
    %v2901 = vadd.f32 %v2813, %v2900
    %v2902 = vpop.f32.mrf.mxu0
    %2903 = vdwg.mxu0
    %s2904 = scalar_lea.vmem [#allocation5], 1024
    %v2905 = vld [vmem:[%s2904] sm:$0xf]
    %v2906 = vld [vmem:[%s2904 + $0x4] sm:$0xf]
    %v2907 = vld [vmem:[%s2904 + $0x8] sm:$0xf]
    %v2908 = vld [vmem:[%s2904 + $0xc] sm:$0xf]
    %v2909 = vpack.c.bf16 %v2673, %v2670
    %v2911 = vunpack.c.l.b16 %v2909
    %v2912 = vunpack.c.h.b16 %v2909
    %v2913 = vpack.c.b16 %v2911, %v2911
    %v2914 = vpack.c.b16 %v2912, %v2912
    %v2915 = vpack.c.bf16 %v2787, %v2784
    %v2917 = vunpack.c.l.b16 %v2915
    %v2918 = vunpack.c.h.b16 %v2915
    %v2919 = vpack.c.b16 %v2917, %v2917
    %v2920 = vpack.c.b16 %v2918, %v2918
    %v2921 = vpack.c.bf16 %v2901, %v2898
    %v2923 = vunpack.c.l.b16 %v2921
    %v2924 = vunpack.c.h.b16 %v2921
    %v2925 = vpack.c.b16 %v2923, %v2923
    %v2926 = vpack.c.b16 %v2924, %v2924
    %v2928 = vsel %vm737, %v2913, 0
    %v2931 = vsel %vm737, %v2919, 0
    %2933 = vmatprep.subr.bf16.mxu0 0
    %2934 = vmatpush1.bf16.xpose.msra.mxu0 0
    %2935 = vmatprep.subr.bf16.mxu0 0
    %2936 = vmatpush1.bf16.xpose.msra.mxu0 0
    %2937 = vmatprep.subr.bf16.mxu0 0
    %2938 = vmatpush1.bf16.xpose.msra.mxu0 0
    %2939 = vmatprep.subr.bf16.mxu0 0
    %2940 = vmatpush1.bf16.xpose.msra.mxu0 0
    %2941 = vmatprep.subr.bf16.mxu0 0
    %2942 = vmatpush1.bf16.xpose.msra.mxu0 0
    %2943 = vmatprep.subr.bf16.mxu0 0
    %2944 = vmatpush1.bf16.xpose.msra.mxu0 0
    %2945 = vmatprep.subr.bf16.mxu0 0
    %2946 = vmatpush1.bf16.xpose.msra.mxu0 0
    %2947 = vmatprep.subr.bf16.mxu0 0
    %2948 = vmatpush1.bf16.xpose.msra.mxu0 %v2931
    %2949 = vmatprep.subr.bf16.mxu0 0
    %2950 = vmatpush2.bf16.xpose.msra.mxu0 0
    %2951 = vmatprep.subr.bf16.mxu0 0
    %2952 = vmatpush2.bf16.xpose.msra.mxu0 0
    %2953 = vmatprep.subr.bf16.mxu0 0
    %2954 = vmatpush2.bf16.xpose.msra.mxu0 0
    %2955 = vmatprep.subr.bf16.mxu0 0
    %2956 = vmatpush2.bf16.xpose.msra.mxu0 0
    %2957 = vmatprep.subr.bf16.mxu0 0
    %2958 = vmatpush2.bf16.xpose.msra.mxu0 0
    %2959 = vmatprep.subr.bf16.mxu0 0
    %2960 = vmatpush2.bf16.xpose.msra.mxu0 0
    %2961 = vmatprep.subr.bf16.mxu0 0
    %2962 = vmatpush2.bf16.xpose.msra.mxu0 0
    %2963 = vmatprep.subr.bf16.mxu0 0
    %2964 = vmatpush2.bf16.xpose.msra.mxu0 0
    %2965 = vmatprep.mubr.bf16.mxu0 0
    %2966 = vmatmul.mubr.bf16.gmra.mxu0 %v2928
    %v2967 = vpop.f32.mrf.mxu0
    %v2968 = vadd.f32 0.0, %v2967
    %v2969 = vpop.f32.mrf.mxu0
    %v2970 = vpop.f32.mrf.mxu0
    %v2971 = vpop.f32.mrf.mxu0
    %2972 = vdwg.mxu0
    %v2974 = vsel %vm737, %v2914, 0
    %v2977 = vsel %vm737, %v2920, 0
    %2979 = vmatprep.subr.bf16.mxu0 0
    %2980 = vmatpush1.bf16.xpose.msra.mxu0 0
    %2981 = vmatprep.subr.bf16.mxu0 0
    %2982 = vmatpush1.bf16.xpose.msra.mxu0 0
    %2983 = vmatprep.subr.bf16.mxu0 0
    %2984 = vmatpush1.bf16.xpose.msra.mxu0 0
    %2985 = vmatprep.subr.bf16.mxu0 0
    %2986 = vmatpush1.bf16.xpose.msra.mxu0 0
    %2987 = vmatprep.subr.bf16.mxu0 0
    %2988 = vmatpush1.bf16.xpose.msra.mxu0 0
    %2989 = vmatprep.subr.bf16.mxu0 0
    %2990 = vmatpush1.bf16.xpose.msra.mxu0 0
    %2991 = vmatprep.subr.bf16.mxu0 0
    %2992 = vmatpush1.bf16.xpose.msra.mxu0 0
    %2993 = vmatprep.subr.bf16.mxu0 0
    %2994 = vmatpush1.bf16.xpose.msra.mxu0 %v2977
    %2995 = vmatprep.subr.bf16.mxu0 0
    %2996 = vmatpush2.bf16.xpose.msra.mxu0 0
    %2997 = vmatprep.subr.bf16.mxu0 0
    %2998 = vmatpush2.bf16.xpose.msra.mxu0 0
    %2999 = vmatprep.subr.bf16.mxu0 0
    %3000 = vmatpush2.bf16.xpose.msra.mxu0 0
    %3001 = vmatprep.subr.bf16.mxu0 0
    %3002 = vmatpush2.bf16.xpose.msra.mxu0 0
    %3003 = vmatprep.subr.bf16.mxu0 0
    %3004 = vmatpush2.bf16.xpose.msra.mxu0 0
    %3005 = vmatprep.subr.bf16.mxu0 0
    %3006 = vmatpush2.bf16.xpose.msra.mxu0 0
    %3007 = vmatprep.subr.bf16.mxu0 0
    %3008 = vmatpush2.bf16.xpose.msra.mxu0 0
    %3009 = vmatprep.subr.bf16.mxu0 0
    %3010 = vmatpush2.bf16.xpose.msra.mxu0 0
    %3011 = vmatprep.mubr.bf16.mxu0 0
    %3012 = vmatmul.mubr.bf16.gmra.mxu0 %v2974
    %v3013 = vpop.f32.mrf.mxu0
    %v3014 = vadd.f32 0.0, %v3013
    %v3015 = vpop.f32.mrf.mxu0
    %v3016 = vpop.f32.mrf.mxu0
    %v3017 = vpop.f32.mrf.mxu0
    %3018 = vdwg.mxu0
    %v3019 = vmul.f32 %v2968, 0.25
    %v3020 = vmul.f32 %v3014, 0.25
    %v3021 = vsel %vm1537, %v3019, -inf
    %3022 = vmax.xlane.f32.xlu0 %v3021
    %v3023 = vpop.xlane.xlu0 %3022
    %v3024 = vsel %vm1537, %v3020, -inf
    %3025 = vmax.xlane.f32.xlu0 %v3024
    %v3026 = vpop.xlane.xlu0 %3025
    %v3027 = vsub.f32 %v3019, %v3023
    %v3028 = vsub.f32 %v3020, %v3026
    %v3029 = vmul.f32 %v3027, 1.442695
    %v3030 = vpow.pop %v3029
    %v3031 = vmul.f32 %v3028, 1.442695
    %v3032 = vpow.pop %v3031
    %v3033 = vsel %vm1537, %v3030, 0.0
    %3034 = vadd.xlane.f32.xlu0 %v3033
    %v3035 = vpop.xlane.xlu0 %3034
    %v3036 = vsel %vm1537, %v3032, 0.0
    %3037 = vadd.xlane.f32.xlu0 %v3036
    %v3038 = vpop.xlane.xlu0 %3037
    %v3039 = vrcp.pop %v3035
    %v3040 = vrcp.pop %v3038
    %v3041 = vmul.f32 %v3030, %v3039
    %v3042 = vmul.f32 %v3032, %v3040
    %v3043 = vpack.c.bf16 %v3041, %v3041
    %v3044 = vpack.c.bf16 %v3042, %v3042
    %v3046 = vsel %vm1537, %v3043, 0
    %v3049 = vsel %vm1565, %v2925, 0
    %3051 = vmatprep.subr.bf16.mxu0 0
    %3052 = vmatpush1.bf16.msra.mxu0 0
    %3053 = vmatprep.subr.bf16.mxu0 0
    %3054 = vmatpush1.bf16.msra.mxu0 0
    %3055 = vmatprep.subr.bf16.mxu0 0
    %3056 = vmatpush1.bf16.msra.mxu0 0
    %3057 = vmatprep.subr.bf16.mxu0 0
    %3058 = vmatpush1.bf16.msra.mxu0 0
    %3059 = vmatprep.subr.bf16.mxu0 0
    %3060 = vmatpush1.bf16.msra.mxu0 0
    %3061 = vmatprep.subr.bf16.mxu0 0
    %3062 = vmatpush1.bf16.msra.mxu0 0
    %3063 = vmatprep.subr.bf16.mxu0 0
    %3064 = vmatpush1.bf16.msra.mxu0 0
    %3065 = vmatprep.subr.bf16.mxu0 0
    %3066 = vmatpush1.bf16.msra.mxu0 %v3049
    %3067 = vmatprep.subr.bf16.mxu0 0
    %3068 = vmatpush2.bf16.msra.mxu0 0
    %3069 = vmatprep.subr.bf16.mxu0 0
    %3070 = vmatpush2.bf16.msra.mxu0 0
    %3071 = vmatprep.subr.bf16.mxu0 0
    %3072 = vmatpush2.bf16.msra.mxu0 0
    %3073 = vmatprep.subr.bf16.mxu0 0
    %3074 = vmatpush2.bf16.msra.mxu0 0
    %3075 = vmatprep.subr.bf16.mxu0 0
    %3076 = vmatpush2.bf16.msra.mxu0 0
    %3077 = vmatprep.subr.bf16.mxu0 0
    %3078 = vmatpush2.bf16.msra.mxu0 0
    %3079 = vmatprep.subr.bf16.mxu0 0
    %3080 = vmatpush2.bf16.msra.mxu0 0
    %3081 = vmatprep.subr.bf16.mxu0 0
    %3082 = vmatpush2.bf16.msra.mxu0 0
    %3083 = vmatprep.mubr.bf16.mxu0 0
    %3084 = vmatmul.mubr.bf16.gmra.mxu0 %v3046
    %v3085 = vpop.f32.mrf.mxu0
    %v3086 = vadd.f32 0.0, %v3085
    %v3087 = vpop.f32.mrf.mxu0
    %v3088 = vpop.f32.mrf.mxu0
    %v3089 = vpop.f32.mrf.mxu0
    %3090 = vdwg.mxu0
    %v3092 = vsel %vm1537, %v3044, 0
    %v3095 = vsel %vm1565, %v2926, 0
    %3097 = vmatprep.subr.bf16.mxu0 0
    %3098 = vmatpush1.bf16.msra.mxu0 0
    %3099 = vmatprep.subr.bf16.mxu0 0
    %3100 = vmatpush1.bf16.msra.mxu0 0
    %3101 = vmatprep.subr.bf16.mxu0 0
    %3102 = vmatpush1.bf16.msra.mxu0 0
    %3103 = vmatprep.subr.bf16.mxu0 0
    %3104 = vmatpush1.bf16.msra.mxu0 0
    %3105 = vmatprep.subr.bf16.mxu0 0
    %3106 = vmatpush1.bf16.msra.mxu0 0
    %3107 = vmatprep.subr.bf16.mxu0 0
    %3108 = vmatpush1.bf16.msra.mxu0 0
    %3109 = vmatprep.subr.bf16.mxu0 0
    %3110 = vmatpush1.bf16.msra.mxu0 0
    %3111 = vmatprep.subr.bf16.mxu0 0
    %3112 = vmatpush1.bf16.msra.mxu0 %v3095
    %3113 = vmatprep.subr.bf16.mxu0 0
    %3114 = vmatpush2.bf16.msra.mxu0 0
    %3115 = vmatprep.subr.bf16.mxu0 0
    %3116 = vmatpush2.bf16.msra.mxu0 0
    %3117 = vmatprep.subr.bf16.mxu0 0
    %3118 = vmatpush2.bf16.msra.mxu0 0
    %3119 = vmatprep.subr.bf16.mxu0 0
    %3120 = vmatpush2.bf16.msra.mxu0 0
    %3121 = vmatprep.subr.bf16.mxu0 0
    %3122 = vmatpush2.bf16.msra.mxu0 0
    %3123 = vmatprep.subr.bf16.mxu0 0
    %3124 = vmatpush2.bf16.msra.mxu0 0
    %3125 = vmatprep.subr.bf16.mxu0 0
    %3126 = vmatpush2.bf16.msra.mxu0 0
    %3127 = vmatprep.subr.bf16.mxu0 0
    %3128 = vmatpush2.bf16.msra.mxu0 0
    %3129 = vmatprep.mubr.bf16.mxu0 0
    %3130 = vmatmul.mubr.bf16.gmra.mxu0 %v3092
    %v3131 = vpop.f32.mrf.mxu0
    %v3132 = vadd.f32 0.0, %v3131
    %v3133 = vpop.f32.mrf.mxu0
    %v3134 = vpop.f32.mrf.mxu0
    %v3135 = vpop.f32.mrf.mxu0
    %3136 = vdwg.mxu0
    %v3137 = vpack.c.bf16 %v3132, %v3086
    %3138 = vrot.lane.b32.xlu0 %v2913, 112
    %v3139 = vpop.permute.xlu0 %3138
    %3140 = vrot.lane.b32.xlu0 %v2919, 112
    %v3141 = vpop.permute.xlu0 %3140
    %v3143 = vsel %vm737, %v3139, 0
    %v3146 = vsel %vm737, %v3141, 0
    %3148 = vmatprep.subr.bf16.mxu0 0
    %3149 = vmatpush1.bf16.xpose.msra.mxu0 0
    %3150 = vmatprep.subr.bf16.mxu0 0
    %3151 = vmatpush1.bf16.xpose.msra.mxu0 0
    %3152 = vmatprep.subr.bf16.mxu0 0
    %3153 = vmatpush1.bf16.xpose.msra.mxu0 0
    %3154 = vmatprep.subr.bf16.mxu0 0
    %3155 = vmatpush1.bf16.xpose.msra.mxu0 0
    %3156 = vmatprep.subr.bf16.mxu0 0
    %3157 = vmatpush1.bf16.xpose.msra.mxu0 0
    %3158 = vmatprep.subr.bf16.mxu0 0
    %3159 = vmatpush1.bf16.xpose.msra.mxu0 0
    %3160 = vmatprep.subr.bf16.mxu0 0
    %3161 = vmatpush1.bf16.xpose.msra.mxu0 0
    %3162 = vmatprep.subr.bf16.mxu0 0
    %3163 = vmatpush1.bf16.xpose.msra.mxu0 %v3146
    %3164 = vmatprep.subr.bf16.mxu0 0
    %3165 = vmatpush2.bf16.xpose.msra.mxu0 0
    %3166 = vmatprep.subr.bf16.mxu0 0
    %3167 = vmatpush2.bf16.xpose.msra.mxu0 0
    %3168 = vmatprep.subr.bf16.mxu0 0
    %3169 = vmatpush2.bf16.xpose.msra.mxu0 0
    %3170 = vmatprep.subr.bf16.mxu0 0
    %3171 = vmatpush2.bf16.xpose.msra.mxu0 0
    %3172 = vmatprep.subr.bf16.mxu0 0
    %3173 = vmatpush2.bf16.xpose.msra.mxu0 0
    %3174 = vmatprep.subr.bf16.mxu0 0
    %3175 = vmatpush2.bf16.xpose.msra.mxu0 0
    %3176 = vmatprep.subr.bf16.mxu0 0
    %3177 = vmatpush2.bf16.xpose.msra.mxu0 0
    %3178 = vmatprep.subr.bf16.mxu0 0
    %3179 = vmatpush2.bf16.xpose.msra.mxu0 0
    %3180 = vmatprep.mubr.bf16.mxu0 0
    %3181 = vmatmul.mubr.bf16.gmra.mxu0 %v3143
    %v3182 = vpop.f32.mrf.mxu0
    %v3183 = vadd.f32 0.0, %v3182
    %v3184 = vpop.f32.mrf.mxu0
    %v3185 = vpop.f32.mrf.mxu0
    %v3186 = vpop.f32.mrf.mxu0
    %3187 = vdwg.mxu0
    %3188 = vrot.lane.b32.xlu0 %v2914, 112
    %v3189 = vpop.permute.xlu0 %3188
    %3190 = vrot.lane.b32.xlu0 %v2920, 112
    %v3191 = vpop.permute.xlu0 %3190
    %v3193 = vsel %vm737, %v3189, 0
    %v3196 = vsel %vm737, %v3191, 0
    %3198 = vmatprep.subr.bf16.mxu0 0
    %3199 = vmatpush1.bf16.xpose.msra.mxu0 0
    %3200 = vmatprep.subr.bf16.mxu0 0
    %3201 = vmatpush1.bf16.xpose.msra.mxu0 0
    %3202 = vmatprep.subr.bf16.mxu0 0
    %3203 = vmatpush1.bf16.xpose.msra.mxu0 0
    %3204 = vmatprep.subr.bf16.mxu0 0
    %3205 = vmatpush1.bf16.xpose.msra.mxu0 0
    %3206 = vmatprep.subr.bf16.mxu0 0
    %3207 = vmatpush1.bf16.xpose.msra.mxu0 0
    %3208 = vmatprep.subr.bf16.mxu0 0
    %3209 = vmatpush1.bf16.xpose.msra.mxu0 0
    %3210 = vmatprep.subr.bf16.mxu0 0
    %3211 = vmatpush1.bf16.xpose.msra.mxu0 0
    %3212 = vmatprep.subr.bf16.mxu0 0
    %3213 = vmatpush1.bf16.xpose.msra.mxu0 %v3196
    %3214 = vmatprep.subr.bf16.mxu0 0
    %3215 = vmatpush2.bf16.xpose.msra.mxu0 0
    %3216 = vmatprep.subr.bf16.mxu0 0
    %3217 = vmatpush2.bf16.xpose.msra.mxu0 0
    %3218 = vmatprep.subr.bf16.mxu0 0
    %3219 = vmatpush2.bf16.xpose.msra.mxu0 0
    %3220 = vmatprep.subr.bf16.mxu0 0
    %3221 = vmatpush2.bf16.xpose.msra.mxu0 0
    %3222 = vmatprep.subr.bf16.mxu0 0
    %3223 = vmatpush2.bf16.xpose.msra.mxu0 0
    %3224 = vmatprep.subr.bf16.mxu0 0
    %3225 = vmatpush2.bf16.xpose.msra.mxu0 0
    %3226 = vmatprep.subr.bf16.mxu0 0
    %3227 = vmatpush2.bf16.xpose.msra.mxu0 0
    %3228 = vmatprep.subr.bf16.mxu0 0
    %3229 = vmatpush2.bf16.xpose.msra.mxu0 0
    %3230 = vmatprep.mubr.bf16.mxu0 0
    %3231 = vmatmul.mubr.bf16.gmra.mxu0 %v3193
    %v3232 = vpop.f32.mrf.mxu0
    %v3233 = vadd.f32 0.0, %v3232
    %v3234 = vpop.f32.mrf.mxu0
    %v3235 = vpop.f32.mrf.mxu0
    %v3236 = vpop.f32.mrf.mxu0
    %3237 = vdwg.mxu0
    %v3238 = vmul.f32 %v3183, 0.25
    %v3239 = vmul.f32 %v3233, 0.25
    %v3240 = vsel %vm1537, %v3238, -inf
    %3241 = vmax.xlane.f32.xlu0 %v3240
    %v3242 = vpop.xlane.xlu0 %3241
    %v3243 = vsel %vm1537, %v3239, -inf
    %3244 = vmax.xlane.f32.xlu0 %v3243
    %v3245 = vpop.xlane.xlu0 %3244
    %v3246 = vsub.f32 %v3238, %v3242
    %v3247 = vsub.f32 %v3239, %v3245
    %v3248 = vmul.f32 %v3246, 1.442695
    %v3249 = vpow.pop %v3248
    %v3250 = vmul.f32 %v3247, 1.442695
    %v3251 = vpow.pop %v3250
    %v3252 = vsel %vm1537, %v3249, 0.0
    %3253 = vadd.xlane.f32.xlu0 %v3252
    %v3254 = vpop.xlane.xlu0 %3253
    %v3255 = vsel %vm1537, %v3251, 0.0
    %3256 = vadd.xlane.f32.xlu0 %v3255
    %v3257 = vpop.xlane.xlu0 %3256
    %v3258 = vrcp.pop %v3254
    %v3259 = vrcp.pop %v3257
    %v3260 = vmul.f32 %v3249, %v3258
    %v3261 = vmul.f32 %v3251, %v3259
    %v3262 = vpack.c.bf16 %v3260, %v3260
    %v3263 = vpack.c.bf16 %v3261, %v3261
    %3264 = vrot.lane.b32.xlu0 %v2925, 112
    %v3265 = vpop.permute.xlu0 %3264
    %v3267 = vsel %vm1537, %v3262, 0
    %v3270 = vsel %vm1565, %v3265, 0
    %3272 = vmatprep.subr.bf16.mxu0 0
    %3273 = vmatpush1.bf16.msra.mxu0 0
    %3274 = vmatprep.subr.bf16.mxu0 0
    %3275 = vmatpush1.bf16.msra.mxu0 0
    %3276 = vmatprep.subr.bf16.mxu0 0
    %3277 = vmatpush1.bf16.msra.mxu0 0
    %3278 = vmatprep.subr.bf16.mxu0 0
    %3279 = vmatpush1.bf16.msra.mxu0 0
    %3280 = vmatprep.subr.bf16.mxu0 0
    %3281 = vmatpush1.bf16.msra.mxu0 0
    %3282 = vmatprep.subr.bf16.mxu0 0
    %3283 = vmatpush1.bf16.msra.mxu0 0
    %3284 = vmatprep.subr.bf16.mxu0 0
    %3285 = vmatpush1.bf16.msra.mxu0 0
    %3286 = vmatprep.subr.bf16.mxu0 0
    %3287 = vmatpush1.bf16.msra.mxu0 %v3270
    %3288 = vmatprep.subr.bf16.mxu0 0
    %3289 = vmatpush2.bf16.msra.mxu0 0
    %3290 = vmatprep.subr.bf16.mxu0 0
    %3291 = vmatpush2.bf16.msra.mxu0 0
    %3292 = vmatprep.subr.bf16.mxu0 0
    %3293 = vmatpush2.bf16.msra.mxu0 0
    %3294 = vmatprep.subr.bf16.mxu0 0
    %3295 = vmatpush2.bf16.msra.mxu0 0
    %3296 = vmatprep.subr.bf16.mxu0 0
    %3297 = vmatpush2.bf16.msra.mxu0 0
    %3298 = vmatprep.subr.bf16.mxu0 0
    %3299 = vmatpush2.bf16.msra.mxu0 0
    %3300 = vmatprep.subr.bf16.mxu0 0
    %3301 = vmatpush2.bf16.msra.mxu0 0
    %3302 = vmatprep.subr.bf16.mxu0 0
    %3303 = vmatpush2.bf16.msra.mxu0 0
    %3304 = vmatprep.mubr.bf16.mxu0 0
    %3305 = vmatmul.mubr.bf16.gmra.mxu0 %v3267
    %v3306 = vpop.f32.mrf.mxu0
    %v3307 = vadd.f32 0.0, %v3306
    %v3308 = vpop.f32.mrf.mxu0
    %v3309 = vpop.f32.mrf.mxu0
    %v3310 = vpop.f32.mrf.mxu0
    %3311 = vdwg.mxu0
    %3312 = vrot.lane.b32.xlu0 %v2926, 112
    %v3313 = vpop.permute.xlu0 %3312
    %v3315 = vsel %vm1537, %v3263, 0
    %v3318 = vsel %vm1565, %v3313, 0
    %3320 = vmatprep.subr.bf16.mxu0 0
    %3321 = vmatpush1.bf16.msra.mxu0 0
    %3322 = vmatprep.subr.bf16.mxu0 0
    %3323 = vmatpush1.bf16.msra.mxu0 0
    %3324 = vmatprep.subr.bf16.mxu0 0
    %3325 = vmatpush1.bf16.msra.mxu0 0
    %3326 = vmatprep.subr.bf16.mxu0 0
    %3327 = vmatpush1.bf16.msra.mxu0 0
    %3328 = vmatprep.subr.bf16.mxu0 0
    %3329 = vmatpush1.bf16.msra.mxu0 0
    %3330 = vmatprep.subr.bf16.mxu0 0
    %3331 = vmatpush1.bf16.msra.mxu0 0
    %3332 = vmatprep.subr.bf16.mxu0 0
    %3333 = vmatpush1.bf16.msra.mxu0 0
    %3334 = vmatprep.subr.bf16.mxu0 0
    %3335 = vmatpush1.bf16.msra.mxu0 %v3318
    %3336 = vmatprep.subr.bf16.mxu0 0
    %3337 = vmatpush2.bf16.msra.mxu0 0
    %3338 = vmatprep.subr.bf16.mxu0 0
    %3339 = vmatpush2.bf16.msra.mxu0 0
    %3340 = vmatprep.subr.bf16.mxu0 0
    %3341 = vmatpush2.bf16.msra.mxu0 0
    %3342 = vmatprep.subr.bf16.mxu0 0
    %3343 = vmatpush2.bf16.msra.mxu0 0
    %3344 = vmatprep.subr.bf16.mxu0 0
    %3345 = vmatpush2.bf16.msra.mxu0 0
    %3346 = vmatprep.subr.bf16.mxu0 0
    %3347 = vmatpush2.bf16.msra.mxu0 0
    %3348 = vmatprep.subr.bf16.mxu0 0
    %3349 = vmatpush2.bf16.msra.mxu0 0
    %3350 = vmatprep.subr.bf16.mxu0 0
    %3351 = vmatpush2.bf16.msra.mxu0 0
    %3352 = vmatprep.mubr.bf16.mxu0 0
    %3353 = vmatmul.mubr.bf16.gmra.mxu0 %v3315
    %v3354 = vpop.f32.mrf.mxu0
    %v3355 = vadd.f32 0.0, %v3354
    %v3356 = vpop.f32.mrf.mxu0
    %v3357 = vpop.f32.mrf.mxu0
    %v3358 = vpop.f32.mrf.mxu0
    %3359 = vdwg.mxu0
    %v3360 = vpack.c.bf16 %v3355, %v3307
    %v3363 = vunpack.c.l.b16 %v2907
    %v3364 = vunpack.c.l.b16 %v2908
    %v3365 = vpack.c.b16 %v3364, %v3363
    %v3368 = vsel %vm737, %v3360, 0
    %3370 = vmatprep.subr.bf16.mxu0 0
    %3371 = vmatpush1.bf16.msra.mxu0 0
    %3372 = vmatprep.subr.bf16.mxu0 0
    %3373 = vmatpush1.bf16.msra.mxu0 0
    %3374 = vmatprep.subr.bf16.mxu0 0
    %3375 = vmatpush1.bf16.msra.mxu0 0
    %3376 = vmatprep.subr.bf16.mxu0 0
    %3377 = vmatpush1.bf16.msra.mxu0 0
    %3378 = vmatprep.subr.bf16.mxu0 0
    %3379 = vmatpush1.bf16.msra.mxu0 0
    %3380 = vmatprep.subr.bf16.mxu0 0
    %3381 = vmatpush1.bf16.msra.mxu0 0
    %3382 = vmatprep.subr.bf16.mxu0 0
    %3383 = vmatpush1.bf16.msra.mxu0 0
    %3384 = vmatprep.subr.bf16.mxu0 0
    %3385 = vmatpush1.bf16.msra.mxu0 %v3365
    %3386 = vmatprep.subr.bf16.mxu0 0
    %3387 = vmatpush2.bf16.msra.mxu0 0
    %3388 = vmatprep.subr.bf16.mxu0 0
    %3389 = vmatpush2.bf16.msra.mxu0 0
    %3390 = vmatprep.subr.bf16.mxu0 0
    %3391 = vmatpush2.bf16.msra.mxu0 0
    %3392 = vmatprep.subr.bf16.mxu0 0
    %3393 = vmatpush2.bf16.msra.mxu0 0
    %3394 = vmatprep.subr.bf16.mxu0 0
    %3395 = vmatpush2.bf16.msra.mxu0 0
    %3396 = vmatprep.subr.bf16.mxu0 0
    %3397 = vmatpush2.bf16.msra.mxu0 0
    %3398 = vmatprep.subr.bf16.mxu0 0
    %3399 = vmatpush2.bf16.msra.mxu0 0
    %3400 = vmatprep.subr.bf16.mxu0 0
    %3401 = vmatpush2.bf16.msra.mxu0 0
    %3402 = vmatprep.mubr.bf16.mxu0 0
    %3403 = vmatmul.mubr.bf16.gmra.mxu0 %v3368
    %v3404 = vpop.f32.mrf.mxu0
    %v3405 = vadd.f32 0.0, %v3404
    %v3406 = vpop.f32.mrf.mxu0
    %v3407 = vpop.f32.mrf.mxu0
    %v3408 = vadd.f32 0.0, %v3407
    %v3409 = vpop.f32.mrf.mxu0
    %3410 = vdwg.mxu0
    %v3413 = vunpack.c.l.b16 %v2905
    %v3414 = vunpack.c.l.b16 %v2906
    %v3415 = vpack.c.b16 %v3414, %v3413
    %v3418 = vsel %vm737, %v3137, 0
    %3420 = vmatprep.subr.bf16.mxu0 0
    %3421 = vmatpush1.bf16.msra.mxu0 0
    %3422 = vmatprep.subr.bf16.mxu0 0
    %3423 = vmatpush1.bf16.msra.mxu0 0
    %3424 = vmatprep.subr.bf16.mxu0 0
    %3425 = vmatpush1.bf16.msra.mxu0 0
    %3426 = vmatprep.subr.bf16.mxu0 0
    %3427 = vmatpush1.bf16.msra.mxu0 0
    %3428 = vmatprep.subr.bf16.mxu0 0
    %3429 = vmatpush1.bf16.msra.mxu0 0
    %3430 = vmatprep.subr.bf16.mxu0 0
    %3431 = vmatpush1.bf16.msra.mxu0 0
    %3432 = vmatprep.subr.bf16.mxu0 0
    %3433 = vmatpush1.bf16.msra.mxu0 0
    %3434 = vmatprep.subr.bf16.mxu0 0
    %3435 = vmatpush1.bf16.msra.mxu0 %v3415
    %3436 = vmatprep.subr.bf16.mxu0 0
    %3437 = vmatpush2.bf16.msra.mxu0 0
    %3438 = vmatprep.subr.bf16.mxu0 0
    %3439 = vmatpush2.bf16.msra.mxu0 0
    %3440 = vmatprep.subr.bf16.mxu0 0
    %3441 = vmatpush2.bf16.msra.mxu0 0
    %3442 = vmatprep.subr.bf16.mxu0 0
    %3443 = vmatpush2.bf16.msra.mxu0 0
    %3444 = vmatprep.subr.bf16.mxu0 0
    %3445 = vmatpush2.bf16.msra.mxu0 0
    %3446 = vmatprep.subr.bf16.mxu0 0
    %3447 = vmatpush2.bf16.msra.mxu0 0
    %3448 = vmatprep.subr.bf16.mxu0 0
    %3449 = vmatpush2.bf16.msra.mxu0 0
    %3450 = vmatprep.subr.bf16.mxu0 0
    %3451 = vmatpush2.bf16.msra.mxu0 0
    %3452 = vmatprep.mubr.bf16.mxu0 0
    %3453 = vmatmul.mubr.bf16.gmra.mxu0 %v3418
    %v3454 = vpop.f32.mrf.mxu0
    %v3455 = vadd.f32 %v3405, %v3454
    %v3456 = vpop.f32.mrf.mxu0
    %v3457 = vpop.f32.mrf.mxu0
    %v3458 = vadd.f32 %v3408, %v3457
    %v3459 = vpop.f32.mrf.mxu0
    %3460 = vdwg.mxu0
    %s3461 = scalar_lea.vmem [#allocation7], 16
    %v3462 = vld [vmem:[%s3461] sm:$0x1]
    %v3464 = vlaneseq
    %v3465 = vshrl.u32 %v3464, 7
    %v3466 = vsub.s32 0, %v3465
    %v3467 = vrot.slane %v3462, %v3466
    %v3469 = vadd.f32 %v3455, %v3467
    %v3470 = vadd.f32 %v3458, %v3467
    %v3471 = vadd.f32 %v2560, %v2233
    %v3472 = vadd.f32 %v2561, %v2234
    %v3473 = vmul.f32 %v3471, 0.999995
    %v3474 = vmul.f32 %v3472, 0.999995
    %v3475 = vadd.f32 %v3469, %v2233
    %v3476 = vadd.f32 %v3470, %v2234
    %v3477 = vmul.f32 %v3475, 0.999995
    %v3478 = vmul.f32 %v3476, 0.999995
    %v3479 = vadd.f32 %v3473, %v3477
    %v3480 = vadd.f32 %v3474, %v3478
    %v3481 = vpack.c.bf16 %v3480, %v3479
    %s3482 = scalar_lea.vmem [#allocation5], 1088
    %v3483 = vld [vmem:[%s3482] sm:$0xf]
    %v3484 = vld [vmem:[%s3482 + $0x4] sm:$0xf]
    %v3485 = vld [vmem:[%s3482 + $0x8] sm:$0xf]
    %v3486 = vld [vmem:[%s3482 + $0xc] sm:$0xf]
    %v3487 = vld [vmem:[%s3482 + $0x10] sm:$0xf]
    %v3488 = vld [vmem:[%s3482 + $0x14] sm:$0xf]
    %v3489 = vld [vmem:[%s3482 + $0x18] sm:$0xf]
    %v3490 = vld [vmem:[%s3482 + $0x1c] sm:$0xf]
    %v3491 = vld [vmem:[%s3482 + $0x20] sm:$0xf]
    %v3492 = vld [vmem:[%s3482 + $0x24] sm:$0xf]
    %v3493 = vld [vmem:[%s3482 + $0x28] sm:$0xf]
    %v3494 = vld [vmem:[%s3482 + $0x2c] sm:$0xf]
    %v3495 = vld [vmem:[%s3482 + $0x30] sm:$0xf]
    %v3496 = vld [vmem:[%s3482 + $0x34] sm:$0xf]
    %v3497 = vld [vmem:[%s3482 + $0x38] sm:$0xf]
    %v3498 = vld [vmem:[%s3482 + $0x3c] sm:$0xf]
    %s3499 = scalar_lea.vmem [#allocation7], 17
    %v3500 = vld [vmem:[%s3499] sm:$0x1]
    %v3502 = vlaneseq
    %v3503 = vshrl.u32 %v3502, 7
    %v3504 = vsub.s32 0, %v3503
    %v3505 = vrot.slane %v3500, %v3504
    %v3523 = vunpack.c.l.b16 %v3483
    %v3524 = vunpack.c.l.b16 %v3484
    %v3525 = vunpack.c.l.b16 %v3485
    %v3526 = vunpack.c.l.b16 %v3486
    %v3527 = vunpack.c.l.b16 %v3487
    %v3528 = vunpack.c.l.b16 %v3488
    %v3529 = vunpack.c.l.b16 %v3489
    %v3530 = vunpack.c.l.b16 %v3490
    %v3531 = vunpack.c.l.b16 %v3491
    %v3532 = vunpack.c.l.b16 %v3492
    %v3533 = vunpack.c.l.b16 %v3493
    %v3534 = vunpack.c.l.b16 %v3494
    %v3535 = vunpack.c.l.b16 %v3495
    %v3536 = vunpack.c.l.b16 %v3496
    %v3537 = vunpack.c.l.b16 %v3497
    %v3538 = vunpack.c.l.b16 %v3498
    %v3539 = vpack.c.b16 %v3524, %v3523
    %v3540 = vpack.c.b16 %v3526, %v3525
    %v3541 = vpack.c.b16 %v3528, %v3527
    %v3542 = vpack.c.b16 %v3530, %v3529
    %v3543 = vpack.c.b16 %v3532, %v3531
    %v3544 = vpack.c.b16 %v3534, %v3533
    %v3545 = vpack.c.b16 %v3536, %v3535
    %v3546 = vpack.c.b16 %v3538, %v3537
    %3555 = vmatprep.subr.bf16.mxu0 0
    %3556 = vmatpush1.bf16.msra.mxu0 %v3546
    %3557 = vmatprep.subr.bf16.mxu0 0
    %3558 = vmatpush1.bf16.msra.mxu0 %v3545
    %3559 = vmatprep.subr.bf16.mxu0 0
    %3560 = vmatpush1.bf16.msra.mxu0 %v3544
    %3561 = vmatprep.subr.bf16.mxu0 0
    %3562 = vmatpush1.bf16.msra.mxu0 %v3543
    %3563 = vmatprep.subr.bf16.mxu0 0
    %3564 = vmatpush1.bf16.msra.mxu0 %v3542
    %3565 = vmatprep.subr.bf16.mxu0 0
    %3566 = vmatpush1.bf16.msra.mxu0 %v3541
    %3567 = vmatprep.subr.bf16.mxu0 0
    %3568 = vmatpush1.bf16.msra.mxu0 %v3540
    %3569 = vmatprep.subr.bf16.mxu0 0
    %3570 = vmatpush1.bf16.msra.mxu0 %v3539
    %3571 = vmatprep.subr.bf16.mxu0 0
    %3572 = vmatpush2.bf16.msra.mxu0 0
    %3573 = vmatprep.subr.bf16.mxu0 0
    %3574 = vmatpush2.bf16.msra.mxu0 0
    %3575 = vmatprep.subr.bf16.mxu0 0
    %3576 = vmatpush2.bf16.msra.mxu0 0
    %3577 = vmatprep.subr.bf16.mxu0 0
    %3578 = vmatpush2.bf16.msra.mxu0 0
    %3579 = vmatprep.subr.bf16.mxu0 0
    %3580 = vmatpush2.bf16.msra.mxu0 0
    %3581 = vmatprep.subr.bf16.mxu0 0
    %3582 = vmatpush2.bf16.msra.mxu0 0
    %3583 = vmatprep.subr.bf16.mxu0 0
    %3584 = vmatpush2.bf16.msra.mxu0 0
    %3585 = vmatprep.subr.bf16.mxu0 0
    %3586 = vmatpush2.bf16.msra.mxu0 0
    %3587 = vmatprep.mubr.bf16.mxu0 0
    %3588 = vmatmul.mubr.bf16.gmra.mxu0 %v3481
    %v3589 = vpop.f32.mrf.mxu0
    %v3590 = vadd.f32 %v3505, %v3589
    %v3591 = vpop.f32.mrf.mxu0
    %v3592 = vpop.f32.mrf.mxu0
    %v3593 = vadd.f32 %v3505, %v3592
    %v3594 = vpop.f32.mrf.mxu0
    %3595 = vdwg.mxu0
    %v3596 = vmax.f32 %v3590, 0.0
    %v3597 = vmax.f32 %v3593, 0.0
    %v3598 = vpack.c.bf16 %v3597, %v3596
    %s3599 = scalar_lea.vmem [#allocation5], 1152
    %v3600 = vld [vmem:[%s3599] sm:$0xf]
    %v3601 = vld [vmem:[%s3599 + $0x4] sm:$0xf]
    %v3602 = vld [vmem:[%s3599 + $0x8] sm:$0xf]
    %v3603 = vld [vmem:[%s3599 + $0xc] sm:$0xf]
    %v3604 = vld [vmem:[%s3599 + $0x10] sm:$0xf]
    %v3605 = vld [vmem:[%s3599 + $0x14] sm:$0xf]
    %v3606 = vld [vmem:[%s3599 + $0x18] sm:$0xf]
    %v3607 = vld [vmem:[%s3599 + $0x1c] sm:$0xf]
    %v3608 = vld [vmem:[%s3599 + $0x20] sm:$0xf]
    %v3609 = vld [vmem:[%s3599 + $0x24] sm:$0xf]
    %v3610 = vld [vmem:[%s3599 + $0x28] sm:$0xf]
    %v3611 = vld [vmem:[%s3599 + $0x2c] sm:$0xf]
    %v3612 = vld [vmem:[%s3599 + $0x30] sm:$0xf]
    %v3613 = vld [vmem:[%s3599 + $0x34] sm:$0xf]
    %v3614 = vld [vmem:[%s3599 + $0x38] sm:$0xf]
    %v3615 = vld [vmem:[%s3599 + $0x3c] sm:$0xf]
    %s3616 = scalar_lea.vmem [#allocation7], 18
    %v3617 = vld [vmem:[%s3616] sm:$0x1]
    %v3619 = vlaneseq
    %v3620 = vshrl.u32 %v3619, 7
    %v3621 = vsub.s32 0, %v3620
    %v3622 = vrot.slane %v3617, %v3621
    %v3640 = vunpack.c.l.b16 %v3600
    %v3641 = vunpack.c.l.b16 %v3601
    %v3642 = vunpack.c.l.b16 %v3602
    %v3643 = vunpack.c.l.b16 %v3603
    %v3644 = vunpack.c.l.b16 %v3604
    %v3645 = vunpack.c.l.b16 %v3605
    %v3646 = vunpack.c.l.b16 %v3606
    %v3647 = vunpack.c.l.b16 %v3607
    %v3648 = vunpack.c.l.b16 %v3608
    %v3649 = vunpack.c.l.b16 %v3609
    %v3650 = vunpack.c.l.b16 %v3610
    %v3651 = vunpack.c.l.b16 %v3611
    %v3652 = vunpack.c.l.b16 %v3612
    %v3653 = vunpack.c.l.b16 %v3613
    %v3654 = vunpack.c.l.b16 %v3614
    %v3655 = vunpack.c.l.b16 %v3615
    %v3656 = vpack.c.b16 %v3641, %v3640
    %v3657 = vpack.c.b16 %v3643, %v3642
    %v3658 = vpack.c.b16 %v3645, %v3644
    %v3659 = vpack.c.b16 %v3647, %v3646
    %v3660 = vpack.c.b16 %v3649, %v3648
    %v3661 = vpack.c.b16 %v3651, %v3650
    %v3662 = vpack.c.b16 %v3653, %v3652
    %v3663 = vpack.c.b16 %v3655, %v3654
    %3672 = vmatprep.subr.bf16.mxu0 0
    %3673 = vmatpush1.bf16.msra.mxu0 %v3663
    %3674 = vmatprep.subr.bf16.mxu0 0
    %3675 = vmatpush1.bf16.msra.mxu0 %v3662
    %3676 = vmatprep.subr.bf16.mxu0 0
    %3677 = vmatpush1.bf16.msra.mxu0 %v3661
    %3678 = vmatprep.subr.bf16.mxu0 0
    %3679 = vmatpush1.bf16.msra.mxu0 %v3660
    %3680 = vmatprep.subr.bf16.mxu0 0
    %3681 = vmatpush1.bf16.msra.mxu0 %v3659
    %3682 = vmatprep.subr.bf16.mxu0 0
    %3683 = vmatpush1.bf16.msra.mxu0 %v3658
    %3684 = vmatprep.subr.bf16.mxu0 0
    %3685 = vmatpush1.bf16.msra.mxu0 %v3657
    %3686 = vmatprep.subr.bf16.mxu0 0
    %3687 = vmatpush1.bf16.msra.mxu0 %v3656
    %3688 = vmatprep.subr.bf16.mxu0 0
    %3689 = vmatpush2.bf16.msra.mxu0 0
    %3690 = vmatprep.subr.bf16.mxu0 0
    %3691 = vmatpush2.bf16.msra.mxu0 0
    %3692 = vmatprep.subr.bf16.mxu0 0
    %3693 = vmatpush2.bf16.msra.mxu0 0
    %3694 = vmatprep.subr.bf16.mxu0 0
    %3695 = vmatpush2.bf16.msra.mxu0 0
    %3696 = vmatprep.subr.bf16.mxu0 0
    %3697 = vmatpush2.bf16.msra.mxu0 0
    %3698 = vmatprep.subr.bf16.mxu0 0
    %3699 = vmatpush2.bf16.msra.mxu0 0
    %3700 = vmatprep.subr.bf16.mxu0 0
    %3701 = vmatpush2.bf16.msra.mxu0 0
    %3702 = vmatprep.subr.bf16.mxu0 0
    %3703 = vmatpush2.bf16.msra.mxu0 0
    %3704 = vmatprep.mubr.bf16.mxu0 0
    %3705 = vmatmul.mubr.bf16.gmra.mxu0 %v3598
    %v3706 = vpop.f32.mrf.mxu0
    %v3707 = vadd.f32 %v3622, %v3706
    %v3708 = vpop.f32.mrf.mxu0
    %v3709 = vpop.f32.mrf.mxu0
    %v3710 = vadd.f32 %v3622, %v3709
    %v3711 = vpop.f32.mrf.mxu0
    %3712 = vdwg.mxu0
    %v3713 = vadd.f32 %v3479, %v3707
    %v3714 = vadd.f32 %v3480, %v3710
    %v3715 = vmul.f32 %v3713, 0.999995
    %v3716 = vmul.f32 %v3714, 0.999995
    %v3717 = vpack.c.bf16 %v3716, %v3715
    %v3719 = vsel %vm737, %v611, 0
    %3721 = vmatprep.subr.bf16.mxu0 0
    %3722 = vmatpush1.bf16.msra.mxu0 0
    %3723 = vmatprep.subr.bf16.mxu0 0
    %3724 = vmatpush1.bf16.msra.mxu0 0
    %3725 = vmatprep.subr.bf16.mxu0 0
    %3726 = vmatpush1.bf16.msra.mxu0 0
    %3727 = vmatprep.subr.bf16.mxu0 0
    %3728 = vmatpush1.bf16.msra.mxu0 0
    %3729 = vmatprep.subr.bf16.mxu0 0
    %3730 = vmatpush1.bf16.msra.mxu0 0
    %3731 = vmatprep.subr.bf16.mxu0 0
    %3732 = vmatpush1.bf16.msra.mxu0 0
    %3733 = vmatprep.subr.bf16.mxu0 0
    %3734 = vmatpush1.bf16.msra.mxu0 0
    %3735 = vmatprep.subr.bf16.mxu0 0
    %3736 = vmatpush1.bf16.msra.mxu0 %v3717
    %3737 = vmatprep.subr.bf16.mxu0 0
    %3738 = vmatpush2.bf16.msra.mxu0 0
    %3739 = vmatprep.subr.bf16.mxu0 0
    %3740 = vmatpush2.bf16.msra.mxu0 0
    %3741 = vmatprep.subr.bf16.mxu0 0
    %3742 = vmatpush2.bf16.msra.mxu0 0
    %3743 = vmatprep.subr.bf16.mxu0 0
    %3744 = vmatpush2.bf16.msra.mxu0 0
    %3745 = vmatprep.subr.bf16.mxu0 0
    %3746 = vmatpush2.bf16.msra.mxu0 0
    %3747 = vmatprep.subr.bf16.mxu0 0
    %3748 = vmatpush2.bf16.msra.mxu0 0
    %3749 = vmatprep.subr.bf16.mxu0 0
    %3750 = vmatpush2.bf16.msra.mxu0 0
    %3751 = vmatprep.subr.bf16.mxu0 0
    %3752 = vmatpush2.bf16.msra.mxu0 0
    %3753 = vmatprep.mubr.bf16.mxu0 0
    %3754 = vmatmul.mubr.bf16.gmra.mxu0 %v3719
    %v3755 = vpop.f32.mrf.mxu0
    %v3756 = vadd.f32 0.0, %v3755
    %v3757 = vpop.f32.mrf.mxu0
    %v3758 = vpop.f32.mrf.mxu0
    %v3759 = vpop.f32.mrf.mxu0
    %3760 = vdwg.mxu0
    %v3761 = vmul.f32 %v3756, 0.125
    %v3762 = vpack.c.bf16 %v3761, %v3761
    %s3763 = scalar_lea.vmem [#allocation5], 1216
    %v3764 = vld [vmem:[%s3763] sm:$0xf]
    %v3765 = vld [vmem:[%s3763 + $0x4] sm:$0xf]
    %v3766 = vld [vmem:[%s3763 + $0x8] sm:$0xf]
    %v3767 = vld [vmem:[%s3763 + $0xc] sm:$0xf]
    %v3768 = vld [vmem:[%s3763 + $0x10] sm:$0xf]
    %v3769 = vld [vmem:[%s3763 + $0x14] sm:$0xf]
    %v3770 = vld [vmem:[%s3763 + $0x18] sm:$0xf]
    %v3771 = vld [vmem:[%s3763 + $0x1c] sm:$0xf]
    %v3772 = vld [vmem:[%s3763 + $0x20] sm:$0xf]
    %v3773 = vld [vmem:[%s3763 + $0x24] sm:$0xf]
    %v3774 = vld [vmem:[%s3763 + $0x28] sm:$0xf]
    %v3775 = vld [vmem:[%s3763 + $0x2c] sm:$0xf]
    %v3776 = vld [vmem:[%s3763 + $0x30] sm:$0xf]
    %v3777 = vld [vmem:[%s3763 + $0x34] sm:$0xf]
    %v3778 = vld [vmem:[%s3763 + $0x38] sm:$0xf]
    %v3779 = vld [vmem:[%s3763 + $0x3c] sm:$0xf]
    %s3780 = scalar_lea.vmem [#allocation7], 19
    %v3781 = vld [vmem:[%s3780] sm:$0x1]
    %v3783 = vlaneseq
    %v3784 = vshrl.u32 %v3783, 7
    %v3785 = vsub.s32 0, %v3784
    %v3786 = vrot.slane %v3781, %v3785
    %v3804 = vunpack.c.l.b16 %v3764
    %v3805 = vunpack.c.l.b16 %v3765
    %v3806 = vunpack.c.l.b16 %v3766
    %v3807 = vunpack.c.l.b16 %v3767
    %v3808 = vunpack.c.l.b16 %v3768
    %v3809 = vunpack.c.l.b16 %v3769
    %v3810 = vunpack.c.l.b16 %v3770
    %v3811 = vunpack.c.l.b16 %v3771
    %v3812 = vunpack.c.l.b16 %v3772
    %v3813 = vunpack.c.l.b16 %v3773
    %v3814 = vunpack.c.l.b16 %v3774
    %v3815 = vunpack.c.l.b16 %v3775
    %v3816 = vunpack.c.l.b16 %v3776
    %v3817 = vunpack.c.l.b16 %v3777
    %v3818 = vunpack.c.l.b16 %v3778
    %v3819 = vunpack.c.l.b16 %v3779
    %v3820 = vpack.c.b16 %v3805, %v3804
    %v3821 = vpack.c.b16 %v3807, %v3806
    %v3822 = vpack.c.b16 %v3809, %v3808
    %v3823 = vpack.c.b16 %v3811, %v3810
    %v3824 = vpack.c.b16 %v3813, %v3812
    %v3825 = vpack.c.b16 %v3815, %v3814
    %v3826 = vpack.c.b16 %v3817, %v3816
    %v3827 = vpack.c.b16 %v3819, %v3818
    %3836 = vmatprep.subr.bf16.mxu0 0
    %3837 = vmatpush1.bf16.msra.mxu0 %v3827
    %3838 = vmatprep.subr.bf16.mxu0 0
    %3839 = vmatpush1.bf16.msra.mxu0 %v3826
    %3840 = vmatprep.subr.bf16.mxu0 0
    %3841 = vmatpush1.bf16.msra.mxu0 %v3825
    %3842 = vmatprep.subr.bf16.mxu0 0
    %3843 = vmatpush1.bf16.msra.mxu0 %v3824
    %3844 = vmatprep.subr.bf16.mxu0 0
    %3845 = vmatpush1.bf16.msra.mxu0 %v3823
    %3846 = vmatprep.subr.bf16.mxu0 0
    %3847 = vmatpush1.bf16.msra.mxu0 %v3822
    %3848 = vmatprep.subr.bf16.mxu0 0
    %3849 = vmatpush1.bf16.msra.mxu0 %v3821
    %3850 = vmatprep.subr.bf16.mxu0 0
    %3851 = vmatpush1.bf16.msra.mxu0 %v3820
    %3852 = vmatprep.subr.bf16.mxu0 0
    %3853 = vmatpush2.bf16.msra.mxu0 0
    %3854 = vmatprep.subr.bf16.mxu0 0
    %3855 = vmatpush2.bf16.msra.mxu0 0
    %3856 = vmatprep.subr.bf16.mxu0 0
    %3857 = vmatpush2.bf16.msra.mxu0 0
    %3858 = vmatprep.subr.bf16.mxu0 0
    %3859 = vmatpush2.bf16.msra.mxu0 0
    %3860 = vmatprep.subr.bf16.mxu0 0
    %3861 = vmatpush2.bf16.msra.mxu0 0
    %3862 = vmatprep.subr.bf16.mxu0 0
    %3863 = vmatpush2.bf16.msra.mxu0 0
    %3864 = vmatprep.subr.bf16.mxu0 0
    %3865 = vmatpush2.bf16.msra.mxu0 0
    %3866 = vmatprep.subr.bf16.mxu0 0
    %3867 = vmatpush2.bf16.msra.mxu0 0
    %3868 = vmatprep.mubr.bf16.mxu0 0
    %3869 = vmatmul.mubr.bf16.gmra.mxu0 %v3762
    %v3870 = vpop.f32.mrf.mxu0
    %v3871 = vadd.f32 %v3786, %v3870
    %v3872 = vpop.f32.mrf.mxu0
    %v3873 = vpop.f32.mrf.mxu0
    %v3874 = vpop.f32.mrf.mxu0
    %3875 = vdwg.mxu0
    %vm3876 = vcmp.ge.f32.partialorder %v3871, 0.0
    %v3877 = vmul.f32 %v3871, 0.2
    %v3878 = vsel %vm3876, %v3871, %v3877
    %v3879 = vpack.c.bf16 %v3878, %v3878
    %s3880 = scalar_lea.vmem [#allocation5], 1280
    %v3881 = vld [vmem:[%s3880] sm:$0xf]
    %v3882 = vld [vmem:[%s3880 + $0x4] sm:$0xf]
    %v3883 = vld [vmem:[%s3880 + $0x8] sm:$0xf]
    %v3884 = vld [vmem:[%s3880 + $0xc] sm:$0xf]
    %v3885 = vld [vmem:[%s3880 + $0x10] sm:$0xf]
    %v3886 = vld [vmem:[%s3880 + $0x14] sm:$0xf]
    %v3887 = vld [vmem:[%s3880 + $0x18] sm:$0xf]
    %v3888 = vld [vmem:[%s3880 + $0x1c] sm:$0xf]
    %v3889 = vld [vmem:[%s3880 + $0x20] sm:$0xf]
    %v3890 = vld [vmem:[%s3880 + $0x24] sm:$0xf]
    %v3891 = vld [vmem:[%s3880 + $0x28] sm:$0xf]
    %v3892 = vld [vmem:[%s3880 + $0x2c] sm:$0xf]
    %v3893 = vld [vmem:[%s3880 + $0x30] sm:$0xf]
    %v3894 = vld [vmem:[%s3880 + $0x34] sm:$0xf]
    %v3895 = vld [vmem:[%s3880 + $0x38] sm:$0xf]
    %v3896 = vld [vmem:[%s3880 + $0x3c] sm:$0xf]
    %s3897 = scalar_lea.vmem [#allocation7], 20
    %v3898 = vld [vmem:[%s3897] sm:$0x1]
    %v3900 = vlaneseq
    %v3901 = vshrl.u32 %v3900, 7
    %v3902 = vsub.s32 0, %v3901
    %v3903 = vrot.slane %v3898, %v3902
    %v3921 = vunpack.c.l.b16 %v3881
    %v3922 = vunpack.c.l.b16 %v3882
    %v3923 = vunpack.c.l.b16 %v3883
    %v3924 = vunpack.c.l.b16 %v3884
    %v3925 = vunpack.c.l.b16 %v3885
    %v3926 = vunpack.c.l.b16 %v3886
    %v3927 = vunpack.c.l.b16 %v3887
    %v3928 = vunpack.c.l.b16 %v3888
    %v3929 = vunpack.c.l.b16 %v3889
    %v3930 = vunpack.c.l.b16 %v3890
    %v3931 = vunpack.c.l.b16 %v3891
    %v3932 = vunpack.c.l.b16 %v3892
    %v3933 = vunpack.c.l.b16 %v3893
    %v3934 = vunpack.c.l.b16 %v3894
    %v3935 = vunpack.c.l.b16 %v3895
    %v3936 = vunpack.c.l.b16 %v3896
    %v3937 = vpack.c.b16 %v3922, %v3921
    %v3938 = vpack.c.b16 %v3924, %v3923
    %v3939 = vpack.c.b16 %v3926, %v3925
    %v3940 = vpack.c.b16 %v3928, %v3927
    %v3941 = vpack.c.b16 %v3930, %v3929
    %v3942 = vpack.c.b16 %v3932, %v3931
    %v3943 = vpack.c.b16 %v3934, %v3933
    %v3944 = vpack.c.b16 %v3936, %v3935
    %3953 = vmatprep.subr.bf16.mxu0 0
    %3954 = vmatpush1.bf16.msra.mxu0 %v3944
    %3955 = vmatprep.subr.bf16.mxu0 0
    %3956 = vmatpush1.bf16.msra.mxu0 %v3943
    %3957 = vmatprep.subr.bf16.mxu0 0
    %3958 = vmatpush1.bf16.msra.mxu0 %v3942
    %3959 = vmatprep.subr.bf16.mxu0 0
    %3960 = vmatpush1.bf16.msra.mxu0 %v3941
    %3961 = vmatprep.subr.bf16.mxu0 0
    %3962 = vmatpush1.bf16.msra.mxu0 %v3940
    %3963 = vmatprep.subr.bf16.mxu0 0
    %3964 = vmatpush1.bf16.msra.mxu0 %v3939
    %3965 = vmatprep.subr.bf16.mxu0 0
    %3966 = vmatpush1.bf16.msra.mxu0 %v3938
    %3967 = vmatprep.subr.bf16.mxu0 0
    %3968 = vmatpush1.bf16.msra.mxu0 %v3937
    %3969 = vmatprep.subr.bf16.mxu0 0
    %3970 = vmatpush2.bf16.msra.mxu0 0
    %3971 = vmatprep.subr.bf16.mxu0 0
    %3972 = vmatpush2.bf16.msra.mxu0 0
    %3973 = vmatprep.subr.bf16.mxu0 0
    %3974 = vmatpush2.bf16.msra.mxu0 0
    %3975 = vmatprep.subr.bf16.mxu0 0
    %3976 = vmatpush2.bf16.msra.mxu0 0
    %3977 = vmatprep.subr.bf16.mxu0 0
    %3978 = vmatpush2.bf16.msra.mxu0 0
    %3979 = vmatprep.subr.bf16.mxu0 0
    %3980 = vmatpush2.bf16.msra.mxu0 0
    %3981 = vmatprep.subr.bf16.mxu0 0
    %3982 = vmatpush2.bf16.msra.mxu0 0
    %3983 = vmatprep.subr.bf16.mxu0 0
    %3984 = vmatpush2.bf16.msra.mxu0 0
    %3985 = vmatprep.mubr.bf16.mxu0 0
    %3986 = vmatmul.mubr.bf16.gmra.mxu0 %v3879
    %v3987 = vpop.f32.mrf.mxu0
    %v3988 = vadd.f32 %v3903, %v3987
    %v3989 = vpop.f32.mrf.mxu0
    %v3990 = vpop.f32.mrf.mxu0
    %v3991 = vpop.f32.mrf.mxu0
    %3992 = vdwg.mxu0
    %vm3993 = vcmp.ge.f32.partialorder %v3988, 0.0
    %v3994 = vmul.f32 %v3988, 0.2
    %v3995 = vsel %vm3993, %v3988, %v3994
    %v3996 = vpack.c.bf16 %v3995, %v3995
    %s3997 = scalar_lea.vmem [#allocation5], 1344
    %v3998 = vld [vmem:[%s3997] sm:$0xf]
    %v3999 = vld [vmem:[%s3997 + $0x4] sm:$0xf]
    %v4000 = vld [vmem:[%s3997 + $0x8] sm:$0xf]
    %v4001 = vld [vmem:[%s3997 + $0xc] sm:$0xf]
    %v4002 = vld [vmem:[%s3997 + $0x10] sm:$0xf]
    %v4003 = vld [vmem:[%s3997 + $0x14] sm:$0xf]
    %v4004 = vld [vmem:[%s3997 + $0x18] sm:$0xf]
    %v4005 = vld [vmem:[%s3997 + $0x1c] sm:$0xf]
    %v4006 = vld [vmem:[%s3997 + $0x20] sm:$0xf]
    %v4007 = vld [vmem:[%s3997 + $0x24] sm:$0xf]
    %v4008 = vld [vmem:[%s3997 + $0x28] sm:$0xf]
    %v4009 = vld [vmem:[%s3997 + $0x2c] sm:$0xf]
    %v4010 = vld [vmem:[%s3997 + $0x30] sm:$0xf]
    %v4011 = vld [vmem:[%s3997 + $0x34] sm:$0xf]
    %v4012 = vld [vmem:[%s3997 + $0x38] sm:$0xf]
    %v4013 = vld [vmem:[%s3997 + $0x3c] sm:$0xf]
    %s4014 = scalar_lea.vmem [#allocation7], 21
    %v4015 = vld [vmem:[%s4014] sm:$0x1]
    %v4017 = vlaneseq
    %v4018 = vshrl.u32 %v4017, 7
    %v4019 = vsub.s32 0, %v4018
    %v4020 = vrot.slane %v4015, %v4019
    %v4038 = vunpack.c.l.b16 %v3998
    %v4039 = vunpack.c.l.b16 %v3999
    %v4040 = vunpack.c.l.b16 %v4000
    %v4041 = vunpack.c.l.b16 %v4001
    %v4042 = vunpack.c.l.b16 %v4002
    %v4043 = vunpack.c.l.b16 %v4003
    %v4044 = vunpack.c.l.b16 %v4004
    %v4045 = vunpack.c.l.b16 %v4005
    %v4046 = vunpack.c.l.b16 %v4006
    %v4047 = vunpack.c.l.b16 %v4007
    %v4048 = vunpack.c.l.b16 %v4008
    %v4049 = vunpack.c.l.b16 %v4009
    %v4050 = vunpack.c.l.b16 %v4010
    %v4051 = vunpack.c.l.b16 %v4011
    %v4052 = vunpack.c.l.b16 %v4012
    %v4053 = vunpack.c.l.b16 %v4013
    %v4054 = vpack.c.b16 %v4039, %v4038
    %v4055 = vpack.c.b16 %v4041, %v4040
    %v4056 = vpack.c.b16 %v4043, %v4042
    %v4057 = vpack.c.b16 %v4045, %v4044
    %v4058 = vpack.c.b16 %v4047, %v4046
    %v4059 = vpack.c.b16 %v4049, %v4048
    %v4060 = vpack.c.b16 %v4051, %v4050
    %v4061 = vpack.c.b16 %v4053, %v4052
    %4070 = vmatprep.subr.bf16.mxu0 0
    %4071 = vmatpush1.bf16.msra.mxu0 %v4061
    %4072 = vmatprep.subr.bf16.mxu0 0
    %4073 = vmatpush1.bf16.msra.mxu0 %v4060
    %4074 = vmatprep.subr.bf16.mxu0 0
    %4075 = vmatpush1.bf16.msra.mxu0 %v4059
    %4076 = vmatprep.subr.bf16.mxu0 0
    %4077 = vmatpush1.bf16.msra.mxu0 %v4058
    %4078 = vmatprep.subr.bf16.mxu0 0
    %4079 = vmatpush1.bf16.msra.mxu0 %v4057
    %4080 = vmatprep.subr.bf16.mxu0 0
    %4081 = vmatpush1.bf16.msra.mxu0 %v4056
    %4082 = vmatprep.subr.bf16.mxu0 0
    %4083 = vmatpush1.bf16.msra.mxu0 %v4055
    %4084 = vmatprep.subr.bf16.mxu0 0
    %4085 = vmatpush1.bf16.msra.mxu0 %v4054
    %4086 = vmatprep.subr.bf16.mxu0 0
    %4087 = vmatpush2.bf16.msra.mxu0 0
    %4088 = vmatprep.subr.bf16.mxu0 0
    %4089 = vmatpush2.bf16.msra.mxu0 0
    %4090 = vmatprep.subr.bf16.mxu0 0
    %4091 = vmatpush2.bf16.msra.mxu0 0
    %4092 = vmatprep.subr.bf16.mxu0 0
    %4093 = vmatpush2.bf16.msra.mxu0 0
    %4094 = vmatprep.subr.bf16.mxu0 0
    %4095 = vmatpush2.bf16.msra.mxu0 0
    %4096 = vmatprep.subr.bf16.mxu0 0
    %4097 = vmatpush2.bf16.msra.mxu0 0
    %4098 = vmatprep.subr.bf16.mxu0 0
    %4099 = vmatpush2.bf16.msra.mxu0 0
    %4100 = vmatprep.subr.bf16.mxu0 0
    %4101 = vmatpush2.bf16.msra.mxu0 0
    %4102 = vmatprep.mubr.bf16.mxu0 0
    %4103 = vmatmul.mubr.bf16.gmra.mxu0 %v3996
    %v4104 = vpop.f32.mrf.mxu0
    %v4105 = vadd.f32 %v4020, %v4104
    %v4106 = vpop.f32.mrf.mxu0
    %v4107 = vpop.f32.mrf.mxu0
    %v4108 = vpop.f32.mrf.mxu0
    %4109 = vdwg.mxu0
    %4110 = vst [vmem:[#allocation8] sm:$0x3] %v4105
    // Predicated region
    $region42: #{tpu_custom_call.1} parent=1 // pred_check
      _
    $region43: #{tpu_custom_call.1} parent=1 // pred_check_branch
      %4112 = sbr.rel (0) target = $region45
    $region44: #{tpu_custom_call.1} parent=1 // pred_region
      %s4114 = ssub.s32 32, 32
      %4115 = vsyncadd [#allocation4], %s4114
      %s4117 = sshll.u32 [#allocation8], 4
      %s4118 = int_to_ptr.vmem [resolvable:$true] %s4117
      %4120 = dma.vmem_to_hbm [thread:$0]  %s4118, 32, %s7, [#allocation4]
    $region45: #{tpu_custom_call.1} parent=1 // pred_fallthru
      _
    // Predicated region
    $region46: #{tpu_custom_call.1} parent=1 // pred_check
      _
    $region47: #{tpu_custom_call.1} parent=1 // pred_check_branch
      %4122 = sbr.rel (0) target = $region49
    $region48: #{tpu_custom_call.1} parent=1 // pred_region
      %4123 = dma.done [#allocation4], 32
    $region49: #{tpu_custom_call.1} parent=1 // pred_fallthru
      _
    %4124 = vsyncpa [#allocation3], 1
    %4125 = vsyncpa [#allocation6], 1
    %4126 = vsyncpa [#allocation4], 1

</llo_original>
